<compile_context>
chip_gen: v7x
topology: tpu7x:2x2x1
jax: 0.10.0
libtpu: 0.0.40
codegen_flags: <defaults>
</compile_context>

<pallas_src>
import functools

import jax
import jax.numpy as jnp
from jax.experimental import pallas as pl
from jax.experimental.pallas import tpu as pltpu

IN_FEATURES = 2000
OUT_FEATURES = 2000
TN = 1024  # N tile: multiple of 128; grid of 2 so both v7x TensorCores work


def _linear_add_relu_kernel(x_ref, w_ref, b_ref, r_ref, o_ref):
    # MXU matmul (bf16 x bf16 -> f32 accumulate); fused bias + residual + ReLU
    # on the VPU. x is tiny -> in-kernel cast to bf16 is negligible.
    x = x_ref[...].astype(jnp.bfloat16)
    acc = jnp.dot(x, w_ref[...], preferred_element_type=jnp.float32)
    v = acc + b_ref[...] + r_ref[...]
    o_ref[...] = jnp.maximum(v, 0.0).astype(o_ref.dtype)


def prepare_params(weight, bias, *, tn=TN):
    """One-time layout prep (run OUTSIDE the hot path).

    weight: [N, K] torch-style Linear weight (f32)
        -> bf16, transposed, N-padded, tile-major [N_pad//tn, K, tn]
           (each tile is contiguous in HBM -> one large contiguous DMA/step)
    bias:   [N] -> f32 [1, N_pad]
    """
    N, K = weight.shape
    n_tiles = pl.cdiv(N, tn)
    n_pad = n_tiles * tn - N

    weight_t = weight.T  # [K, N]
    if n_pad:
        weight_t = jnp.pad(weight_t, ((0, 0), (0, n_pad)))
        bias = jnp.pad(bias, ((0, n_pad),))

    # [K, N_pad] -> [K, n_tiles, tn] -> [n_tiles, K, tn]  (tile-major, contiguous)
    weight_tiled = weight_t.astype(jnp.bfloat16).reshape(K, n_tiles, tn)
    weight_tiled = jnp.transpose(weight_tiled, (1, 0, 2))

    return weight_tiled, bias.reshape(1, -1).astype(jnp.float32)


@functools.partial(jax.jit, static_argnames=("tn",))
def linear_add_relu(x1, weight_tiled, bias_p, x12, *, tn=TN):
    """relu(x1 @ W.T + b + x12) with W pre-tiled as weight_tiled.

    x1:           [B, K]            (f32)
    weight_tiled: [n_tiles, K, tn]  (bf16, tile-major, N-padded)
    bias_p:       [1, n_tiles*tn]   (f32, N-padded)
    x12:          [B, N]            (f32, unpadded)
    returns       [B, N]            (f32, unpadded)
    """
    B, K = x1.shape
    n_tiles = weight_tiled.shape[0]
    N = x12.shape[1]

    grid = (n_tiles,)

    bytes_accessed = (
        weight_tiled.size * 2          # bf16 weight stream (dominant)
        + x1.size * 4
        + bias_p.size * 4
        + x12.size * 4
        + B * N * 4
    )
    cost = pl.CostEstimate(
        flops=2 * B * K * n_tiles * tn,
        transcendentals=0,
        bytes_accessed=bytes_accessed,
    )

    out = pl.pallas_call(
        _linear_add_relu_kernel,
        out_shape=jax.ShapeDtypeStruct((B, N), x12.dtype),
        grid_spec=pltpu.PrefetchScalarGridSpec(
            num_scalar_prefetch=0,
            grid=grid,
            in_specs=[
                pl.BlockSpec((B, K), lambda j: (0, 0)),          # x1, resident
                pl.BlockSpec((None, K, tn), lambda j: (j, 0, 0)),  # contiguous weight tile
                pl.BlockSpec((1, tn), lambda j: (0, j)),          # bias tile (padded)
                pl.BlockSpec((B, tn), lambda j: (0, j)),          # residual tile (ragged last)
            ],
            out_specs=pl.BlockSpec((B, tn), lambda j: (0, j)),    # ragged last tile masked
        ),
        compiler_params=pltpu.CompilerParams(
            dimension_semantics=("parallel",),
            # bf16 tiles: ~3.9 MiB x 2 buffers + small operands; 32 MiB is ample
            # headroom on every generation.
            vmem_limit_bytes=32 * 1024 * 1024,
        ),
        cost_estimate=cost,
    )(x1, weight_tiled, bias_p, x12)

    return out


def init_params(key, in_features, out_features, dtype=jnp.float32):
    # Deterministic init mimicking torch.nn.Linear default (uniform +/- 1/sqrt(in)).
    k_w, k_b = jax.random.split(key)
    bound = 1.0 / (in_features ** 0.5)
    weight = jax.random.uniform(
        k_w, (out_features, in_features), dtype, minval=-bound, maxval=bound)
    bias = jax.random.uniform(
        k_b, (out_features,), dtype, minval=-bound, maxval=bound)
    return weight, bias


if __name__ == "__main__":
    key = jax.random.PRNGKey(0)
    k_x1, k_x12, k_params = jax.random.split(key, 3)

    # Shapes implied by the module: x1, x12 of shape (1, 2000).
    x1 = jax.random.normal(k_x1, (1, IN_FEATURES), jnp.float32)
    x12 = jax.random.normal(k_x12, (1, OUT_FEATURES), jnp.float32)

    weight, bias = init_params(k_params, IN_FEATURES, OUT_FEATURES)

    # One-time layout prep outside the jitted hot path (bf16 cast + tile-major).
    weight_tiled, bias_p = jax.block_until_ready(prepare_params(weight, bias))

    out = linear_add_relu(x1, weight_tiled, bias_p, x12)
    out = jax.block_until_ready(out)

    # Reference check against plain f32 JAX (bf16 weights -> relaxed tolerance).
    ref = jnp.maximum(x1 @ weight.T + bias + x12, 0.0)
    assert out.shape == (1, OUT_FEATURES)
    assert jnp.allclose(out, ref, atol=2e-2, rtol=2e-2), (
        float(jnp.max(jnp.abs(out - ref))))

    print("KERNEL_OK")
</pallas_src>

<mosaic_0001>
module attributes {stable_mosaic.version = 11 : i64} {
  func.func @_linear_add_relu_kernel(%arg0: i32, %arg1: memref<1x2000xf32, #tpu.memory_space<vmem>>, %arg2: memref<1x2000x1024xbf16, #tpu.memory_space<vmem>>, %arg3: memref<1x1024xf32, #tpu.memory_space<vmem>>, %arg4: memref<1x1024xf32, #tpu.memory_space<vmem>>, %arg5: memref<1x1024xf32, #tpu.memory_space<vmem>>) attributes {dimension_semantics = [#tpu.dimension_semantics<parallel>], iteration_bounds = array<i64: 2>, scalar_prefetch = 0 : i64, scratch_operands = 0 : i64, tpu.core_type = #tpu.core_type<tc>, window_params = [{pipeline_mode = #tpu.pipeline_mode<synchronous>, transform_indices = @transform_0, window_bounds = array<i64: 1, 2000>}, {transform_indices = @transform_1, window_bounds = array<i64: 1, 2000, 1024>}, {transform_indices = @transform_2, window_bounds = array<i64: 1, 1024>}, {transform_indices = @transform_3, window_bounds = array<i64: 1, 1024>}, {transform_indices = @transform_4, window_bounds = array<i64: 1, 1024>}]} {
    %c0 = arith.constant 0 : index
    %c0_0 = arith.constant 0 : index
    %0 = vector.load %arg1[%c0, %c0_0] : memref<1x2000xf32, #tpu.memory_space<vmem>>, vector<1x2000xf32>
    %1 = arith.truncf %0 : vector<1x2000xf32> to vector<1x2000xbf16>
    %c0_1 = arith.constant 0 : index
    %c0_2 = arith.constant 0 : index
    %c0_3 = arith.constant 0 : index
    %2 = vector.load %arg2[%c0_1, %c0_2, %c0_3] : memref<1x2000x1024xbf16, #tpu.memory_space<vmem>>, vector<1x2000x1024xbf16>
    %3 = vector.shape_cast %2 : vector<1x2000x1024xbf16> to vector<2000x1024xbf16>
    %cst = arith.constant dense<0.000000e+00> : vector<1x1024xf32>
    %4 = tpu.matmul %1, %3, %cst {dimension_numbers = #tpu.dot_dimension_numbers<[1], [0], [0], [1], [0, 0, 1, 1], [], []>} : vector<1x2000xbf16>, vector<2000x1024xbf16>, vector<1x1024xf32> -> vector<1x1024xf32>
    %c0_4 = arith.constant 0 : index
    %c0_5 = arith.constant 0 : index
    %5 = vector.load %arg3[%c0_4, %c0_5] : memref<1x1024xf32, #tpu.memory_space<vmem>>, vector<1x1024xf32>
    %6 = arith.addf %4, %5 : vector<1x1024xf32>
    %c0_6 = arith.constant 0 : index
    %c0_7 = arith.constant 0 : index
    %7 = vector.load %arg4[%c0_6, %c0_7] : memref<1x1024xf32, #tpu.memory_space<vmem>>, vector<1x1024xf32>
    %8 = arith.addf %6, %7 : vector<1x1024xf32>
    %cst_8 = arith.constant 0.000000e+00 : f32
    %9 = vector.broadcast %cst_8 : f32 to vector<1x1024xf32>
    %10 = arith.maximumf %8, %9 : vector<1x1024xf32>
    %c0_9 = arith.constant 0 : index
    %c0_10 = arith.constant 0 : index
    %11 = vector.load %arg5[%c0_9, %c0_10] : memref<1x1024xf32, #tpu.memory_space<vmem>>, vector<1x1024xf32>
    tpu.vector_store %arg5[%c0_9, %c0_10], %10 {strides = array<i32>} : memref<1x1024xf32, #tpu.memory_space<vmem>>, vector<1x1024xf32>,
    return
  }
  func.func @transform_0(%arg0: i32) -> (i32, i32) {
    %c0_i32 = arith.constant 0 : i32
    %c0_i32_0 = arith.constant 0 : i32
    %c0_i32_1 = arith.constant 0 : i32
    return %c0_i32, %c0_i32_0 : i32, i32
  }
  func.func @transform_1(%arg0: i32) -> (i32, i32, i32) {
    %c0_i32 = arith.constant 0 : i32
    %c0_i32_0 = arith.constant 0 : i32
    %c0_i32_1 = arith.constant 0 : i32
    return %arg0, %c0_i32, %c0_i32_0 : i32, i32, i32
  }
  func.func @transform_2(%arg0: i32) -> (i32, i32) {
    %c0_i32 = arith.constant 0 : i32
    %c0_i32_0 = arith.constant 0 : i32
    return %c0_i32, %arg0 : i32, i32
  }
  func.func @transform_3(%arg0: i32) -> (i32, i32) {
    %c0_i32 = arith.constant 0 : i32
    %c0_i32_0 = arith.constant 0 : i32
    return %c0_i32, %arg0 : i32, i32
  }
  func.func @transform_4(%arg0: i32) -> (i32, i32) {
    %c0_i32 = arith.constant 0 : i32
    %c0_i32_0 = arith.constant 0 : i32
    return %c0_i32, %arg0 : i32, i32
  }
}

</mosaic_0001>

<llo_original>
// kernel: linear_add_relu.1
$region0: #{linear_add_relu.1}
  #allocation0 [shape = 'u32[]', space=smem, size = 0x4, offset = 0x4, fixed_abs, tag = 'smem constant byte address 0x4 - core index']
  #allocation1 [shape = 'u32[144,128]{1,0:T(1,128)}', space=vmem, size = 0x12000, scoped, tag = 'internal scratch']
  %s0 = inlined_call_operand.hbm [shape: f32[1,2000], index: 0, kind: input, shape index: {}]
  %s1 = inlined_call_operand.hbm [shape: bf16[2,2000,1024], index: 1, kind: input, shape index: {}]
  %s2 = inlined_call_operand.hbm [shape: f32[1,2048], index: 2, kind: input, shape index: {}]
  %s3 = inlined_call_operand.hbm [shape: f32[1,2000], index: 3, kind: input, shape index: {}]
  %s4 = inlined_call_operand.hbm [shape: f32[1,2000], index: 4, kind: output, shape index: {}]
  %s5 = sld [smem:[#allocation0]]
  $region65: #{linear_add_relu.1} parent=0
    _
  %s7 = ssub.s32 1, %s5
  %s8 = scalar_select 0, %s7, %s5
  $region1: #{linear_add_relu.1} parent=0
    #allocation2 [shape = 'u8[8192]{0}', space=vmem, size = 0x2000, scoped, tag = 'input window, operand 0, single buffered']
    #allocation3 [shape = 's32[2]{0}', space=sflag, size = 0x8, scoped, tag = 'scoped memory for linear_add_relu.1']
    #allocation4 [shape = 's32[2]{0}', space=sflag, size = 0x8, scoped, tag = 'scoped memory for linear_add_relu.1']
    #allocation5 [shape = 'u8[8192000]{0}', space=vmem, size = 0x7d0000, scoped, tag = 'input window, operand 1']
    #allocation6 [shape = 's32[2]{0}', space=sflag, size = 0x8, scoped, tag = 'scoped memory for linear_add_relu.1']
    #allocation7 [shape = 'u8[8192]{0}', space=vmem, size = 0x2000, scoped, tag = 'input window, operand 2']
    #allocation8 [shape = 'u8[8192]{0}', space=vmem, size = 0x2000, scoped, tag = 'input window, operand 3']
    #allocation9 [shape = 's32[2]{0}', space=sflag, size = 0x8, scoped, tag = 'scoped memory for linear_add_relu.1']
    #allocation10 [shape = 'u8[8192]{0}', space=vmem, size = 0x2000, scoped, tag = 'output window, operand 0']
    %9 = vsyncpa [#allocation3], 0
    %10 = vsyncpa [#allocation6], 0
    %s11 = scalar_lea.sflag [#allocation6], 1
    %12 = vsyncpa %s11, 0
    %13 = vsyncpa [#allocation9], 0
    %s14 = scalar_lea.sflag [#allocation9], 1
    %15 = vsyncpa %s14, 0
    %16 = vsyncpa [#allocation4], 0
    %s17 = scalar_lea.sflag [#allocation4], 1
    %18 = vsyncpa %s17, 0
    loop: start=0, step=1, limit=4
    $region2: #{linear_add_relu.1} parent=1 // loop_pre_header
      _
    $region3: #{linear_add_relu.1} parent=1 // loop_header
      %s20 = sphi 0, %s24
      %p21 = scmp.ge.s32.totalorder %s20, 4
      %s28 = sphi 0, %s28
      %s30 = sphi 0, %s28
      %s31 = sphi 0, %s30
      %s45 = sphi 0, %s31
      %s51 = sphi 0, %s53
      %s54 = sphi 0, %s51
      %s55 = sphi 0, %s54
      %s71 = sphi 0, %s55
      %s77 = sphi 0, %s79
      %s80 = sphi 0, %s77
      %s81 = sphi 0, %s80
      %s97 = sphi 0, %s81
      %s103 = sphi 0, %s105
      %s106 = sphi 0, %s103
      %s107 = sphi 0, %s106
      %s123 = sphi 0, %s107
      %s129 = sphi 0, %s131
      %s132 = sphi 0, %s129
      %s133 = sphi 0, %s132
      %s149 = sphi 0, %s133
    $region4: #{linear_add_relu.1} parent=1 // loop_header_branch
      %23 = sbr.rel (%p21) target = $region8
    $region5: #{linear_add_relu.1} parent=1 // loop_body
      %s25 = ssub.s32 %s20, 1
      %s26 = ssub.s32 %s20, 2
      %s27 = sadd.s32 %s20, 1
      %s29 = sadd.s32 %s28, 1
      %p32 = scmp.eq.s32.totalorder %s20, 1
      %p33 = scmp.ne.s32.totalorder %s28, %s30
      %p34 = scmp.eq.s32.totalorder %s20, 0
      %p35 = por %p33, %p34
      %p36 = scmp.ne.s32.totalorder %s28, %s30
      %p37 = scmp.eq.s32.totalorder %s25, 1
      %p38 = por %p36, %p37
      %p39 = scmp.ne.s32.totalorder %s30, %s31
      %p40 = scmp.eq.s32.totalorder %s25, 0
      %p41 = por %p39, %p40
      %p42 = scmp.ne.s32.totalorder %s30, %s31
      %p43 = scmp.eq.s32.totalorder %s26, 1
      %p44 = por %p42, %p43
      %p46 = scmp.ne.s32.totalorder %s31, %s45
      %p47 = scmp.eq.s32.totalorder %s26, 0
      %p48 = por %p46, %p47
      %s49 = ssub.s32 %s20, %s27
      %p50 = scmp.eq.s32.totalorder %s49, 0
      %s52 = sadd.s32 %s51, 1
      %s53 = scalar_select %p50, %s51, %s52
      %p56 = pneg %p50
      %p57 = scmp.eq.s32.totalorder %s20, 1
      %p58 = por %p56, %p57
      %p59 = scmp.ne.s32.totalorder %s51, %s54
      %p60 = scmp.eq.s32.totalorder %s20, 0
      %p61 = por %p59, %p60
      %p62 = scmp.ne.s32.totalorder %s51, %s54
      %p63 = scmp.eq.s32.totalorder %s25, 1
      %p64 = por %p62, %p63
      %p65 = scmp.ne.s32.totalorder %s54, %s55
      %p66 = scmp.eq.s32.totalorder %s25, 0
      %p67 = por %p65, %p66
      %p68 = scmp.ne.s32.totalorder %s54, %s55
      %p69 = scmp.eq.s32.totalorder %s26, 1
      %p70 = por %p68, %p69
      %p72 = scmp.ne.s32.totalorder %s55, %s71
      %p73 = scmp.eq.s32.totalorder %s26, 0
      %p74 = por %p72, %p73
      %s75 = ssub.s32 %s20, %s27
      %p76 = scmp.eq.s32.totalorder %s75, 0
      %s78 = sadd.s32 %s77, 1
      %s79 = scalar_select %p76, %s77, %s78
      %p82 = pneg %p76
      %p83 = scmp.eq.s32.totalorder %s20, 1
      %p84 = por %p82, %p83
      %p85 = scmp.ne.s32.totalorder %s77, %s80
      %p86 = scmp.eq.s32.totalorder %s20, 0
      %p87 = por %p85, %p86
      %p88 = scmp.ne.s32.totalorder %s77, %s80
      %p89 = scmp.eq.s32.totalorder %s25, 1
      %p90 = por %p88, %p89
      %p91 = scmp.ne.s32.totalorder %s80, %s81
      %p92 = scmp.eq.s32.totalorder %s25, 0
      %p93 = por %p91, %p92
      %p94 = scmp.ne.s32.totalorder %s80, %s81
      %p95 = scmp.eq.s32.totalorder %s26, 1
      %p96 = por %p94, %p95
      %p98 = scmp.ne.s32.totalorder %s81, %s97
      %p99 = scmp.eq.s32.totalorder %s26, 0
      %p100 = por %p98, %p99
      %s101 = ssub.s32 %s20, %s27
      %p102 = scmp.eq.s32.totalorder %s101, 0
      %s104 = sadd.s32 %s103, 1
      %s105 = scalar_select %p102, %s103, %s104
      %p108 = pneg %p102
      %p109 = scmp.eq.s32.totalorder %s20, 1
      %p110 = por %p108, %p109
      %p111 = scmp.ne.s32.totalorder %s103, %s106
      %p112 = scmp.eq.s32.totalorder %s20, 0
      %p113 = por %p111, %p112
      %p114 = scmp.ne.s32.totalorder %s103, %s106
      %p115 = scmp.eq.s32.totalorder %s25, 1
      %p116 = por %p114, %p115
      %p117 = scmp.ne.s32.totalorder %s106, %s107
      %p118 = scmp.eq.s32.totalorder %s25, 0
      %p119 = por %p117, %p118
      %p120 = scmp.ne.s32.totalorder %s106, %s107
      %p121 = scmp.eq.s32.totalorder %s26, 1
      %p122 = por %p120, %p121
      %p124 = scmp.ne.s32.totalorder %s107, %s123
      %p125 = scmp.eq.s32.totalorder %s26, 0
      %p126 = por %p124, %p125
      %s127 = ssub.s32 %s20, %s27
      %p128 = scmp.eq.s32.totalorder %s127, 0
      %s130 = sadd.s32 %s129, 1
      %s131 = scalar_select %p128, %s129, %s130
      %p134 = pneg %p128
      %p135 = scmp.eq.s32.totalorder %s20, 1
      %p136 = por %p134, %p135
      %p137 = scmp.ne.s32.totalorder %s129, %s132
      %p138 = scmp.eq.s32.totalorder %s20, 0
      %p139 = por %p137, %p138
      %p140 = scmp.ne.s32.totalorder %s129, %s132
      %p141 = scmp.eq.s32.totalorder %s25, 1
      %p142 = por %p140, %p141
      %p143 = scmp.ne.s32.totalorder %s132, %s133
      %p144 = scmp.eq.s32.totalorder %s25, 0
      %p145 = por %p143, %p144
      %p146 = scmp.ne.s32.totalorder %s132, %s133
      %p147 = scmp.eq.s32.totalorder %s26, 1
      %p148 = por %p146, %p147
      %p150 = scmp.ne.s32.totalorder %s133, %s149
      %p151 = scmp.eq.s32.totalorder %s26, 0
      %p152 = por %p150, %p151
      %p153 = scmp.le.s32.totalorder 1, %s20
      %p154 = scmp.lt.s32.totalorder %s20, 3
      %p155 = pnand %p153, %p154
      %p156 = pneg %p155
      // Predicated region
      $region9: #{linear_add_relu.1} parent=5 // pred_check
        _
      $region10: #{linear_add_relu.1} parent=5 // pred_check_branch
        %158 = sbr.rel (%p155) target = $region12
      $region11: #{linear_add_relu.1} parent=5 // pred_region
        %s159 = ssub.s32 %s20, 1
        // Predicated region
        $region13: #{linear_add_relu.1} parent=11 // pred_check
          %p160 = pneg %p41
        $region14: #{linear_add_relu.1} parent=11 // pred_check_branch
          %162 = sbr.rel (%p160) target = $region16
        $region15: #{linear_add_relu.1} parent=11 // pred_region
          %s164 = ssub.s32 256, 256
          %165 = vsyncadd [#allocation3], %s164
          %s167 = sshll.u32 [#allocation2], 4
          %s168 = int_to_ptr.vmem [resolvable:$true] %s167
          %170 = dma.hbm_to_vmem [thread:$0]  %s0, 256, %s168, [#allocation3]
        $region16: #{linear_add_relu.1} parent=11 // pred_fallthru
          _
      $region12: #{linear_add_relu.1} parent=5 // pred_fallthru
        _
      %p171 = scmp.lt.s32.totalorder %s20, 2
      // Predicated region
      $region17: #{linear_add_relu.1} parent=5 // pred_check
        %p172 = pneg %p171
      $region18: #{linear_add_relu.1} parent=5 // pred_check_branch
        %174 = sbr.rel (%p172) target = $region20
      $region19: #{linear_add_relu.1} parent=5 // pred_region
        // Predicated region
        $region21: #{linear_add_relu.1} parent=19 // pred_check
          %p175 = pneg %p61
        $region22: #{linear_add_relu.1} parent=19 // pred_check_branch
          %177 = sbr.rel (%p175) target = $region24
        $region23: #{linear_add_relu.1} parent=19 // pred_region
          %s178 = sand.u32 %s20, 1
          %s179 = scalar_lea.sflag [#allocation6], %s178
          %s180 = sand.u32 %s51, 1
          %s181 = smul.addr %s180, 8000
          %s182 = scalar_lea.vmem [#allocation5], %s181
          %s184 = ssub.s32 128000, 128000
          %185 = vsyncadd %s179, %s184
          %s186 = smul.addr %s20, 2000
          %s187 = smul.addr %s186, 64
          %s188 = scalar_lea.hbm %s1, %s187
          %s189 = sshll.u32 %s182, 4
          %s190 = int_to_ptr.vmem [resolvable:$true] %s189
          %195 = dma.hbm_to_vmem [thread:$0]  %s188, 128000, %s190, %s179, 512, 512, 32
        $region24: #{linear_add_relu.1} parent=19 // pred_fallthru
          _
        // Predicated region
        $region25: #{linear_add_relu.1} parent=19 // pred_check
          %p196 = pneg %p87
        $region26: #{linear_add_relu.1} parent=19 // pred_check_branch
          %198 = sbr.rel (%p196) target = $region28
        $region27: #{linear_add_relu.1} parent=19 // pred_region
          %s199 = sand.u32 %s20, 1
          %s200 = scalar_lea.sflag [#allocation6], %s199
          %s201 = sand.u32 %s77, 1
          %s202 = smul.addr %s201, 8
          %s203 = scalar_lea.vmem [#allocation7], %s202
          %s204 = smul.u32 8, %s20
          %s206 = ssub.s32 128, 128
          %207 = vsyncadd %s200, %s206
          %s208 = smul.addr %s204, 16
          %s209 = scalar_lea.hbm %s2, %s208
          %s211 = sshll.u32 %s203, 4
          %s212 = int_to_ptr.vmem [resolvable:$true] %s211
          %214 = dma.hbm_to_vmem [thread:$0]  %s209, 128, %s212, %s200
        $region28: #{linear_add_relu.1} parent=19 // pred_fallthru
          _
        // Predicated region
        $region29: #{linear_add_relu.1} parent=19 // pred_check
          %p215 = pneg %p113
        $region30: #{linear_add_relu.1} parent=19 // pred_check_branch
          %217 = sbr.rel (%p215) target = $region32
        $region31: #{linear_add_relu.1} parent=19 // pred_region
          %s218 = sand.u32 %s103, 1
          %s219 = scalar_lea.sflag [#allocation9], %s218
          %s220 = sand.u32 %s103, 1
          %s221 = smul.addr %s220, 8
          %s222 = scalar_lea.vmem [#allocation8], %s221
          %s223 = smul.u32 8, %s20
          %s225 = ssub.s32 128, 128
          %226 = vsyncadd %s219, %s225
          %s227 = smul.addr %s223, 16
          %s228 = scalar_lea.hbm %s3, %s227
          %s230 = sshll.u32 %s222, 4
          %s231 = int_to_ptr.vmem [resolvable:$true] %s230
          %233 = dma.hbm_to_vmem [thread:$0]  %s228, 128, %s231, %s219
        $region32: #{linear_add_relu.1} parent=19 // pred_fallthru
          _
      $region20: #{linear_add_relu.1} parent=5 // pred_fallthru
        _
      %p234 = scmp.le.s32.totalorder 1, %s20
      %p235 = scmp.lt.s32.totalorder %s20, 3
      %p236 = pnand %p234, %p235
      %p237 = pneg %p236
      // Predicated region
      $region33: #{linear_add_relu.1} parent=5 // pred_check
        _
      $region34: #{linear_add_relu.1} parent=5 // pred_check_branch
        %239 = sbr.rel (%p236) target = $region36
      $region35: #{linear_add_relu.1} parent=5 // pred_region
        %s240 = ssub.s32 %s20, 1
        // Predicated region
        $region37: #{linear_add_relu.1} parent=35 // pred_check
          %p241 = pneg %p41
        $region38: #{linear_add_relu.1} parent=35 // pred_check_branch
          %243 = sbr.rel (%p241) target = $region40
        $region39: #{linear_add_relu.1} parent=35 // pred_region
          %244 = dma.done [#allocation3], 256
        $region40: #{linear_add_relu.1} parent=35 // pred_fallthru
          _
        %s245 = sand.u32 %s25, 1
        %s246 = scalar_lea.sflag [#allocation6], %s245
        %s247 = sand.u32 %s54, 1
        %s248 = smul.addr %s247, 8000
        %s249 = scalar_lea.vmem [#allocation5], %s248
        // Predicated region
        $region41: #{linear_add_relu.1} parent=35 // pred_check
          %p250 = pneg %p67
        $region42: #{linear_add_relu.1} parent=35 // pred_check_branch
          %252 = sbr.rel (%p250) target = $region44
        $region43: #{linear_add_relu.1} parent=35 // pred_region
          %253 = dma.done %s246, 128000
        $region44: #{linear_add_relu.1} parent=35 // pred_fallthru
          _
        %s254 = sand.u32 %s25, 1
        %s255 = scalar_lea.sflag [#allocation6], %s254
        %s256 = sand.u32 %s80, 1
        %s257 = smul.addr %s256, 8
        %s258 = scalar_lea.vmem [#allocation7], %s257
        // Predicated region
        $region45: #{linear_add_relu.1} parent=35 // pred_check
          %p259 = pneg %p93
        $region46: #{linear_add_relu.1} parent=35 // pred_check_branch
          %261 = sbr.rel (%p259) target = $region48
        $region47: #{linear_add_relu.1} parent=35 // pred_region
          %262 = dma.done %s255, 128
        $region48: #{linear_add_relu.1} parent=35 // pred_fallthru
          _
        %s263 = sand.u32 %s106, 1
        %s264 = scalar_lea.sflag [#allocation9], %s263
        %s265 = sand.u32 %s106, 1
        %s266 = smul.addr %s265, 8
        %s267 = scalar_lea.vmem [#allocation8], %s266
        // Predicated region
        $region49: #{linear_add_relu.1} parent=35 // pred_check
          %p268 = pneg %p119
        $region50: #{linear_add_relu.1} parent=35 // pred_check_branch
          %270 = sbr.rel (%p268) target = $region52
        $region51: #{linear_add_relu.1} parent=35 // pred_region
          %271 = dma.done %s264, 128
        $region52: #{linear_add_relu.1} parent=35 // pred_fallthru
          _
        %p272 = pneg %p41
        %p273 = pneg %p38
        %s274 = sand.u32 %s25, 1
        %s275 = scalar_lea.sflag [#allocation6], %s274
        %s276 = sand.u32 %s54, 1
        %s277 = smul.addr %s276, 8000
        %s278 = scalar_lea.vmem [#allocation5], %s277
        %p279 = pneg %p67
        %p280 = pneg %p64
        %s281 = sand.u32 %s25, 1
        %s282 = scalar_lea.sflag [#allocation6], %s281
        %s283 = sand.u32 %s80, 1
        %s284 = smul.addr %s283, 8
        %s285 = scalar_lea.vmem [#allocation7], %s284
        %p286 = pneg %p93
        %p287 = pneg %p90
        %s288 = sand.u32 %s106, 1
        %s289 = scalar_lea.sflag [#allocation9], %s288
        %s290 = sand.u32 %s106, 1
        %s291 = smul.addr %s290, 8
        %s292 = scalar_lea.vmem [#allocation8], %s291
        %p293 = pneg %p119
        %p294 = pneg %p116
        %p295 = pneg %p145
        %p296 = pneg %p142
        %s297 = sand.u32 %s132, 1
        %s298 = scalar_lea.sflag [#allocation4], %s297
        %s299 = sand.u32 %s132, 1
        %s300 = smul.addr %s299, 8
        %s301 = scalar_lea.vmem [#allocation10], %s300
        %s302 = smul.u32 8, %s25
        %s303 = smul.u32 8, %s25
        %s304 = smul.u32 8, %s25
        %v306 = vld [vmem:[#allocation2] sm:$0xff]
        %v307 = vld [vmem:[#allocation2 + $0x8] sm:$0xff]
        %v310 = vlaneseq
        %v311 = vshrl.u32 %v310, 7
        %v312 = vsub.s32 0, %v311
        %v313 = vrot.slane %v306, %v312
        %v314 = vlaneseq
        %v315 = vshrl.u32 %v314, 7
        %v316 = vsub.s32 1, %v315
        %v317 = vrot.slane %v306, %v316
        %v318 = vlaneseq
        %v319 = vshrl.u32 %v318, 7
        %v320 = vsub.s32 2, %v319
        %v321 = vrot.slane %v306, %v320
        %v322 = vlaneseq
        %v323 = vshrl.u32 %v322, 7
        %v324 = vsub.s32 3, %v323
        %v325 = vrot.slane %v306, %v324
        %v326 = vlaneseq
        %v327 = vshrl.u32 %v326, 7
        %v328 = vsub.s32 4, %v327
        %v329 = vrot.slane %v306, %v328
        %v330 = vlaneseq
        %v331 = vshrl.u32 %v330, 7
        %v332 = vsub.s32 5, %v331
        %v333 = vrot.slane %v306, %v332
        %v334 = vlaneseq
        %v335 = vshrl.u32 %v334, 7
        %v336 = vsub.s32 6, %v335
        %v337 = vrot.slane %v306, %v336
        %v338 = vlaneseq
        %v339 = vshrl.u32 %v338, 7
        %v340 = vsub.s32 7, %v339
        %v341 = vrot.slane %v306, %v340
        %v342 = vlaneseq
        %v343 = vshrl.u32 %v342, 7
        %v344 = vsub.s32 0, %v343
        %v345 = vrot.slane %v307, %v344
        %v346 = vlaneseq
        %v347 = vshrl.u32 %v346, 7
        %v348 = vsub.s32 1, %v347
        %v349 = vrot.slane %v307, %v348
        %v350 = vlaneseq
        %v351 = vshrl.u32 %v350, 7
        %v352 = vsub.s32 2, %v351
        %v353 = vrot.slane %v307, %v352
        %v354 = vlaneseq
        %v355 = vshrl.u32 %v354, 7
        %v356 = vsub.s32 3, %v355
        %v357 = vrot.slane %v307, %v356
        %v358 = vlaneseq
        %v359 = vshrl.u32 %v358, 7
        %v360 = vsub.s32 4, %v359
        %v361 = vrot.slane %v307, %v360
        %v362 = vlaneseq
        %v363 = vshrl.u32 %v362, 7
        %v364 = vsub.s32 5, %v363
        %v365 = vrot.slane %v307, %v364
        %v366 = vlaneseq
        %v367 = vshrl.u32 %v366, 7
        %v368 = vsub.s32 6, %v367
        %v369 = vrot.slane %v307, %v368
        %v370 = vlaneseq
        %v371 = vshrl.u32 %v370, 7
        %v372 = vsub.s32 7, %v371
        %v373 = vrot.slane %v307, %v372
        %v390 = vpack.c.bf16 %v313, %v313
        %v391 = vpack.c.bf16 %v317, %v317
        %v392 = vpack.c.bf16 %v321, %v321
        %v393 = vpack.c.bf16 %v325, %v325
        %v394 = vpack.c.bf16 %v329, %v329
        %v395 = vpack.c.bf16 %v333, %v333
        %v396 = vpack.c.bf16 %v337, %v337
        %v397 = vpack.c.bf16 %v341, %v341
        %v398 = vpack.c.bf16 %v345, %v345
        %v399 = vpack.c.bf16 %v349, %v349
        %v400 = vpack.c.bf16 %v353, %v353
        %v401 = vpack.c.bf16 %v357, %v357
        %v402 = vpack.c.bf16 %v361, %v361
        %v403 = vpack.c.bf16 %v365, %v365
        %v404 = vpack.c.bf16 %v369, %v369
        %v405 = vpack.c.bf16 %v373, %v373
        %v406 = vld [vmem:[%s249] sm:$0xff]
        %v407 = vld [vmem:[%s249 + $0x8] sm:$0xff]
        %v408 = vld [vmem:[%s249 + $0x10] sm:$0xff]
        %v409 = vld [vmem:[%s249 + $0x18] sm:$0xff]
        %v410 = vld [vmem:[%s249 + $0x20] sm:$0xff]
        %v411 = vld [vmem:[%s249 + $0x28] sm:$0xff]
        %v412 = vld [vmem:[%s249 + $0x30] sm:$0xff]
        %v413 = vld [vmem:[%s249 + $0x38] sm:$0xff]
        %v414 = vld [vmem:[%s249 + $0x40] sm:$0xff]
        %v415 = vld [vmem:[%s249 + $0x48] sm:$0xff]
        %v416 = vld [vmem:[%s249 + $0x50] sm:$0xff]
        %v417 = vld [vmem:[%s249 + $0x58] sm:$0xff]
        %v418 = vld [vmem:[%s249 + $0x60] sm:$0xff]
        %v419 = vld [vmem:[%s249 + $0x68] sm:$0xff]
        %v420 = vld [vmem:[%s249 + $0x70] sm:$0xff]
        %v421 = vld [vmem:[%s249 + $0x78] sm:$0xff]
        %v422 = vld [vmem:[%s249 + $0x80] sm:$0xff]
        %v423 = vld [vmem:[%s249 + $0x88] sm:$0xff]
        %v424 = vld [vmem:[%s249 + $0x90] sm:$0xff]
        %v425 = vld [vmem:[%s249 + $0x98] sm:$0xff]
        %v426 = vld [vmem:[%s249 + $0xa0] sm:$0xff]
        %v427 = vld [vmem:[%s249 + $0xa8] sm:$0xff]
        %v428 = vld [vmem:[%s249 + $0xb0] sm:$0xff]
        %v429 = vld [vmem:[%s249 + $0xb8] sm:$0xff]
        %v430 = vld [vmem:[%s249 + $0xc0] sm:$0xff]
        %v431 = vld [vmem:[%s249 + $0xc8] sm:$0xff]
        %v432 = vld [vmem:[%s249 + $0xd0] sm:$0xff]
        %v433 = vld [vmem:[%s249 + $0xd8] sm:$0xff]
        %v434 = vld [vmem:[%s249 + $0xe0] sm:$0xff]
        %v435 = vld [vmem:[%s249 + $0xe8] sm:$0xff]
        %v436 = vld [vmem:[%s249 + $0xf0] sm:$0xff]
        %v437 = vld [vmem:[%s249 + $0xf8] sm:$0xff]
        %v438 = vld [vmem:[%s249 + $0x100] sm:$0xff]
        %v439 = vld [vmem:[%s249 + $0x108] sm:$0xff]
        %v440 = vld [vmem:[%s249 + $0x110] sm:$0xff]
        %v441 = vld [vmem:[%s249 + $0x118] sm:$0xff]
        %v442 = vld [vmem:[%s249 + $0x120] sm:$0xff]
        %v443 = vld [vmem:[%s249 + $0x128] sm:$0xff]
        %v444 = vld [vmem:[%s249 + $0x130] sm:$0xff]
        %v445 = vld [vmem:[%s249 + $0x138] sm:$0xff]
        %v446 = vld [vmem:[%s249 + $0x140] sm:$0xff]
        %v447 = vld [vmem:[%s249 + $0x148] sm:$0xff]
        %v448 = vld [vmem:[%s249 + $0x150] sm:$0xff]
        %v449 = vld [vmem:[%s249 + $0x158] sm:$0xff]
        %v450 = vld [vmem:[%s249 + $0x160] sm:$0xff]
        %v451 = vld [vmem:[%s249 + $0x168] sm:$0xff]
        %v452 = vld [vmem:[%s249 + $0x170] sm:$0xff]
        %v453 = vld [vmem:[%s249 + $0x178] sm:$0xff]
        %v454 = vld [vmem:[%s249 + $0x180] sm:$0xff]
        %v455 = vld [vmem:[%s249 + $0x188] sm:$0xff]
        %v456 = vld [vmem:[%s249 + $0x190] sm:$0xff]
        %v457 = vld [vmem:[%s249 + $0x198] sm:$0xff]
        %v458 = vld [vmem:[%s249 + $0x1a0] sm:$0xff]
        %v459 = vld [vmem:[%s249 + $0x1a8] sm:$0xff]
        %v460 = vld [vmem:[%s249 + $0x1b0] sm:$0xff]
        %v461 = vld [vmem:[%s249 + $0x1b8] sm:$0xff]
        %v462 = vld [vmem:[%s249 + $0x1c0] sm:$0xff]
        %v463 = vld [vmem:[%s249 + $0x1c8] sm:$0xff]
        %v464 = vld [vmem:[%s249 + $0x1d0] sm:$0xff]
        %v465 = vld [vmem:[%s249 + $0x1d8] sm:$0xff]
        %v466 = vld [vmem:[%s249 + $0x1e0] sm:$0xff]
        %v467 = vld [vmem:[%s249 + $0x1e8] sm:$0xff]
        %v468 = vld [vmem:[%s249 + $0x1f0] sm:$0xff]
        %v469 = vld [vmem:[%s249 + $0x1f8] sm:$0xff]
        %v470 = vld [vmem:[%s249 + $0x200] sm:$0xff]
        %v471 = vld [vmem:[%s249 + $0x208] sm:$0xff]
        %v472 = vld [vmem:[%s249 + $0x210] sm:$0xff]
        %v473 = vld [vmem:[%s249 + $0x218] sm:$0xff]
        %v474 = vld [vmem:[%s249 + $0x220] sm:$0xff]
        %v475 = vld [vmem:[%s249 + $0x228] sm:$0xff]
        %v476 = vld [vmem:[%s249 + $0x230] sm:$0xff]
        %v477 = vld [vmem:[%s249 + $0x238] sm:$0xff]
        %v478 = vld [vmem:[%s249 + $0x240] sm:$0xff]
        %v479 = vld [vmem:[%s249 + $0x248] sm:$0xff]
        %v480 = vld [vmem:[%s249 + $0x250] sm:$0xff]
        %v481 = vld [vmem:[%s249 + $0x258] sm:$0xff]
        %v482 = vld [vmem:[%s249 + $0x260] sm:$0xff]
        %v483 = vld [vmem:[%s249 + $0x268] sm:$0xff]
        %v484 = vld [vmem:[%s249 + $0x270] sm:$0xff]
        %v485 = vld [vmem:[%s249 + $0x278] sm:$0xff]
        %v486 = vld [vmem:[%s249 + $0x280] sm:$0xff]
        %v487 = vld [vmem:[%s249 + $0x288] sm:$0xff]
        %v488 = vld [vmem:[%s249 + $0x290] sm:$0xff]
        %v489 = vld [vmem:[%s249 + $0x298] sm:$0xff]
        %v490 = vld [vmem:[%s249 + $0x2a0] sm:$0xff]
        %v491 = vld [vmem:[%s249 + $0x2a8] sm:$0xff]
        %v492 = vld [vmem:[%s249 + $0x2b0] sm:$0xff]
        %v493 = vld [vmem:[%s249 + $0x2b8] sm:$0xff]
        %v494 = vld [vmem:[%s249 + $0x2c0] sm:$0xff]
        %v495 = vld [vmem:[%s249 + $0x2c8] sm:$0xff]
        %v496 = vld [vmem:[%s249 + $0x2d0] sm:$0xff]
        %v497 = vld [vmem:[%s249 + $0x2d8] sm:$0xff]
        %v498 = vld [vmem:[%s249 + $0x2e0] sm:$0xff]
        %v499 = vld [vmem:[%s249 + $0x2e8] sm:$0xff]
        %v500 = vld [vmem:[%s249 + $0x2f0] sm:$0xff]
        %v501 = vld [vmem:[%s249 + $0x2f8] sm:$0xff]
        %v502 = vld [vmem:[%s249 + $0x300] sm:$0xff]
        %v503 = vld [vmem:[%s249 + $0x308] sm:$0xff]
        %v504 = vld [vmem:[%s249 + $0x310] sm:$0xff]
        %v505 = vld [vmem:[%s249 + $0x318] sm:$0xff]
        %v506 = vld [vmem:[%s249 + $0x320] sm:$0xff]
        %v507 = vld [vmem:[%s249 + $0x328] sm:$0xff]
        %v508 = vld [vmem:[%s249 + $0x330] sm:$0xff]
        %v509 = vld [vmem:[%s249 + $0x338] sm:$0xff]
        %v510 = vld [vmem:[%s249 + $0x340] sm:$0xff]
        %v511 = vld [vmem:[%s249 + $0x348] sm:$0xff]
        %v512 = vld [vmem:[%s249 + $0x350] sm:$0xff]
        %v513 = vld [vmem:[%s249 + $0x358] sm:$0xff]
        %v514 = vld [vmem:[%s249 + $0x360] sm:$0xff]
        %v515 = vld [vmem:[%s249 + $0x368] sm:$0xff]
        %v516 = vld [vmem:[%s249 + $0x370] sm:$0xff]
        %v517 = vld [vmem:[%s249 + $0x378] sm:$0xff]
        %v518 = vld [vmem:[%s249 + $0x380] sm:$0xff]
        %v519 = vld [vmem:[%s249 + $0x388] sm:$0xff]
        %v520 = vld [vmem:[%s249 + $0x390] sm:$0xff]
        %v521 = vld [vmem:[%s249 + $0x398] sm:$0xff]
        %v522 = vld [vmem:[%s249 + $0x3a0] sm:$0xff]
        %v523 = vld [vmem:[%s249 + $0x3a8] sm:$0xff]
        %v524 = vld [vmem:[%s249 + $0x3b0] sm:$0xff]
        %v525 = vld [vmem:[%s249 + $0x3b8] sm:$0xff]
        %v526 = vld [vmem:[%s249 + $0x3c0] sm:$0xff]
        %v527 = vld [vmem:[%s249 + $0x3c8] sm:$0xff]
        %v528 = vld [vmem:[%s249 + $0x3d0] sm:$0xff]
        %v529 = vld [vmem:[%s249 + $0x3d8] sm:$0xff]
        %v530 = vld [vmem:[%s249 + $0x3e0] sm:$0xff]
        %v531 = vld [vmem:[%s249 + $0x3e8] sm:$0xff]
        %v532 = vld [vmem:[%s249 + $0x3f0] sm:$0xff]
        %v533 = vld [vmem:[%s249 + $0x3f8] sm:$0xff]
        %v534 = vld [vmem:[%s249 + $0x400] sm:$0xff]
        %v535 = vld [vmem:[%s249 + $0x408] sm:$0xff]
        %v536 = vld [vmem:[%s249 + $0x410] sm:$0xff]
        %v537 = vld [vmem:[%s249 + $0x418] sm:$0xff]
        %v538 = vld [vmem:[%s249 + $0x420] sm:$0xff]
        %v539 = vld [vmem:[%s249 + $0x428] sm:$0xff]
        %v540 = vld [vmem:[%s249 + $0x430] sm:$0xff]
        %v541 = vld [vmem:[%s249 + $0x438] sm:$0xff]
        %v542 = vld [vmem:[%s249 + $0x440] sm:$0xff]
        %v543 = vld [vmem:[%s249 + $0x448] sm:$0xff]
        %v544 = vld [vmem:[%s249 + $0x450] sm:$0xff]
        %v545 = vld [vmem:[%s249 + $0x458] sm:$0xff]
        %v546 = vld [vmem:[%s249 + $0x460] sm:$0xff]
        %v547 = vld [vmem:[%s249 + $0x468] sm:$0xff]
        %v548 = vld [vmem:[%s249 + $0x470] sm:$0xff]
        %v549 = vld [vmem:[%s249 + $0x478] sm:$0xff]
        %v550 = vld [vmem:[%s249 + $0x480] sm:$0xff]
        %v551 = vld [vmem:[%s249 + $0x488] sm:$0xff]
        %v552 = vld [vmem:[%s249 + $0x490] sm:$0xff]
        %v553 = vld [vmem:[%s249 + $0x498] sm:$0xff]
        %v554 = vld [vmem:[%s249 + $0x4a0] sm:$0xff]
        %v555 = vld [vmem:[%s249 + $0x4a8] sm:$0xff]
        %v556 = vld [vmem:[%s249 + $0x4b0] sm:$0xff]
        %v557 = vld [vmem:[%s249 + $0x4b8] sm:$0xff]
        %v558 = vld [vmem:[%s249 + $0x4c0] sm:$0xff]
        %v559 = vld [vmem:[%s249 + $0x4c8] sm:$0xff]
        %v560 = vld [vmem:[%s249 + $0x4d0] sm:$0xff]
        %v561 = vld [vmem:[%s249 + $0x4d8] sm:$0xff]
        %v562 = vld [vmem:[%s249 + $0x4e0] sm:$0xff]
        %v563 = vld [vmem:[%s249 + $0x4e8] sm:$0xff]
        %v564 = vld [vmem:[%s249 + $0x4f0] sm:$0xff]
        %v565 = vld [vmem:[%s249 + $0x4f8] sm:$0xff]
        %v566 = vld [vmem:[%s249 + $0x500] sm:$0xff]
        %v567 = vld [vmem:[%s249 + $0x508] sm:$0xff]
        %v568 = vld [vmem:[%s249 + $0x510] sm:$0xff]
        %v569 = vld [vmem:[%s249 + $0x518] sm:$0xff]
        %v570 = vld [vmem:[%s249 + $0x520] sm:$0xff]
        %v571 = vld [vmem:[%s249 + $0x528] sm:$0xff]
        %v572 = vld [vmem:[%s249 + $0x530] sm:$0xff]
        %v573 = vld [vmem:[%s249 + $0x538] sm:$0xff]
        %v574 = vld [vmem:[%s249 + $0x540] sm:$0xff]
        %v575 = vld [vmem:[%s249 + $0x548] sm:$0xff]
        %v576 = vld [vmem:[%s249 + $0x550] sm:$0xff]
        %v577 = vld [vmem:[%s249 + $0x558] sm:$0xff]
        %v578 = vld [vmem:[%s249 + $0x560] sm:$0xff]
        %v579 = vld [vmem:[%s249 + $0x568] sm:$0xff]
        %v580 = vld [vmem:[%s249 + $0x570] sm:$0xff]
        %v581 = vld [vmem:[%s249 + $0x578] sm:$0xff]
        %v582 = vld [vmem:[%s249 + $0x580] sm:$0xff]
        %v583 = vld [vmem:[%s249 + $0x588] sm:$0xff]
        %v584 = vld [vmem:[%s249 + $0x590] sm:$0xff]
        %v585 = vld [vmem:[%s249 + $0x598] sm:$0xff]
        %v586 = vld [vmem:[%s249 + $0x5a0] sm:$0xff]
        %v587 = vld [vmem:[%s249 + $0x5a8] sm:$0xff]
        %v588 = vld [vmem:[%s249 + $0x5b0] sm:$0xff]
        %v589 = vld [vmem:[%s249 + $0x5b8] sm:$0xff]
        %v590 = vld [vmem:[%s249 + $0x5c0] sm:$0xff]
        %v591 = vld [vmem:[%s249 + $0x5c8] sm:$0xff]
        %v592 = vld [vmem:[%s249 + $0x5d0] sm:$0xff]
        %v593 = vld [vmem:[%s249 + $0x5d8] sm:$0xff]
        %v594 = vld [vmem:[%s249 + $0x5e0] sm:$0xff]
        %v595 = vld [vmem:[%s249 + $0x5e8] sm:$0xff]
        %v596 = vld [vmem:[%s249 + $0x5f0] sm:$0xff]
        %v597 = vld [vmem:[%s249 + $0x5f8] sm:$0xff]
        %v598 = vld [vmem:[%s249 + $0x600] sm:$0xff]
        %v599 = vld [vmem:[%s249 + $0x608] sm:$0xff]
        %v600 = vld [vmem:[%s249 + $0x610] sm:$0xff]
        %v601 = vld [vmem:[%s249 + $0x618] sm:$0xff]
        %v602 = vld [vmem:[%s249 + $0x620] sm:$0xff]
        %v603 = vld [vmem:[%s249 + $0x628] sm:$0xff]
        %v604 = vld [vmem:[%s249 + $0x630] sm:$0xff]
        %v605 = vld [vmem:[%s249 + $0x638] sm:$0xff]
        %v606 = vld [vmem:[%s249 + $0x640] sm:$0xff]
        %v607 = vld [vmem:[%s249 + $0x648] sm:$0xff]
        %v608 = vld [vmem:[%s249 + $0x650] sm:$0xff]
        %v609 = vld [vmem:[%s249 + $0x658] sm:$0xff]
        %v610 = vld [vmem:[%s249 + $0x660] sm:$0xff]
        %v611 = vld [vmem:[%s249 + $0x668] sm:$0xff]
        %v612 = vld [vmem:[%s249 + $0x670] sm:$0xff]
        %v613 = vld [vmem:[%s249 + $0x678] sm:$0xff]
        %v614 = vld [vmem:[%s249 + $0x680] sm:$0xff]
        %v615 = vld [vmem:[%s249 + $0x688] sm:$0xff]
        %v616 = vld [vmem:[%s249 + $0x690] sm:$0xff]
        %v617 = vld [vmem:[%s249 + $0x698] sm:$0xff]
        %v618 = vld [vmem:[%s249 + $0x6a0] sm:$0xff]
        %v619 = vld [vmem:[%s249 + $0x6a8] sm:$0xff]
        %v620 = vld [vmem:[%s249 + $0x6b0] sm:$0xff]
        %v621 = vld [vmem:[%s249 + $0x6b8] sm:$0xff]
        %v622 = vld [vmem:[%s249 + $0x6c0] sm:$0xff]
        %v623 = vld [vmem:[%s249 + $0x6c8] sm:$0xff]
        %v624 = vld [vmem:[%s249 + $0x6d0] sm:$0xff]
        %v625 = vld [vmem:[%s249 + $0x6d8] sm:$0xff]
        %v626 = vld [vmem:[%s249 + $0x6e0] sm:$0xff]
        %v627 = vld [vmem:[%s249 + $0x6e8] sm:$0xff]
        %v628 = vld [vmem:[%s249 + $0x6f0] sm:$0xff]
        %v629 = vld [vmem:[%s249 + $0x6f8] sm:$0xff]
        %v630 = vld [vmem:[%s249 + $0x700] sm:$0xff]
        %v631 = vld [vmem:[%s249 + $0x708] sm:$0xff]
        %v632 = vld [vmem:[%s249 + $0x710] sm:$0xff]
        %v633 = vld [vmem:[%s249 + $0x718] sm:$0xff]
        %v634 = vld [vmem:[%s249 + $0x720] sm:$0xff]
        %v635 = vld [vmem:[%s249 + $0x728] sm:$0xff]
        %v636 = vld [vmem:[%s249 + $0x730] sm:$0xff]
        %v637 = vld [vmem:[%s249 + $0x738] sm:$0xff]
        %v638 = vld [vmem:[%s249 + $0x740] sm:$0xff]
        %v639 = vld [vmem:[%s249 + $0x748] sm:$0xff]
        %v640 = vld [vmem:[%s249 + $0x750] sm:$0xff]
        %v641 = vld [vmem:[%s249 + $0x758] sm:$0xff]
        %v642 = vld [vmem:[%s249 + $0x760] sm:$0xff]
        %v643 = vld [vmem:[%s249 + $0x768] sm:$0xff]
        %v644 = vld [vmem:[%s249 + $0x770] sm:$0xff]
        %v645 = vld [vmem:[%s249 + $0x778] sm:$0xff]
        %v646 = vld [vmem:[%s249 + $0x780] sm:$0xff]
        %v647 = vld [vmem:[%s249 + $0x788] sm:$0xff]
        %v648 = vld [vmem:[%s249 + $0x790] sm:$0xff]
        %v649 = vld [vmem:[%s249 + $0x798] sm:$0xff]
        %v650 = vld [vmem:[%s249 + $0x7a0] sm:$0xff]
        %v651 = vld [vmem:[%s249 + $0x7a8] sm:$0xff]
        %v652 = vld [vmem:[%s249 + $0x7b0] sm:$0xff]
        %v653 = vld [vmem:[%s249 + $0x7b8] sm:$0xff]
        %v654 = vld [vmem:[%s249 + $0x7c0] sm:$0xff]
        %v655 = vld [vmem:[%s249 + $0x7c8] sm:$0xff]
        %v656 = vld [vmem:[%s249 + $0x7d0] sm:$0xff]
        %v657 = vld [vmem:[%s249 + $0x7d8] sm:$0xff]
        %v658 = vld [vmem:[%s249 + $0x7e0] sm:$0xff]
        %v659 = vld [vmem:[%s249 + $0x7e8] sm:$0xff]
        %v660 = vld [vmem:[%s249 + $0x7f0] sm:$0xff]
        %v661 = vld [vmem:[%s249 + $0x7f8] sm:$0xff]
        %v662 = vld [vmem:[%s249 + $0x800] sm:$0xff]
        %v663 = vld [vmem:[%s249 + $0x808] sm:$0xff]
        %v664 = vld [vmem:[%s249 + $0x810] sm:$0xff]
        %v665 = vld [vmem:[%s249 + $0x818] sm:$0xff]
        %v666 = vld [vmem:[%s249 + $0x820] sm:$0xff]
        %v667 = vld [vmem:[%s249 + $0x828] sm:$0xff]
        %v668 = vld [vmem:[%s249 + $0x830] sm:$0xff]
        %v669 = vld [vmem:[%s249 + $0x838] sm:$0xff]
        %v670 = vld [vmem:[%s249 + $0x840] sm:$0xff]
        %v671 = vld [vmem:[%s249 + $0x848] sm:$0xff]
        %v672 = vld [vmem:[%s249 + $0x850] sm:$0xff]
        %v673 = vld [vmem:[%s249 + $0x858] sm:$0xff]
        %v674 = vld [vmem:[%s249 + $0x860] sm:$0xff]
        %v675 = vld [vmem:[%s249 + $0x868] sm:$0xff]
        %v676 = vld [vmem:[%s249 + $0x870] sm:$0xff]
        %v677 = vld [vmem:[%s249 + $0x878] sm:$0xff]
        %v678 = vld [vmem:[%s249 + $0x880] sm:$0xff]
        %v679 = vld [vmem:[%s249 + $0x888] sm:$0xff]
        %v680 = vld [vmem:[%s249 + $0x890] sm:$0xff]
        %v681 = vld [vmem:[%s249 + $0x898] sm:$0xff]
        %v682 = vld [vmem:[%s249 + $0x8a0] sm:$0xff]
        %v683 = vld [vmem:[%s249 + $0x8a8] sm:$0xff]
        %v684 = vld [vmem:[%s249 + $0x8b0] sm:$0xff]
        %v685 = vld [vmem:[%s249 + $0x8b8] sm:$0xff]
        %v686 = vld [vmem:[%s249 + $0x8c0] sm:$0xff]
        %v687 = vld [vmem:[%s249 + $0x8c8] sm:$0xff]
        %v688 = vld [vmem:[%s249 + $0x8d0] sm:$0xff]
        %v689 = vld [vmem:[%s249 + $0x8d8] sm:$0xff]
        %v690 = vld [vmem:[%s249 + $0x8e0] sm:$0xff]
        %v691 = vld [vmem:[%s249 + $0x8e8] sm:$0xff]
        %v692 = vld [vmem:[%s249 + $0x8f0] sm:$0xff]
        %v693 = vld [vmem:[%s249 + $0x8f8] sm:$0xff]
        %v694 = vld [vmem:[%s249 + $0x900] sm:$0xff]
        %v695 = vld [vmem:[%s249 + $0x908] sm:$0xff]
        %v696 = vld [vmem:[%s249 + $0x910] sm:$0xff]
        %v697 = vld [vmem:[%s249 + $0x918] sm:$0xff]
        %v698 = vld [vmem:[%s249 + $0x920] sm:$0xff]
        %v699 = vld [vmem:[%s249 + $0x928] sm:$0xff]
        %v700 = vld [vmem:[%s249 + $0x930] sm:$0xff]
        %v701 = vld [vmem:[%s249 + $0x938] sm:$0xff]
        %v702 = vld [vmem:[%s249 + $0x940] sm:$0xff]
        %v703 = vld [vmem:[%s249 + $0x948] sm:$0xff]
        %v704 = vld [vmem:[%s249 + $0x950] sm:$0xff]
        %v705 = vld [vmem:[%s249 + $0x958] sm:$0xff]
        %v706 = vld [vmem:[%s249 + $0x960] sm:$0xff]
        %v707 = vld [vmem:[%s249 + $0x968] sm:$0xff]
        %v708 = vld [vmem:[%s249 + $0x970] sm:$0xff]
        %v709 = vld [vmem:[%s249 + $0x978] sm:$0xff]
        %v710 = vld [vmem:[%s249 + $0x980] sm:$0xff]
        %v711 = vld [vmem:[%s249 + $0x988] sm:$0xff]
        %v712 = vld [vmem:[%s249 + $0x990] sm:$0xff]
        %v713 = vld [vmem:[%s249 + $0x998] sm:$0xff]
        %v714 = vld [vmem:[%s249 + $0x9a0] sm:$0xff]
        %v715 = vld [vmem:[%s249 + $0x9a8] sm:$0xff]
        %v716 = vld [vmem:[%s249 + $0x9b0] sm:$0xff]
        %v717 = vld [vmem:[%s249 + $0x9b8] sm:$0xff]
        %v718 = vld [vmem:[%s249 + $0x9c0] sm:$0xff]
        %v719 = vld [vmem:[%s249 + $0x9c8] sm:$0xff]
        %v720 = vld [vmem:[%s249 + $0x9d0] sm:$0xff]
        %v721 = vld [vmem:[%s249 + $0x9d8] sm:$0xff]
        %v722 = vld [vmem:[%s249 + $0x9e0] sm:$0xff]
        %v723 = vld [vmem:[%s249 + $0x9e8] sm:$0xff]
        %v724 = vld [vmem:[%s249 + $0x9f0] sm:$0xff]
        %v725 = vld [vmem:[%s249 + $0x9f8] sm:$0xff]
        %v726 = vld [vmem:[%s249 + $0xa00] sm:$0xff]
        %v727 = vld [vmem:[%s249 + $0xa08] sm:$0xff]
        %v728 = vld [vmem:[%s249 + $0xa10] sm:$0xff]
        %v729 = vld [vmem:[%s249 + $0xa18] sm:$0xff]
        %v730 = vld [vmem:[%s249 + $0xa20] sm:$0xff]
        %v731 = vld [vmem:[%s249 + $0xa28] sm:$0xff]
        %v732 = vld [vmem:[%s249 + $0xa30] sm:$0xff]
        %v733 = vld [vmem:[%s249 + $0xa38] sm:$0xff]
        %v734 = vld [vmem:[%s249 + $0xa40] sm:$0xff]
        %v735 = vld [vmem:[%s249 + $0xa48] sm:$0xff]
        %v736 = vld [vmem:[%s249 + $0xa50] sm:$0xff]
        %v737 = vld [vmem:[%s249 + $0xa58] sm:$0xff]
        %v738 = vld [vmem:[%s249 + $0xa60] sm:$0xff]
        %v739 = vld [vmem:[%s249 + $0xa68] sm:$0xff]
        %v740 = vld [vmem:[%s249 + $0xa70] sm:$0xff]
        %v741 = vld [vmem:[%s249 + $0xa78] sm:$0xff]
        %v742 = vld [vmem:[%s249 + $0xa80] sm:$0xff]
        %v743 = vld [vmem:[%s249 + $0xa88] sm:$0xff]
        %v744 = vld [vmem:[%s249 + $0xa90] sm:$0xff]
        %v745 = vld [vmem:[%s249 + $0xa98] sm:$0xff]
        %v746 = vld [vmem:[%s249 + $0xaa0] sm:$0xff]
        %v747 = vld [vmem:[%s249 + $0xaa8] sm:$0xff]
        %v748 = vld [vmem:[%s249 + $0xab0] sm:$0xff]
        %v749 = vld [vmem:[%s249 + $0xab8] sm:$0xff]
        %v750 = vld [vmem:[%s249 + $0xac0] sm:$0xff]
        %v751 = vld [vmem:[%s249 + $0xac8] sm:$0xff]
        %v752 = vld [vmem:[%s249 + $0xad0] sm:$0xff]
        %v753 = vld [vmem:[%s249 + $0xad8] sm:$0xff]
        %v754 = vld [vmem:[%s249 + $0xae0] sm:$0xff]
        %v755 = vld [vmem:[%s249 + $0xae8] sm:$0xff]
        %v756 = vld [vmem:[%s249 + $0xaf0] sm:$0xff]
        %v757 = vld [vmem:[%s249 + $0xaf8] sm:$0xff]
        %v758 = vld [vmem:[%s249 + $0xb00] sm:$0xff]
        %v759 = vld [vmem:[%s249 + $0xb08] sm:$0xff]
        %v760 = vld [vmem:[%s249 + $0xb10] sm:$0xff]
        %v761 = vld [vmem:[%s249 + $0xb18] sm:$0xff]
        %v762 = vld [vmem:[%s249 + $0xb20] sm:$0xff]
        %v763 = vld [vmem:[%s249 + $0xb28] sm:$0xff]
        %v764 = vld [vmem:[%s249 + $0xb30] sm:$0xff]
        %v765 = vld [vmem:[%s249 + $0xb38] sm:$0xff]
        %v766 = vld [vmem:[%s249 + $0xb40] sm:$0xff]
        %v767 = vld [vmem:[%s249 + $0xb48] sm:$0xff]
        %v768 = vld [vmem:[%s249 + $0xb50] sm:$0xff]
        %v769 = vld [vmem:[%s249 + $0xb58] sm:$0xff]
        %v770 = vld [vmem:[%s249 + $0xb60] sm:$0xff]
        %v771 = vld [vmem:[%s249 + $0xb68] sm:$0xff]
        %v772 = vld [vmem:[%s249 + $0xb70] sm:$0xff]
        %v773 = vld [vmem:[%s249 + $0xb78] sm:$0xff]
        %v774 = vld [vmem:[%s249 + $0xb80] sm:$0xff]
        %v775 = vld [vmem:[%s249 + $0xb88] sm:$0xff]
        %v776 = vld [vmem:[%s249 + $0xb90] sm:$0xff]
        %v777 = vld [vmem:[%s249 + $0xb98] sm:$0xff]
        %v778 = vld [vmem:[%s249 + $0xba0] sm:$0xff]
        %v779 = vld [vmem:[%s249 + $0xba8] sm:$0xff]
        %v780 = vld [vmem:[%s249 + $0xbb0] sm:$0xff]
        %v781 = vld [vmem:[%s249 + $0xbb8] sm:$0xff]
        %v782 = vld [vmem:[%s249 + $0xbc0] sm:$0xff]
        %v783 = vld [vmem:[%s249 + $0xbc8] sm:$0xff]
        %v784 = vld [vmem:[%s249 + $0xbd0] sm:$0xff]
        %v785 = vld [vmem:[%s249 + $0xbd8] sm:$0xff]
        %v786 = vld [vmem:[%s249 + $0xbe0] sm:$0xff]
        %v787 = vld [vmem:[%s249 + $0xbe8] sm:$0xff]
        %v788 = vld [vmem:[%s249 + $0xbf0] sm:$0xff]
        %v789 = vld [vmem:[%s249 + $0xbf8] sm:$0xff]
        %v790 = vld [vmem:[%s249 + $0xc00] sm:$0xff]
        %v791 = vld [vmem:[%s249 + $0xc08] sm:$0xff]
        %v792 = vld [vmem:[%s249 + $0xc10] sm:$0xff]
        %v793 = vld [vmem:[%s249 + $0xc18] sm:$0xff]
        %v794 = vld [vmem:[%s249 + $0xc20] sm:$0xff]
        %v795 = vld [vmem:[%s249 + $0xc28] sm:$0xff]
        %v796 = vld [vmem:[%s249 + $0xc30] sm:$0xff]
        %v797 = vld [vmem:[%s249 + $0xc38] sm:$0xff]
        %v798 = vld [vmem:[%s249 + $0xc40] sm:$0xff]
        %v799 = vld [vmem:[%s249 + $0xc48] sm:$0xff]
        %v800 = vld [vmem:[%s249 + $0xc50] sm:$0xff]
        %v801 = vld [vmem:[%s249 + $0xc58] sm:$0xff]
        %v802 = vld [vmem:[%s249 + $0xc60] sm:$0xff]
        %v803 = vld [vmem:[%s249 + $0xc68] sm:$0xff]
        %v804 = vld [vmem:[%s249 + $0xc70] sm:$0xff]
        %v805 = vld [vmem:[%s249 + $0xc78] sm:$0xff]
        %v806 = vld [vmem:[%s249 + $0xc80] sm:$0xff]
        %v807 = vld [vmem:[%s249 + $0xc88] sm:$0xff]
        %v808 = vld [vmem:[%s249 + $0xc90] sm:$0xff]
        %v809 = vld [vmem:[%s249 + $0xc98] sm:$0xff]
        %v810 = vld [vmem:[%s249 + $0xca0] sm:$0xff]
        %v811 = vld [vmem:[%s249 + $0xca8] sm:$0xff]
        %v812 = vld [vmem:[%s249 + $0xcb0] sm:$0xff]
        %v813 = vld [vmem:[%s249 + $0xcb8] sm:$0xff]
        %v814 = vld [vmem:[%s249 + $0xcc0] sm:$0xff]
        %v815 = vld [vmem:[%s249 + $0xcc8] sm:$0xff]
        %v816 = vld [vmem:[%s249 + $0xcd0] sm:$0xff]
        %v817 = vld [vmem:[%s249 + $0xcd8] sm:$0xff]
        %v818 = vld [vmem:[%s249 + $0xce0] sm:$0xff]
        %v819 = vld [vmem:[%s249 + $0xce8] sm:$0xff]
        %v820 = vld [vmem:[%s249 + $0xcf0] sm:$0xff]
        %v821 = vld [vmem:[%s249 + $0xcf8] sm:$0xff]
        %v822 = vld [vmem:[%s249 + $0xd00] sm:$0xff]
        %v823 = vld [vmem:[%s249 + $0xd08] sm:$0xff]
        %v824 = vld [vmem:[%s249 + $0xd10] sm:$0xff]
        %v825 = vld [vmem:[%s249 + $0xd18] sm:$0xff]
        %v826 = vld [vmem:[%s249 + $0xd20] sm:$0xff]
        %v827 = vld [vmem:[%s249 + $0xd28] sm:$0xff]
        %v828 = vld [vmem:[%s249 + $0xd30] sm:$0xff]
        %v829 = vld [vmem:[%s249 + $0xd38] sm:$0xff]
        %v830 = vld [vmem:[%s249 + $0xd40] sm:$0xff]
        %v831 = vld [vmem:[%s249 + $0xd48] sm:$0xff]
        %v832 = vld [vmem:[%s249 + $0xd50] sm:$0xff]
        %v833 = vld [vmem:[%s249 + $0xd58] sm:$0xff]
        %v834 = vld [vmem:[%s249 + $0xd60] sm:$0xff]
        %v835 = vld [vmem:[%s249 + $0xd68] sm:$0xff]
        %v836 = vld [vmem:[%s249 + $0xd70] sm:$0xff]
        %v837 = vld [vmem:[%s249 + $0xd78] sm:$0xff]
        %v838 = vld [vmem:[%s249 + $0xd80] sm:$0xff]
        %v839 = vld [vmem:[%s249 + $0xd88] sm:$0xff]
        %v840 = vld [vmem:[%s249 + $0xd90] sm:$0xff]
        %v841 = vld [vmem:[%s249 + $0xd98] sm:$0xff]
        %v842 = vld [vmem:[%s249 + $0xda0] sm:$0xff]
        %v843 = vld [vmem:[%s249 + $0xda8] sm:$0xff]
        %v844 = vld [vmem:[%s249 + $0xdb0] sm:$0xff]
        %v845 = vld [vmem:[%s249 + $0xdb8] sm:$0xff]
        %v846 = vld [vmem:[%s249 + $0xdc0] sm:$0xff]
        %v847 = vld [vmem:[%s249 + $0xdc8] sm:$0xff]
        %v848 = vld [vmem:[%s249 + $0xdd0] sm:$0xff]
        %v849 = vld [vmem:[%s249 + $0xdd8] sm:$0xff]
        %v850 = vld [vmem:[%s249 + $0xde0] sm:$0xff]
        %v851 = vld [vmem:[%s249 + $0xde8] sm:$0xff]
        %v852 = vld [vmem:[%s249 + $0xdf0] sm:$0xff]
        %v853 = vld [vmem:[%s249 + $0xdf8] sm:$0xff]
        %v854 = vld [vmem:[%s249 + $0xe00] sm:$0xff]
        %v855 = vld [vmem:[%s249 + $0xe08] sm:$0xff]
        %v856 = vld [vmem:[%s249 + $0xe10] sm:$0xff]
        %v857 = vld [vmem:[%s249 + $0xe18] sm:$0xff]
        %v858 = vld [vmem:[%s249 + $0xe20] sm:$0xff]
        %v859 = vld [vmem:[%s249 + $0xe28] sm:$0xff]
        %v860 = vld [vmem:[%s249 + $0xe30] sm:$0xff]
        %v861 = vld [vmem:[%s249 + $0xe38] sm:$0xff]
        %v862 = vld [vmem:[%s249 + $0xe40] sm:$0xff]
        %v863 = vld [vmem:[%s249 + $0xe48] sm:$0xff]
        %v864 = vld [vmem:[%s249 + $0xe50] sm:$0xff]
        %v865 = vld [vmem:[%s249 + $0xe58] sm:$0xff]
        %v866 = vld [vmem:[%s249 + $0xe60] sm:$0xff]
        %v867 = vld [vmem:[%s249 + $0xe68] sm:$0xff]
        %v868 = vld [vmem:[%s249 + $0xe70] sm:$0xff]
        %v869 = vld [vmem:[%s249 + $0xe78] sm:$0xff]
        %v870 = vld [vmem:[%s249 + $0xe80] sm:$0xff]
        %v871 = vld [vmem:[%s249 + $0xe88] sm:$0xff]
        %v872 = vld [vmem:[%s249 + $0xe90] sm:$0xff]
        %v873 = vld [vmem:[%s249 + $0xe98] sm:$0xff]
        %v874 = vld [vmem:[%s249 + $0xea0] sm:$0xff]
        %v875 = vld [vmem:[%s249 + $0xea8] sm:$0xff]
        %v876 = vld [vmem:[%s249 + $0xeb0] sm:$0xff]
        %v877 = vld [vmem:[%s249 + $0xeb8] sm:$0xff]
        %v878 = vld [vmem:[%s249 + $0xec0] sm:$0xff]
        %v879 = vld [vmem:[%s249 + $0xec8] sm:$0xff]
        %v880 = vld [vmem:[%s249 + $0xed0] sm:$0xff]
        %v881 = vld [vmem:[%s249 + $0xed8] sm:$0xff]
        %v882 = vld [vmem:[%s249 + $0xee0] sm:$0xff]
        %v883 = vld [vmem:[%s249 + $0xee8] sm:$0xff]
        %v884 = vld [vmem:[%s249 + $0xef0] sm:$0xff]
        %v885 = vld [vmem:[%s249 + $0xef8] sm:$0xff]
        %v886 = vld [vmem:[%s249 + $0xf00] sm:$0xff]
        %v887 = vld [vmem:[%s249 + $0xf08] sm:$0xff]
        %v888 = vld [vmem:[%s249 + $0xf10] sm:$0xff]
        %v889 = vld [vmem:[%s249 + $0xf18] sm:$0xff]
        %v890 = vld [vmem:[%s249 + $0xf20] sm:$0xff]
        %v891 = vld [vmem:[%s249 + $0xf28] sm:$0xff]
        %v892 = vld [vmem:[%s249 + $0xf30] sm:$0xff]
        %v893 = vld [vmem:[%s249 + $0xf38] sm:$0xff]
        %v894 = vld [vmem:[%s249 + $0xf40] sm:$0xff]
        %v895 = vld [vmem:[%s249 + $0xf48] sm:$0xff]
        %v896 = vld [vmem:[%s249 + $0xf50] sm:$0xff]
        %v897 = vld [vmem:[%s249 + $0xf58] sm:$0xff]
        %v898 = vld [vmem:[%s249 + $0xf60] sm:$0xff]
        %v899 = vld [vmem:[%s249 + $0xf68] sm:$0xff]
        %v900 = vld [vmem:[%s249 + $0xf70] sm:$0xff]
        %v901 = vld [vmem:[%s249 + $0xf78] sm:$0xff]
        %v902 = vld [vmem:[%s249 + $0xf80] sm:$0xff]
        %v903 = vld [vmem:[%s249 + $0xf88] sm:$0xff]
        %v904 = vld [vmem:[%s249 + $0xf90] sm:$0xff]
        %v905 = vld [vmem:[%s249 + $0xf98] sm:$0xff]
        %v906 = vld [vmem:[%s249 + $0xfa0] sm:$0xff]
        %v907 = vld [vmem:[%s249 + $0xfa8] sm:$0xff]
        %v908 = vld [vmem:[%s249 + $0xfb0] sm:$0xff]
        %v909 = vld [vmem:[%s249 + $0xfb8] sm:$0xff]
        %v910 = vld [vmem:[%s249 + $0xfc0] sm:$0xff]
        %v911 = vld [vmem:[%s249 + $0xfc8] sm:$0xff]
        %v912 = vld [vmem:[%s249 + $0xfd0] sm:$0xff]
        %v913 = vld [vmem:[%s249 + $0xfd8] sm:$0xff]
        %v914 = vld [vmem:[%s249 + $0xfe0] sm:$0xff]
        %v915 = vld [vmem:[%s249 + $0xfe8] sm:$0xff]
        %v916 = vld [vmem:[%s249 + $0xff0] sm:$0xff]
        %v917 = vld [vmem:[%s249 + $0xff8] sm:$0xff]
        %v918 = vld [vmem:[%s249 + $0x1000] sm:$0xff]
        %v919 = vld [vmem:[%s249 + $0x1008] sm:$0xff]
        %v920 = vld [vmem:[%s249 + $0x1010] sm:$0xff]
        %v921 = vld [vmem:[%s249 + $0x1018] sm:$0xff]
        %v922 = vld [vmem:[%s249 + $0x1020] sm:$0xff]
        %v923 = vld [vmem:[%s249 + $0x1028] sm:$0xff]
        %v924 = vld [vmem:[%s249 + $0x1030] sm:$0xff]
        %v925 = vld [vmem:[%s249 + $0x1038] sm:$0xff]
        %v926 = vld [vmem:[%s249 + $0x1040] sm:$0xff]
        %v927 = vld [vmem:[%s249 + $0x1048] sm:$0xff]
        %v928 = vld [vmem:[%s249 + $0x1050] sm:$0xff]
        %v929 = vld [vmem:[%s249 + $0x1058] sm:$0xff]
        %v930 = vld [vmem:[%s249 + $0x1060] sm:$0xff]
        %v931 = vld [vmem:[%s249 + $0x1068] sm:$0xff]
        %v932 = vld [vmem:[%s249 + $0x1070] sm:$0xff]
        %v933 = vld [vmem:[%s249 + $0x1078] sm:$0xff]
        %v934 = vld [vmem:[%s249 + $0x1080] sm:$0xff]
        %v935 = vld [vmem:[%s249 + $0x1088] sm:$0xff]
        %v936 = vld [vmem:[%s249 + $0x1090] sm:$0xff]
        %v937 = vld [vmem:[%s249 + $0x1098] sm:$0xff]
        %v938 = vld [vmem:[%s249 + $0x10a0] sm:$0xff]
        %v939 = vld [vmem:[%s249 + $0x10a8] sm:$0xff]
        %v940 = vld [vmem:[%s249 + $0x10b0] sm:$0xff]
        %v941 = vld [vmem:[%s249 + $0x10b8] sm:$0xff]
        %v942 = vld [vmem:[%s249 + $0x10c0] sm:$0xff]
        %v943 = vld [vmem:[%s249 + $0x10c8] sm:$0xff]
        %v944 = vld [vmem:[%s249 + $0x10d0] sm:$0xff]
        %v945 = vld [vmem:[%s249 + $0x10d8] sm:$0xff]
        %v946 = vld [vmem:[%s249 + $0x10e0] sm:$0xff]
        %v947 = vld [vmem:[%s249 + $0x10e8] sm:$0xff]
        %v948 = vld [vmem:[%s249 + $0x10f0] sm:$0xff]
        %v949 = vld [vmem:[%s249 + $0x10f8] sm:$0xff]
        %v950 = vld [vmem:[%s249 + $0x1100] sm:$0xff]
        %v951 = vld [vmem:[%s249 + $0x1108] sm:$0xff]
        %v952 = vld [vmem:[%s249 + $0x1110] sm:$0xff]
        %v953 = vld [vmem:[%s249 + $0x1118] sm:$0xff]
        %v954 = vld [vmem:[%s249 + $0x1120] sm:$0xff]
        %v955 = vld [vmem:[%s249 + $0x1128] sm:$0xff]
        %v956 = vld [vmem:[%s249 + $0x1130] sm:$0xff]
        %v957 = vld [vmem:[%s249 + $0x1138] sm:$0xff]
        %v958 = vld [vmem:[%s249 + $0x1140] sm:$0xff]
        %v959 = vld [vmem:[%s249 + $0x1148] sm:$0xff]
        %v960 = vld [vmem:[%s249 + $0x1150] sm:$0xff]
        %v961 = vld [vmem:[%s249 + $0x1158] sm:$0xff]
        %v962 = vld [vmem:[%s249 + $0x1160] sm:$0xff]
        %v963 = vld [vmem:[%s249 + $0x1168] sm:$0xff]
        %v964 = vld [vmem:[%s249 + $0x1170] sm:$0xff]
        %v965 = vld [vmem:[%s249 + $0x1178] sm:$0xff]
        %v966 = vld [vmem:[%s249 + $0x1180] sm:$0xff]
        %v967 = vld [vmem:[%s249 + $0x1188] sm:$0xff]
        %v968 = vld [vmem:[%s249 + $0x1190] sm:$0xff]
        %v969 = vld [vmem:[%s249 + $0x1198] sm:$0xff]
        %v970 = vld [vmem:[%s249 + $0x11a0] sm:$0xff]
        %v971 = vld [vmem:[%s249 + $0x11a8] sm:$0xff]
        %v972 = vld [vmem:[%s249 + $0x11b0] sm:$0xff]
        %v973 = vld [vmem:[%s249 + $0x11b8] sm:$0xff]
        %v974 = vld [vmem:[%s249 + $0x11c0] sm:$0xff]
        %v975 = vld [vmem:[%s249 + $0x11c8] sm:$0xff]
        %v976 = vld [vmem:[%s249 + $0x11d0] sm:$0xff]
        %v977 = vld [vmem:[%s249 + $0x11d8] sm:$0xff]
        %v978 = vld [vmem:[%s249 + $0x11e0] sm:$0xff]
        %v979 = vld [vmem:[%s249 + $0x11e8] sm:$0xff]
        %v980 = vld [vmem:[%s249 + $0x11f0] sm:$0xff]
        %v981 = vld [vmem:[%s249 + $0x11f8] sm:$0xff]
        %v982 = vld [vmem:[%s249 + $0x1200] sm:$0xff]
        %v983 = vld [vmem:[%s249 + $0x1208] sm:$0xff]
        %v984 = vld [vmem:[%s249 + $0x1210] sm:$0xff]
        %v985 = vld [vmem:[%s249 + $0x1218] sm:$0xff]
        %v986 = vld [vmem:[%s249 + $0x1220] sm:$0xff]
        %v987 = vld [vmem:[%s249 + $0x1228] sm:$0xff]
        %v988 = vld [vmem:[%s249 + $0x1230] sm:$0xff]
        %v989 = vld [vmem:[%s249 + $0x1238] sm:$0xff]
        %v990 = vld [vmem:[%s249 + $0x1240] sm:$0xff]
        %v991 = vld [vmem:[%s249 + $0x1248] sm:$0xff]
        %v992 = vld [vmem:[%s249 + $0x1250] sm:$0xff]
        %v993 = vld [vmem:[%s249 + $0x1258] sm:$0xff]
        %v994 = vld [vmem:[%s249 + $0x1260] sm:$0xff]
        %v995 = vld [vmem:[%s249 + $0x1268] sm:$0xff]
        %v996 = vld [vmem:[%s249 + $0x1270] sm:$0xff]
        %v997 = vld [vmem:[%s249 + $0x1278] sm:$0xff]
        %v998 = vld [vmem:[%s249 + $0x1280] sm:$0xff]
        %v999 = vld [vmem:[%s249 + $0x1288] sm:$0xff]
        %v1000 = vld [vmem:[%s249 + $0x1290] sm:$0xff]
        %v1001 = vld [vmem:[%s249 + $0x1298] sm:$0xff]
        %v1002 = vld [vmem:[%s249 + $0x12a0] sm:$0xff]
        %v1003 = vld [vmem:[%s249 + $0x12a8] sm:$0xff]
        %v1004 = vld [vmem:[%s249 + $0x12b0] sm:$0xff]
        %v1005 = vld [vmem:[%s249 + $0x12b8] sm:$0xff]
        %v1006 = vld [vmem:[%s249 + $0x12c0] sm:$0xff]
        %v1007 = vld [vmem:[%s249 + $0x12c8] sm:$0xff]
        %v1008 = vld [vmem:[%s249 + $0x12d0] sm:$0xff]
        %v1009 = vld [vmem:[%s249 + $0x12d8] sm:$0xff]
        %v1010 = vld [vmem:[%s249 + $0x12e0] sm:$0xff]
        %v1011 = vld [vmem:[%s249 + $0x12e8] sm:$0xff]
        %v1012 = vld [vmem:[%s249 + $0x12f0] sm:$0xff]
        %v1013 = vld [vmem:[%s249 + $0x12f8] sm:$0xff]
        %v1014 = vld [vmem:[%s249 + $0x1300] sm:$0xff]
        %v1015 = vld [vmem:[%s249 + $0x1308] sm:$0xff]
        %v1016 = vld [vmem:[%s249 + $0x1310] sm:$0xff]
        %v1017 = vld [vmem:[%s249 + $0x1318] sm:$0xff]
        %v1018 = vld [vmem:[%s249 + $0x1320] sm:$0xff]
        %v1019 = vld [vmem:[%s249 + $0x1328] sm:$0xff]
        %v1020 = vld [vmem:[%s249 + $0x1330] sm:$0xff]
        %v1021 = vld [vmem:[%s249 + $0x1338] sm:$0xff]
        %v1022 = vld [vmem:[%s249 + $0x1340] sm:$0xff]
        %v1023 = vld [vmem:[%s249 + $0x1348] sm:$0xff]
        %v1024 = vld [vmem:[%s249 + $0x1350] sm:$0xff]
        %v1025 = vld [vmem:[%s249 + $0x1358] sm:$0xff]
        %v1026 = vld [vmem:[%s249 + $0x1360] sm:$0xff]
        %v1027 = vld [vmem:[%s249 + $0x1368] sm:$0xff]
        %v1028 = vld [vmem:[%s249 + $0x1370] sm:$0xff]
        %v1029 = vld [vmem:[%s249 + $0x1378] sm:$0xff]
        %v1030 = vld [vmem:[%s249 + $0x1380] sm:$0xff]
        %v1031 = vld [vmem:[%s249 + $0x1388] sm:$0xff]
        %v1032 = vld [vmem:[%s249 + $0x1390] sm:$0xff]
        %v1033 = vld [vmem:[%s249 + $0x1398] sm:$0xff]
        %v1034 = vld [vmem:[%s249 + $0x13a0] sm:$0xff]
        %v1035 = vld [vmem:[%s249 + $0x13a8] sm:$0xff]
        %v1036 = vld [vmem:[%s249 + $0x13b0] sm:$0xff]
        %v1037 = vld [vmem:[%s249 + $0x13b8] sm:$0xff]
        %v1038 = vld [vmem:[%s249 + $0x13c0] sm:$0xff]
        %v1039 = vld [vmem:[%s249 + $0x13c8] sm:$0xff]
        %v1040 = vld [vmem:[%s249 + $0x13d0] sm:$0xff]
        %v1041 = vld [vmem:[%s249 + $0x13d8] sm:$0xff]
        %v1042 = vld [vmem:[%s249 + $0x13e0] sm:$0xff]
        %v1043 = vld [vmem:[%s249 + $0x13e8] sm:$0xff]
        %v1044 = vld [vmem:[%s249 + $0x13f0] sm:$0xff]
        %v1045 = vld [vmem:[%s249 + $0x13f8] sm:$0xff]
        %v1046 = vld [vmem:[%s249 + $0x1400] sm:$0xff]
        %v1047 = vld [vmem:[%s249 + $0x1408] sm:$0xff]
        %v1048 = vld [vmem:[%s249 + $0x1410] sm:$0xff]
        %v1049 = vld [vmem:[%s249 + $0x1418] sm:$0xff]
        %v1050 = vld [vmem:[%s249 + $0x1420] sm:$0xff]
        %v1051 = vld [vmem:[%s249 + $0x1428] sm:$0xff]
        %v1052 = vld [vmem:[%s249 + $0x1430] sm:$0xff]
        %v1053 = vld [vmem:[%s249 + $0x1438] sm:$0xff]
        %v1054 = vld [vmem:[%s249 + $0x1440] sm:$0xff]
        %v1055 = vld [vmem:[%s249 + $0x1448] sm:$0xff]
        %v1056 = vld [vmem:[%s249 + $0x1450] sm:$0xff]
        %v1057 = vld [vmem:[%s249 + $0x1458] sm:$0xff]
        %v1058 = vld [vmem:[%s249 + $0x1460] sm:$0xff]
        %v1059 = vld [vmem:[%s249 + $0x1468] sm:$0xff]
        %v1060 = vld [vmem:[%s249 + $0x1470] sm:$0xff]
        %v1061 = vld [vmem:[%s249 + $0x1478] sm:$0xff]
        %v1062 = vld [vmem:[%s249 + $0x1480] sm:$0xff]
        %v1063 = vld [vmem:[%s249 + $0x1488] sm:$0xff]
        %v1064 = vld [vmem:[%s249 + $0x1490] sm:$0xff]
        %v1065 = vld [vmem:[%s249 + $0x1498] sm:$0xff]
        %v1066 = vld [vmem:[%s249 + $0x14a0] sm:$0xff]
        %v1067 = vld [vmem:[%s249 + $0x14a8] sm:$0xff]
        %v1068 = vld [vmem:[%s249 + $0x14b0] sm:$0xff]
        %v1069 = vld [vmem:[%s249 + $0x14b8] sm:$0xff]
        %v1070 = vld [vmem:[%s249 + $0x14c0] sm:$0xff]
        %v1071 = vld [vmem:[%s249 + $0x14c8] sm:$0xff]
        %v1072 = vld [vmem:[%s249 + $0x14d0] sm:$0xff]
        %v1073 = vld [vmem:[%s249 + $0x14d8] sm:$0xff]
        %v1074 = vld [vmem:[%s249 + $0x14e0] sm:$0xff]
        %v1075 = vld [vmem:[%s249 + $0x14e8] sm:$0xff]
        %v1076 = vld [vmem:[%s249 + $0x14f0] sm:$0xff]
        %v1077 = vld [vmem:[%s249 + $0x14f8] sm:$0xff]
        %v1078 = vld [vmem:[%s249 + $0x1500] sm:$0xff]
        %v1079 = vld [vmem:[%s249 + $0x1508] sm:$0xff]
        %v1080 = vld [vmem:[%s249 + $0x1510] sm:$0xff]
        %v1081 = vld [vmem:[%s249 + $0x1518] sm:$0xff]
        %v1082 = vld [vmem:[%s249 + $0x1520] sm:$0xff]
        %v1083 = vld [vmem:[%s249 + $0x1528] sm:$0xff]
        %v1084 = vld [vmem:[%s249 + $0x1530] sm:$0xff]
        %v1085 = vld [vmem:[%s249 + $0x1538] sm:$0xff]
        %v1086 = vld [vmem:[%s249 + $0x1540] sm:$0xff]
        %v1087 = vld [vmem:[%s249 + $0x1548] sm:$0xff]
        %v1088 = vld [vmem:[%s249 + $0x1550] sm:$0xff]
        %v1089 = vld [vmem:[%s249 + $0x1558] sm:$0xff]
        %v1090 = vld [vmem:[%s249 + $0x1560] sm:$0xff]
        %v1091 = vld [vmem:[%s249 + $0x1568] sm:$0xff]
        %v1092 = vld [vmem:[%s249 + $0x1570] sm:$0xff]
        %v1093 = vld [vmem:[%s249 + $0x1578] sm:$0xff]
        %v1094 = vld [vmem:[%s249 + $0x1580] sm:$0xff]
        %v1095 = vld [vmem:[%s249 + $0x1588] sm:$0xff]
        %v1096 = vld [vmem:[%s249 + $0x1590] sm:$0xff]
        %v1097 = vld [vmem:[%s249 + $0x1598] sm:$0xff]
        %v1098 = vld [vmem:[%s249 + $0x15a0] sm:$0xff]
        %v1099 = vld [vmem:[%s249 + $0x15a8] sm:$0xff]
        %v1100 = vld [vmem:[%s249 + $0x15b0] sm:$0xff]
        %v1101 = vld [vmem:[%s249 + $0x15b8] sm:$0xff]
        %v1102 = vld [vmem:[%s249 + $0x15c0] sm:$0xff]
        %v1103 = vld [vmem:[%s249 + $0x15c8] sm:$0xff]
        %v1104 = vld [vmem:[%s249 + $0x15d0] sm:$0xff]
        %v1105 = vld [vmem:[%s249 + $0x15d8] sm:$0xff]
        %v1106 = vld [vmem:[%s249 + $0x15e0] sm:$0xff]
        %v1107 = vld [vmem:[%s249 + $0x15e8] sm:$0xff]
        %v1108 = vld [vmem:[%s249 + $0x15f0] sm:$0xff]
        %v1109 = vld [vmem:[%s249 + $0x15f8] sm:$0xff]
        %v1110 = vld [vmem:[%s249 + $0x1600] sm:$0xff]
        %v1111 = vld [vmem:[%s249 + $0x1608] sm:$0xff]
        %v1112 = vld [vmem:[%s249 + $0x1610] sm:$0xff]
        %v1113 = vld [vmem:[%s249 + $0x1618] sm:$0xff]
        %v1114 = vld [vmem:[%s249 + $0x1620] sm:$0xff]
        %v1115 = vld [vmem:[%s249 + $0x1628] sm:$0xff]
        %v1116 = vld [vmem:[%s249 + $0x1630] sm:$0xff]
        %v1117 = vld [vmem:[%s249 + $0x1638] sm:$0xff]
        %v1118 = vld [vmem:[%s249 + $0x1640] sm:$0xff]
        %v1119 = vld [vmem:[%s249 + $0x1648] sm:$0xff]
        %v1120 = vld [vmem:[%s249 + $0x1650] sm:$0xff]
        %v1121 = vld [vmem:[%s249 + $0x1658] sm:$0xff]
        %v1122 = vld [vmem:[%s249 + $0x1660] sm:$0xff]
        %v1123 = vld [vmem:[%s249 + $0x1668] sm:$0xff]
        %v1124 = vld [vmem:[%s249 + $0x1670] sm:$0xff]
        %v1125 = vld [vmem:[%s249 + $0x1678] sm:$0xff]
        %v1126 = vld [vmem:[%s249 + $0x1680] sm:$0xff]
        %v1127 = vld [vmem:[%s249 + $0x1688] sm:$0xff]
        %v1128 = vld [vmem:[%s249 + $0x1690] sm:$0xff]
        %v1129 = vld [vmem:[%s249 + $0x1698] sm:$0xff]
        %v1130 = vld [vmem:[%s249 + $0x16a0] sm:$0xff]
        %v1131 = vld [vmem:[%s249 + $0x16a8] sm:$0xff]
        %v1132 = vld [vmem:[%s249 + $0x16b0] sm:$0xff]
        %v1133 = vld [vmem:[%s249 + $0x16b8] sm:$0xff]
        %v1134 = vld [vmem:[%s249 + $0x16c0] sm:$0xff]
        %v1135 = vld [vmem:[%s249 + $0x16c8] sm:$0xff]
        %v1136 = vld [vmem:[%s249 + $0x16d0] sm:$0xff]
        %v1137 = vld [vmem:[%s249 + $0x16d8] sm:$0xff]
        %v1138 = vld [vmem:[%s249 + $0x16e0] sm:$0xff]
        %v1139 = vld [vmem:[%s249 + $0x16e8] sm:$0xff]
        %v1140 = vld [vmem:[%s249 + $0x16f0] sm:$0xff]
        %v1141 = vld [vmem:[%s249 + $0x16f8] sm:$0xff]
        %v1142 = vld [vmem:[%s249 + $0x1700] sm:$0xff]
        %v1143 = vld [vmem:[%s249 + $0x1708] sm:$0xff]
        %v1144 = vld [vmem:[%s249 + $0x1710] sm:$0xff]
        %v1145 = vld [vmem:[%s249 + $0x1718] sm:$0xff]
        %v1146 = vld [vmem:[%s249 + $0x1720] sm:$0xff]
        %v1147 = vld [vmem:[%s249 + $0x1728] sm:$0xff]
        %v1148 = vld [vmem:[%s249 + $0x1730] sm:$0xff]
        %v1149 = vld [vmem:[%s249 + $0x1738] sm:$0xff]
        %v1150 = vld [vmem:[%s249 + $0x1740] sm:$0xff]
        %v1151 = vld [vmem:[%s249 + $0x1748] sm:$0xff]
        %v1152 = vld [vmem:[%s249 + $0x1750] sm:$0xff]
        %v1153 = vld [vmem:[%s249 + $0x1758] sm:$0xff]
        %v1154 = vld [vmem:[%s249 + $0x1760] sm:$0xff]
        %v1155 = vld [vmem:[%s249 + $0x1768] sm:$0xff]
        %v1156 = vld [vmem:[%s249 + $0x1770] sm:$0xff]
        %v1157 = vld [vmem:[%s249 + $0x1778] sm:$0xff]
        %v1158 = vld [vmem:[%s249 + $0x1780] sm:$0xff]
        %v1159 = vld [vmem:[%s249 + $0x1788] sm:$0xff]
        %v1160 = vld [vmem:[%s249 + $0x1790] sm:$0xff]
        %v1161 = vld [vmem:[%s249 + $0x1798] sm:$0xff]
        %v1162 = vld [vmem:[%s249 + $0x17a0] sm:$0xff]
        %v1163 = vld [vmem:[%s249 + $0x17a8] sm:$0xff]
        %v1164 = vld [vmem:[%s249 + $0x17b0] sm:$0xff]
        %v1165 = vld [vmem:[%s249 + $0x17b8] sm:$0xff]
        %v1166 = vld [vmem:[%s249 + $0x17c0] sm:$0xff]
        %v1167 = vld [vmem:[%s249 + $0x17c8] sm:$0xff]
        %v1168 = vld [vmem:[%s249 + $0x17d0] sm:$0xff]
        %v1169 = vld [vmem:[%s249 + $0x17d8] sm:$0xff]
        %v1170 = vld [vmem:[%s249 + $0x17e0] sm:$0xff]
        %v1171 = vld [vmem:[%s249 + $0x17e8] sm:$0xff]
        %v1172 = vld [vmem:[%s249 + $0x17f0] sm:$0xff]
        %v1173 = vld [vmem:[%s249 + $0x17f8] sm:$0xff]
        %v1174 = vld [vmem:[%s249 + $0x1800] sm:$0xff]
        %v1175 = vld [vmem:[%s249 + $0x1808] sm:$0xff]
        %v1176 = vld [vmem:[%s249 + $0x1810] sm:$0xff]
        %v1177 = vld [vmem:[%s249 + $0x1818] sm:$0xff]
        %v1178 = vld [vmem:[%s249 + $0x1820] sm:$0xff]
        %v1179 = vld [vmem:[%s249 + $0x1828] sm:$0xff]
        %v1180 = vld [vmem:[%s249 + $0x1830] sm:$0xff]
        %v1181 = vld [vmem:[%s249 + $0x1838] sm:$0xff]
        %v1182 = vld [vmem:[%s249 + $0x1840] sm:$0xff]
        %v1183 = vld [vmem:[%s249 + $0x1848] sm:$0xff]
        %v1184 = vld [vmem:[%s249 + $0x1850] sm:$0xff]
        %v1185 = vld [vmem:[%s249 + $0x1858] sm:$0xff]
        %v1186 = vld [vmem:[%s249 + $0x1860] sm:$0xff]
        %v1187 = vld [vmem:[%s249 + $0x1868] sm:$0xff]
        %v1188 = vld [vmem:[%s249 + $0x1870] sm:$0xff]
        %v1189 = vld [vmem:[%s249 + $0x1878] sm:$0xff]
        %v1190 = vld [vmem:[%s249 + $0x1880] sm:$0xff]
        %v1191 = vld [vmem:[%s249 + $0x1888] sm:$0xff]
        %v1192 = vld [vmem:[%s249 + $0x1890] sm:$0xff]
        %v1193 = vld [vmem:[%s249 + $0x1898] sm:$0xff]
        %v1194 = vld [vmem:[%s249 + $0x18a0] sm:$0xff]
        %v1195 = vld [vmem:[%s249 + $0x18a8] sm:$0xff]
        %v1196 = vld [vmem:[%s249 + $0x18b0] sm:$0xff]
        %v1197 = vld [vmem:[%s249 + $0x18b8] sm:$0xff]
        %v1198 = vld [vmem:[%s249 + $0x18c0] sm:$0xff]
        %v1199 = vld [vmem:[%s249 + $0x18c8] sm:$0xff]
        %v1200 = vld [vmem:[%s249 + $0x18d0] sm:$0xff]
        %v1201 = vld [vmem:[%s249 + $0x18d8] sm:$0xff]
        %v1202 = vld [vmem:[%s249 + $0x18e0] sm:$0xff]
        %v1203 = vld [vmem:[%s249 + $0x18e8] sm:$0xff]
        %v1204 = vld [vmem:[%s249 + $0x18f0] sm:$0xff]
        %v1205 = vld [vmem:[%s249 + $0x18f8] sm:$0xff]
        %v1206 = vld [vmem:[%s249 + $0x1900] sm:$0xff]
        %v1207 = vld [vmem:[%s249 + $0x1908] sm:$0xff]
        %v1208 = vld [vmem:[%s249 + $0x1910] sm:$0xff]
        %v1209 = vld [vmem:[%s249 + $0x1918] sm:$0xff]
        %v1210 = vld [vmem:[%s249 + $0x1920] sm:$0xff]
        %v1211 = vld [vmem:[%s249 + $0x1928] sm:$0xff]
        %v1212 = vld [vmem:[%s249 + $0x1930] sm:$0xff]
        %v1213 = vld [vmem:[%s249 + $0x1938] sm:$0xff]
        %v1214 = vld [vmem:[%s249 + $0x1940] sm:$0xff]
        %v1215 = vld [vmem:[%s249 + $0x1948] sm:$0xff]
        %v1216 = vld [vmem:[%s249 + $0x1950] sm:$0xff]
        %v1217 = vld [vmem:[%s249 + $0x1958] sm:$0xff]
        %v1218 = vld [vmem:[%s249 + $0x1960] sm:$0xff]
        %v1219 = vld [vmem:[%s249 + $0x1968] sm:$0xff]
        %v1220 = vld [vmem:[%s249 + $0x1970] sm:$0xff]
        %v1221 = vld [vmem:[%s249 + $0x1978] sm:$0xff]
        %v1222 = vld [vmem:[%s249 + $0x1980] sm:$0xff]
        %v1223 = vld [vmem:[%s249 + $0x1988] sm:$0xff]
        %v1224 = vld [vmem:[%s249 + $0x1990] sm:$0xff]
        %v1225 = vld [vmem:[%s249 + $0x1998] sm:$0xff]
        %v1226 = vld [vmem:[%s249 + $0x19a0] sm:$0xff]
        %v1227 = vld [vmem:[%s249 + $0x19a8] sm:$0xff]
        %v1228 = vld [vmem:[%s249 + $0x19b0] sm:$0xff]
        %v1229 = vld [vmem:[%s249 + $0x19b8] sm:$0xff]
        %v1230 = vld [vmem:[%s249 + $0x19c0] sm:$0xff]
        %v1231 = vld [vmem:[%s249 + $0x19c8] sm:$0xff]
        %v1232 = vld [vmem:[%s249 + $0x19d0] sm:$0xff]
        %v1233 = vld [vmem:[%s249 + $0x19d8] sm:$0xff]
        %v1234 = vld [vmem:[%s249 + $0x19e0] sm:$0xff]
        %v1235 = vld [vmem:[%s249 + $0x19e8] sm:$0xff]
        %v1236 = vld [vmem:[%s249 + $0x19f0] sm:$0xff]
        %v1237 = vld [vmem:[%s249 + $0x19f8] sm:$0xff]
        %v1238 = vld [vmem:[%s249 + $0x1a00] sm:$0xff]
        %v1239 = vld [vmem:[%s249 + $0x1a08] sm:$0xff]
        %v1240 = vld [vmem:[%s249 + $0x1a10] sm:$0xff]
        %v1241 = vld [vmem:[%s249 + $0x1a18] sm:$0xff]
        %v1242 = vld [vmem:[%s249 + $0x1a20] sm:$0xff]
        %v1243 = vld [vmem:[%s249 + $0x1a28] sm:$0xff]
        %v1244 = vld [vmem:[%s249 + $0x1a30] sm:$0xff]
        %v1245 = vld [vmem:[%s249 + $0x1a38] sm:$0xff]
        %v1246 = vld [vmem:[%s249 + $0x1a40] sm:$0xff]
        %v1247 = vld [vmem:[%s249 + $0x1a48] sm:$0xff]
        %v1248 = vld [vmem:[%s249 + $0x1a50] sm:$0xff]
        %v1249 = vld [vmem:[%s249 + $0x1a58] sm:$0xff]
        %v1250 = vld [vmem:[%s249 + $0x1a60] sm:$0xff]
        %v1251 = vld [vmem:[%s249 + $0x1a68] sm:$0xff]
        %v1252 = vld [vmem:[%s249 + $0x1a70] sm:$0xff]
        %v1253 = vld [vmem:[%s249 + $0x1a78] sm:$0xff]
        %v1254 = vld [vmem:[%s249 + $0x1a80] sm:$0xff]
        %v1255 = vld [vmem:[%s249 + $0x1a88] sm:$0xff]
        %v1256 = vld [vmem:[%s249 + $0x1a90] sm:$0xff]
        %v1257 = vld [vmem:[%s249 + $0x1a98] sm:$0xff]
        %v1258 = vld [vmem:[%s249 + $0x1aa0] sm:$0xff]
        %v1259 = vld [vmem:[%s249 + $0x1aa8] sm:$0xff]
        %v1260 = vld [vmem:[%s249 + $0x1ab0] sm:$0xff]
        %v1261 = vld [vmem:[%s249 + $0x1ab8] sm:$0xff]
        %v1262 = vld [vmem:[%s249 + $0x1ac0] sm:$0xff]
        %v1263 = vld [vmem:[%s249 + $0x1ac8] sm:$0xff]
        %v1264 = vld [vmem:[%s249 + $0x1ad0] sm:$0xff]
        %v1265 = vld [vmem:[%s249 + $0x1ad8] sm:$0xff]
        %v1266 = vld [vmem:[%s249 + $0x1ae0] sm:$0xff]
        %v1267 = vld [vmem:[%s249 + $0x1ae8] sm:$0xff]
        %v1268 = vld [vmem:[%s249 + $0x1af0] sm:$0xff]
        %v1269 = vld [vmem:[%s249 + $0x1af8] sm:$0xff]
        %v1270 = vld [vmem:[%s249 + $0x1b00] sm:$0xff]
        %v1271 = vld [vmem:[%s249 + $0x1b08] sm:$0xff]
        %v1272 = vld [vmem:[%s249 + $0x1b10] sm:$0xff]
        %v1273 = vld [vmem:[%s249 + $0x1b18] sm:$0xff]
        %v1274 = vld [vmem:[%s249 + $0x1b20] sm:$0xff]
        %v1275 = vld [vmem:[%s249 + $0x1b28] sm:$0xff]
        %v1276 = vld [vmem:[%s249 + $0x1b30] sm:$0xff]
        %v1277 = vld [vmem:[%s249 + $0x1b38] sm:$0xff]
        %v1278 = vld [vmem:[%s249 + $0x1b40] sm:$0xff]
        %v1279 = vld [vmem:[%s249 + $0x1b48] sm:$0xff]
        %v1280 = vld [vmem:[%s249 + $0x1b50] sm:$0xff]
        %v1281 = vld [vmem:[%s249 + $0x1b58] sm:$0xff]
        %v1282 = vld [vmem:[%s249 + $0x1b60] sm:$0xff]
        %v1283 = vld [vmem:[%s249 + $0x1b68] sm:$0xff]
        %v1284 = vld [vmem:[%s249 + $0x1b70] sm:$0xff]
        %v1285 = vld [vmem:[%s249 + $0x1b78] sm:$0xff]
        %v1286 = vld [vmem:[%s249 + $0x1b80] sm:$0xff]
        %v1287 = vld [vmem:[%s249 + $0x1b88] sm:$0xff]
        %v1288 = vld [vmem:[%s249 + $0x1b90] sm:$0xff]
        %v1289 = vld [vmem:[%s249 + $0x1b98] sm:$0xff]
        %v1290 = vld [vmem:[%s249 + $0x1ba0] sm:$0xff]
        %v1291 = vld [vmem:[%s249 + $0x1ba8] sm:$0xff]
        %v1292 = vld [vmem:[%s249 + $0x1bb0] sm:$0xff]
        %v1293 = vld [vmem:[%s249 + $0x1bb8] sm:$0xff]
        %v1294 = vld [vmem:[%s249 + $0x1bc0] sm:$0xff]
        %v1295 = vld [vmem:[%s249 + $0x1bc8] sm:$0xff]
        %v1296 = vld [vmem:[%s249 + $0x1bd0] sm:$0xff]
        %v1297 = vld [vmem:[%s249 + $0x1bd8] sm:$0xff]
        %v1298 = vld [vmem:[%s249 + $0x1be0] sm:$0xff]
        %v1299 = vld [vmem:[%s249 + $0x1be8] sm:$0xff]
        %v1300 = vld [vmem:[%s249 + $0x1bf0] sm:$0xff]
        %v1301 = vld [vmem:[%s249 + $0x1bf8] sm:$0xff]
        %v1302 = vld [vmem:[%s249 + $0x1c00] sm:$0xff]
        %v1303 = vld [vmem:[%s249 + $0x1c08] sm:$0xff]
        %v1304 = vld [vmem:[%s249 + $0x1c10] sm:$0xff]
        %v1305 = vld [vmem:[%s249 + $0x1c18] sm:$0xff]
        %v1306 = vld [vmem:[%s249 + $0x1c20] sm:$0xff]
        %v1307 = vld [vmem:[%s249 + $0x1c28] sm:$0xff]
        %v1308 = vld [vmem:[%s249 + $0x1c30] sm:$0xff]
        %v1309 = vld [vmem:[%s249 + $0x1c38] sm:$0xff]
        %v1310 = vld [vmem:[%s249 + $0x1c40] sm:$0xff]
        %v1311 = vld [vmem:[%s249 + $0x1c48] sm:$0xff]
        %v1312 = vld [vmem:[%s249 + $0x1c50] sm:$0xff]
        %v1313 = vld [vmem:[%s249 + $0x1c58] sm:$0xff]
        %v1314 = vld [vmem:[%s249 + $0x1c60] sm:$0xff]
        %v1315 = vld [vmem:[%s249 + $0x1c68] sm:$0xff]
        %v1316 = vld [vmem:[%s249 + $0x1c70] sm:$0xff]
        %v1317 = vld [vmem:[%s249 + $0x1c78] sm:$0xff]
        %v1318 = vld [vmem:[%s249 + $0x1c80] sm:$0xff]
        %v1319 = vld [vmem:[%s249 + $0x1c88] sm:$0xff]
        %v1320 = vld [vmem:[%s249 + $0x1c90] sm:$0xff]
        %v1321 = vld [vmem:[%s249 + $0x1c98] sm:$0xff]
        %v1322 = vld [vmem:[%s249 + $0x1ca0] sm:$0xff]
        %v1323 = vld [vmem:[%s249 + $0x1ca8] sm:$0xff]
        %v1324 = vld [vmem:[%s249 + $0x1cb0] sm:$0xff]
        %v1325 = vld [vmem:[%s249 + $0x1cb8] sm:$0xff]
        %v1326 = vld [vmem:[%s249 + $0x1cc0] sm:$0xff]
        %v1327 = vld [vmem:[%s249 + $0x1cc8] sm:$0xff]
        %v1328 = vld [vmem:[%s249 + $0x1cd0] sm:$0xff]
        %v1329 = vld [vmem:[%s249 + $0x1cd8] sm:$0xff]
        %v1330 = vld [vmem:[%s249 + $0x1ce0] sm:$0xff]
        %v1331 = vld [vmem:[%s249 + $0x1ce8] sm:$0xff]
        %v1332 = vld [vmem:[%s249 + $0x1cf0] sm:$0xff]
        %v1333 = vld [vmem:[%s249 + $0x1cf8] sm:$0xff]
        %v1334 = vld [vmem:[%s249 + $0x1d00] sm:$0xff]
        %v1335 = vld [vmem:[%s249 + $0x1d08] sm:$0xff]
        %v1336 = vld [vmem:[%s249 + $0x1d10] sm:$0xff]
        %v1337 = vld [vmem:[%s249 + $0x1d18] sm:$0xff]
        %v1338 = vld [vmem:[%s249 + $0x1d20] sm:$0xff]
        %v1339 = vld [vmem:[%s249 + $0x1d28] sm:$0xff]
        %v1340 = vld [vmem:[%s249 + $0x1d30] sm:$0xff]
        %v1341 = vld [vmem:[%s249 + $0x1d38] sm:$0xff]
        %v1342 = vld [vmem:[%s249 + $0x1d40] sm:$0xff]
        %v1343 = vld [vmem:[%s249 + $0x1d48] sm:$0xff]
        %v1344 = vld [vmem:[%s249 + $0x1d50] sm:$0xff]
        %v1345 = vld [vmem:[%s249 + $0x1d58] sm:$0xff]
        %v1346 = vld [vmem:[%s249 + $0x1d60] sm:$0xff]
        %v1347 = vld [vmem:[%s249 + $0x1d68] sm:$0xff]
        %v1348 = vld [vmem:[%s249 + $0x1d70] sm:$0xff]
        %v1349 = vld [vmem:[%s249 + $0x1d78] sm:$0xff]
        %v1350 = vld [vmem:[%s249 + $0x1d80] sm:$0xff]
        %v1351 = vld [vmem:[%s249 + $0x1d88] sm:$0xff]
        %v1352 = vld [vmem:[%s249 + $0x1d90] sm:$0xff]
        %v1353 = vld [vmem:[%s249 + $0x1d98] sm:$0xff]
        %v1354 = vld [vmem:[%s249 + $0x1da0] sm:$0xff]
        %v1355 = vld [vmem:[%s249 + $0x1da8] sm:$0xff]
        %v1356 = vld [vmem:[%s249 + $0x1db0] sm:$0xff]
        %v1357 = vld [vmem:[%s249 + $0x1db8] sm:$0xff]
        %v1358 = vld [vmem:[%s249 + $0x1dc0] sm:$0xff]
        %v1359 = vld [vmem:[%s249 + $0x1dc8] sm:$0xff]
        %v1360 = vld [vmem:[%s249 + $0x1dd0] sm:$0xff]
        %v1361 = vld [vmem:[%s249 + $0x1dd8] sm:$0xff]
        %v1362 = vld [vmem:[%s249 + $0x1de0] sm:$0xff]
        %v1363 = vld [vmem:[%s249 + $0x1de8] sm:$0xff]
        %v1364 = vld [vmem:[%s249 + $0x1df0] sm:$0xff]
        %v1365 = vld [vmem:[%s249 + $0x1df8] sm:$0xff]
        %v1366 = vld [vmem:[%s249 + $0x1e00] sm:$0xff]
        %v1367 = vld [vmem:[%s249 + $0x1e08] sm:$0xff]
        %v1368 = vld [vmem:[%s249 + $0x1e10] sm:$0xff]
        %v1369 = vld [vmem:[%s249 + $0x1e18] sm:$0xff]
        %v1370 = vld [vmem:[%s249 + $0x1e20] sm:$0xff]
        %v1371 = vld [vmem:[%s249 + $0x1e28] sm:$0xff]
        %v1372 = vld [vmem:[%s249 + $0x1e30] sm:$0xff]
        %v1373 = vld [vmem:[%s249 + $0x1e38] sm:$0xff]
        %v1374 = vld [vmem:[%s249 + $0x1e40] sm:$0xff]
        %v1375 = vld [vmem:[%s249 + $0x1e48] sm:$0xff]
        %v1376 = vld [vmem:[%s249 + $0x1e50] sm:$0xff]
        %v1377 = vld [vmem:[%s249 + $0x1e58] sm:$0xff]
        %v1378 = vld [vmem:[%s249 + $0x1e60] sm:$0xff]
        %v1379 = vld [vmem:[%s249 + $0x1e68] sm:$0xff]
        %v1380 = vld [vmem:[%s249 + $0x1e70] sm:$0xff]
        %v1381 = vld [vmem:[%s249 + $0x1e78] sm:$0xff]
        %v1382 = vld [vmem:[%s249 + $0x1e80] sm:$0xff]
        %v1383 = vld [vmem:[%s249 + $0x1e88] sm:$0xff]
        %v1384 = vld [vmem:[%s249 + $0x1e90] sm:$0xff]
        %v1385 = vld [vmem:[%s249 + $0x1e98] sm:$0xff]
        %v1386 = vld [vmem:[%s249 + $0x1ea0] sm:$0xff]
        %v1387 = vld [vmem:[%s249 + $0x1ea8] sm:$0xff]
        %v1388 = vld [vmem:[%s249 + $0x1eb0] sm:$0xff]
        %v1389 = vld [vmem:[%s249 + $0x1eb8] sm:$0xff]
        %v1390 = vld [vmem:[%s249 + $0x1ec0] sm:$0xff]
        %v1391 = vld [vmem:[%s249 + $0x1ec8] sm:$0xff]
        %v1392 = vld [vmem:[%s249 + $0x1ed0] sm:$0xff]
        %v1393 = vld [vmem:[%s249 + $0x1ed8] sm:$0xff]
        %v1394 = vld [vmem:[%s249 + $0x1ee0] sm:$0xff]
        %v1395 = vld [vmem:[%s249 + $0x1ee8] sm:$0xff]
        %v1396 = vld [vmem:[%s249 + $0x1ef0] sm:$0xff]
        %v1397 = vld [vmem:[%s249 + $0x1ef8] sm:$0xff]
        %v1398 = vld [vmem:[%s249 + $0x1f00] sm:$0xff]
        %v1399 = vld [vmem:[%s249 + $0x1f08] sm:$0xff]
        %v1400 = vld [vmem:[%s249 + $0x1f10] sm:$0xff]
        %v1401 = vld [vmem:[%s249 + $0x1f18] sm:$0xff]
        %v1402 = vld [vmem:[%s249 + $0x1f20] sm:$0xff]
        %v1403 = vld [vmem:[%s249 + $0x1f28] sm:$0xff]
        %v1404 = vld [vmem:[%s249 + $0x1f30] sm:$0xff]
        %v1405 = vld [vmem:[%s249 + $0x1f38] sm:$0xff]
        %v1406 = vld [vmem:[%s258] sm:$0xff]
        %v2407 = vunpack.c.l.b16 %v406
        %v2408 = vunpack.c.h.b16 %v406
        %v2409 = vunpack.c.l.b16 %v407
        %v2410 = vunpack.c.h.b16 %v407
        %v2411 = vunpack.c.l.b16 %v408
        %v2412 = vunpack.c.h.b16 %v408
        %v2413 = vunpack.c.l.b16 %v409
        %v2414 = vunpack.c.h.b16 %v409
        %v2415 = vunpack.c.l.b16 %v410
        %v2416 = vunpack.c.h.b16 %v410
        %v2417 = vunpack.c.l.b16 %v411
        %v2418 = vunpack.c.h.b16 %v411
        %v2419 = vunpack.c.l.b16 %v412
        %v2420 = vunpack.c.h.b16 %v412
        %v2421 = vunpack.c.l.b16 %v413
        %v2422 = vunpack.c.h.b16 %v413
        %v2423 = vunpack.c.l.b16 %v414
        %v2424 = vunpack.c.h.b16 %v414
        %v2425 = vunpack.c.l.b16 %v415
        %v2426 = vunpack.c.h.b16 %v415
        %v2427 = vunpack.c.l.b16 %v416
        %v2428 = vunpack.c.h.b16 %v416
        %v2429 = vunpack.c.l.b16 %v417
        %v2430 = vunpack.c.h.b16 %v417
        %v2431 = vunpack.c.l.b16 %v418
        %v2432 = vunpack.c.h.b16 %v418
        %v2433 = vunpack.c.l.b16 %v419
        %v2434 = vunpack.c.h.b16 %v419
        %v2435 = vunpack.c.l.b16 %v420
        %v2436 = vunpack.c.h.b16 %v420
        %v2437 = vunpack.c.l.b16 %v421
        %v2438 = vunpack.c.h.b16 %v421
        %v2439 = vunpack.c.l.b16 %v422
        %v2440 = vunpack.c.h.b16 %v422
        %v2441 = vunpack.c.l.b16 %v423
        %v2442 = vunpack.c.h.b16 %v423
        %v2443 = vunpack.c.l.b16 %v424
        %v2444 = vunpack.c.h.b16 %v424
        %v2445 = vunpack.c.l.b16 %v425
        %v2446 = vunpack.c.h.b16 %v425
        %v2447 = vunpack.c.l.b16 %v426
        %v2448 = vunpack.c.h.b16 %v426
        %v2449 = vunpack.c.l.b16 %v427
        %v2450 = vunpack.c.h.b16 %v427
        %v2451 = vunpack.c.l.b16 %v428
        %v2452 = vunpack.c.h.b16 %v428
        %v2453 = vunpack.c.l.b16 %v429
        %v2454 = vunpack.c.h.b16 %v429
        %v2455 = vunpack.c.l.b16 %v430
        %v2456 = vunpack.c.h.b16 %v430
        %v2457 = vunpack.c.l.b16 %v431
        %v2458 = vunpack.c.h.b16 %v431
        %v2459 = vunpack.c.l.b16 %v432
        %v2460 = vunpack.c.h.b16 %v432
        %v2461 = vunpack.c.l.b16 %v433
        %v2462 = vunpack.c.h.b16 %v433
        %v2463 = vunpack.c.l.b16 %v434
        %v2464 = vunpack.c.h.b16 %v434
        %v2465 = vunpack.c.l.b16 %v435
        %v2466 = vunpack.c.h.b16 %v435
        %v2467 = vunpack.c.l.b16 %v436
        %v2468 = vunpack.c.h.b16 %v436
        %v2469 = vunpack.c.l.b16 %v437
        %v2470 = vunpack.c.h.b16 %v437
        %v2471 = vunpack.c.l.b16 %v438
        %v2472 = vunpack.c.h.b16 %v438
        %v2473 = vunpack.c.l.b16 %v439
        %v2474 = vunpack.c.h.b16 %v439
        %v2475 = vunpack.c.l.b16 %v440
        %v2476 = vunpack.c.h.b16 %v440
        %v2477 = vunpack.c.l.b16 %v441
        %v2478 = vunpack.c.h.b16 %v441
        %v2479 = vunpack.c.l.b16 %v442
        %v2480 = vunpack.c.h.b16 %v442
        %v2481 = vunpack.c.l.b16 %v443
        %v2482 = vunpack.c.h.b16 %v443
        %v2483 = vunpack.c.l.b16 %v444
        %v2484 = vunpack.c.h.b16 %v444
        %v2485 = vunpack.c.l.b16 %v445
        %v2486 = vunpack.c.h.b16 %v445
        %v2487 = vunpack.c.l.b16 %v446
        %v2488 = vunpack.c.h.b16 %v446
        %v2489 = vunpack.c.l.b16 %v447
        %v2490 = vunpack.c.h.b16 %v447
        %v2491 = vunpack.c.l.b16 %v448
        %v2492 = vunpack.c.h.b16 %v448
        %v2493 = vunpack.c.l.b16 %v449
        %v2494 = vunpack.c.h.b16 %v449
        %v2495 = vunpack.c.l.b16 %v450
        %v2496 = vunpack.c.h.b16 %v450
        %v2497 = vunpack.c.l.b16 %v451
        %v2498 = vunpack.c.h.b16 %v451
        %v2499 = vunpack.c.l.b16 %v452
        %v2500 = vunpack.c.h.b16 %v452
        %v2501 = vunpack.c.l.b16 %v453
        %v2502 = vunpack.c.h.b16 %v453
        %v2503 = vunpack.c.l.b16 %v454
        %v2504 = vunpack.c.h.b16 %v454
        %v2505 = vunpack.c.l.b16 %v455
        %v2506 = vunpack.c.h.b16 %v455
        %v2507 = vunpack.c.l.b16 %v456
        %v2508 = vunpack.c.h.b16 %v456
        %v2509 = vunpack.c.l.b16 %v457
        %v2510 = vunpack.c.h.b16 %v457
        %v2511 = vunpack.c.l.b16 %v458
        %v2512 = vunpack.c.h.b16 %v458
        %v2513 = vunpack.c.l.b16 %v459
        %v2514 = vunpack.c.h.b16 %v459
        %v2515 = vunpack.c.l.b16 %v460
        %v2516 = vunpack.c.h.b16 %v460
        %v2517 = vunpack.c.l.b16 %v461
        %v2518 = vunpack.c.h.b16 %v461
        %v2519 = vunpack.c.l.b16 %v462
        %v2520 = vunpack.c.h.b16 %v462
        %v2521 = vunpack.c.l.b16 %v463
        %v2522 = vunpack.c.h.b16 %v463
        %v2523 = vunpack.c.l.b16 %v464
        %v2524 = vunpack.c.h.b16 %v464
        %v2525 = vunpack.c.l.b16 %v465
        %v2526 = vunpack.c.h.b16 %v465
        %v2527 = vunpack.c.l.b16 %v466
        %v2528 = vunpack.c.h.b16 %v466
        %v2529 = vunpack.c.l.b16 %v467
        %v2530 = vunpack.c.h.b16 %v467
        %v2531 = vunpack.c.l.b16 %v468
        %v2532 = vunpack.c.h.b16 %v468
        %v2533 = vunpack.c.l.b16 %v469
        %v2534 = vunpack.c.h.b16 %v469
        %v2535 = vunpack.c.l.b16 %v470
        %v2536 = vunpack.c.h.b16 %v470
        %v2537 = vunpack.c.l.b16 %v471
        %v2538 = vunpack.c.h.b16 %v471
        %v2539 = vunpack.c.l.b16 %v472
        %v2540 = vunpack.c.h.b16 %v472
        %v2541 = vunpack.c.l.b16 %v473
        %v2542 = vunpack.c.h.b16 %v473
        %v2543 = vunpack.c.l.b16 %v474
        %v2544 = vunpack.c.h.b16 %v474
        %v2545 = vunpack.c.l.b16 %v475
        %v2546 = vunpack.c.h.b16 %v475
        %v2547 = vunpack.c.l.b16 %v476
        %v2548 = vunpack.c.h.b16 %v476
        %v2549 = vunpack.c.l.b16 %v477
        %v2550 = vunpack.c.h.b16 %v477
        %v2551 = vunpack.c.l.b16 %v478
        %v2552 = vunpack.c.h.b16 %v478
        %v2553 = vunpack.c.l.b16 %v479
        %v2554 = vunpack.c.h.b16 %v479
        %v2555 = vunpack.c.l.b16 %v480
        %v2556 = vunpack.c.h.b16 %v480
        %v2557 = vunpack.c.l.b16 %v481
        %v2558 = vunpack.c.h.b16 %v481
        %v2559 = vunpack.c.l.b16 %v482
        %v2560 = vunpack.c.h.b16 %v482
        %v2561 = vunpack.c.l.b16 %v483
        %v2562 = vunpack.c.h.b16 %v483
        %v2563 = vunpack.c.l.b16 %v484
        %v2564 = vunpack.c.h.b16 %v484
        %v2565 = vunpack.c.l.b16 %v485
        %v2566 = vunpack.c.h.b16 %v485
        %v2567 = vunpack.c.l.b16 %v486
        %v2568 = vunpack.c.h.b16 %v486
        %v2569 = vunpack.c.l.b16 %v487
        %v2570 = vunpack.c.h.b16 %v487
        %v2571 = vunpack.c.l.b16 %v488
        %v2572 = vunpack.c.h.b16 %v488
        %v2573 = vunpack.c.l.b16 %v489
        %v2574 = vunpack.c.h.b16 %v489
        %v2575 = vunpack.c.l.b16 %v490
        %v2576 = vunpack.c.h.b16 %v490
        %v2577 = vunpack.c.l.b16 %v491
        %v2578 = vunpack.c.h.b16 %v491
        %v2579 = vunpack.c.l.b16 %v492
        %v2580 = vunpack.c.h.b16 %v492
        %v2581 = vunpack.c.l.b16 %v493
        %v2582 = vunpack.c.h.b16 %v493
        %v2583 = vunpack.c.l.b16 %v494
        %v2584 = vunpack.c.h.b16 %v494
        %v2585 = vunpack.c.l.b16 %v495
        %v2586 = vunpack.c.h.b16 %v495
        %v2587 = vunpack.c.l.b16 %v496
        %v2588 = vunpack.c.h.b16 %v496
        %v2589 = vunpack.c.l.b16 %v497
        %v2590 = vunpack.c.h.b16 %v497
        %v2591 = vunpack.c.l.b16 %v498
        %v2592 = vunpack.c.h.b16 %v498
        %v2593 = vunpack.c.l.b16 %v499
        %v2594 = vunpack.c.h.b16 %v499
        %v2595 = vunpack.c.l.b16 %v500
        %v2596 = vunpack.c.h.b16 %v500
        %v2597 = vunpack.c.l.b16 %v501
        %v2598 = vunpack.c.h.b16 %v501
        %v2599 = vunpack.c.l.b16 %v502
        %v2600 = vunpack.c.h.b16 %v502
        %v2601 = vunpack.c.l.b16 %v503
        %v2602 = vunpack.c.h.b16 %v503
        %v2603 = vunpack.c.l.b16 %v504
        %v2604 = vunpack.c.h.b16 %v504
        %v2605 = vunpack.c.l.b16 %v505
        %v2606 = vunpack.c.h.b16 %v505
        %v2607 = vunpack.c.l.b16 %v506
        %v2608 = vunpack.c.h.b16 %v506
        %v2609 = vunpack.c.l.b16 %v507
        %v2610 = vunpack.c.h.b16 %v507
        %v2611 = vunpack.c.l.b16 %v508
        %v2612 = vunpack.c.h.b16 %v508
        %v2613 = vunpack.c.l.b16 %v509
        %v2614 = vunpack.c.h.b16 %v509
        %v2615 = vunpack.c.l.b16 %v510
        %v2616 = vunpack.c.h.b16 %v510
        %v2617 = vunpack.c.l.b16 %v511
        %v2618 = vunpack.c.h.b16 %v511
        %v2619 = vunpack.c.l.b16 %v512
        %v2620 = vunpack.c.h.b16 %v512
        %v2621 = vunpack.c.l.b16 %v513
        %v2622 = vunpack.c.h.b16 %v513
        %v2623 = vunpack.c.l.b16 %v514
        %v2624 = vunpack.c.h.b16 %v514
        %v2625 = vunpack.c.l.b16 %v515
        %v2626 = vunpack.c.h.b16 %v515
        %v2627 = vunpack.c.l.b16 %v516
        %v2628 = vunpack.c.h.b16 %v516
        %v2629 = vunpack.c.l.b16 %v517
        %v2630 = vunpack.c.h.b16 %v517
        %v2631 = vunpack.c.l.b16 %v518
        %v2632 = vunpack.c.h.b16 %v518
        %v2633 = vunpack.c.l.b16 %v519
        %v2634 = vunpack.c.h.b16 %v519
        %v2635 = vunpack.c.l.b16 %v520
        %v2636 = vunpack.c.h.b16 %v520
        %v2637 = vunpack.c.l.b16 %v521
        %v2638 = vunpack.c.h.b16 %v521
        %v2639 = vunpack.c.l.b16 %v522
        %v2640 = vunpack.c.h.b16 %v522
        %v2641 = vunpack.c.l.b16 %v523
        %v2642 = vunpack.c.h.b16 %v523
        %v2643 = vunpack.c.l.b16 %v524
        %v2644 = vunpack.c.h.b16 %v524
        %v2645 = vunpack.c.l.b16 %v525
        %v2646 = vunpack.c.h.b16 %v525
        %v2647 = vunpack.c.l.b16 %v526
        %v2648 = vunpack.c.h.b16 %v526
        %v2649 = vunpack.c.l.b16 %v527
        %v2650 = vunpack.c.h.b16 %v527
        %v2651 = vunpack.c.l.b16 %v528
        %v2652 = vunpack.c.h.b16 %v528
        %v2653 = vunpack.c.l.b16 %v529
        %v2654 = vunpack.c.h.b16 %v529
        %v2655 = vunpack.c.l.b16 %v530
        %v2656 = vunpack.c.h.b16 %v530
        %v2657 = vunpack.c.l.b16 %v531
        %v2658 = vunpack.c.h.b16 %v531
        %v2659 = vunpack.c.l.b16 %v532
        %v2660 = vunpack.c.h.b16 %v532
        %v2661 = vunpack.c.l.b16 %v533
        %v2662 = vunpack.c.h.b16 %v533
        %v2663 = vunpack.c.l.b16 %v534
        %v2664 = vunpack.c.h.b16 %v534
        %v2665 = vunpack.c.l.b16 %v535
        %v2666 = vunpack.c.h.b16 %v535
        %v2667 = vunpack.c.l.b16 %v536
        %v2668 = vunpack.c.h.b16 %v536
        %v2669 = vunpack.c.l.b16 %v537
        %v2670 = vunpack.c.h.b16 %v537
        %v2671 = vunpack.c.l.b16 %v538
        %v2672 = vunpack.c.h.b16 %v538
        %v2673 = vunpack.c.l.b16 %v539
        %v2674 = vunpack.c.h.b16 %v539
        %v2675 = vunpack.c.l.b16 %v540
        %v2676 = vunpack.c.h.b16 %v540
        %v2677 = vunpack.c.l.b16 %v541
        %v2678 = vunpack.c.h.b16 %v541
        %v2679 = vunpack.c.l.b16 %v542
        %v2680 = vunpack.c.h.b16 %v542
        %v2681 = vunpack.c.l.b16 %v543
        %v2682 = vunpack.c.h.b16 %v543
        %v2683 = vunpack.c.l.b16 %v544
        %v2684 = vunpack.c.h.b16 %v544
        %v2685 = vunpack.c.l.b16 %v545
        %v2686 = vunpack.c.h.b16 %v545
        %v2687 = vunpack.c.l.b16 %v546
        %v2688 = vunpack.c.h.b16 %v546
        %v2689 = vunpack.c.l.b16 %v547
        %v2690 = vunpack.c.h.b16 %v547
        %v2691 = vunpack.c.l.b16 %v548
        %v2692 = vunpack.c.h.b16 %v548
        %v2693 = vunpack.c.l.b16 %v549
        %v2694 = vunpack.c.h.b16 %v549
        %v2695 = vunpack.c.l.b16 %v550
        %v2696 = vunpack.c.h.b16 %v550
        %v2697 = vunpack.c.l.b16 %v551
        %v2698 = vunpack.c.h.b16 %v551
        %v2699 = vunpack.c.l.b16 %v552
        %v2700 = vunpack.c.h.b16 %v552
        %v2701 = vunpack.c.l.b16 %v553
        %v2702 = vunpack.c.h.b16 %v553
        %v2703 = vunpack.c.l.b16 %v554
        %v2704 = vunpack.c.h.b16 %v554
        %v2705 = vunpack.c.l.b16 %v555
        %v2706 = vunpack.c.h.b16 %v555
        %v2707 = vunpack.c.l.b16 %v556
        %v2708 = vunpack.c.h.b16 %v556
        %v2709 = vunpack.c.l.b16 %v557
        %v2710 = vunpack.c.h.b16 %v557
        %v2711 = vunpack.c.l.b16 %v558
        %v2712 = vunpack.c.h.b16 %v558
        %v2713 = vunpack.c.l.b16 %v559
        %v2714 = vunpack.c.h.b16 %v559
        %v2715 = vunpack.c.l.b16 %v560
        %v2716 = vunpack.c.h.b16 %v560
        %v2717 = vunpack.c.l.b16 %v561
        %v2718 = vunpack.c.h.b16 %v561
        %v2719 = vunpack.c.l.b16 %v562
        %v2720 = vunpack.c.h.b16 %v562
        %v2721 = vunpack.c.l.b16 %v563
        %v2722 = vunpack.c.h.b16 %v563
        %v2723 = vunpack.c.l.b16 %v564
        %v2724 = vunpack.c.h.b16 %v564
        %v2725 = vunpack.c.l.b16 %v565
        %v2726 = vunpack.c.h.b16 %v565
        %v2727 = vunpack.c.l.b16 %v566
        %v2728 = vunpack.c.h.b16 %v566
        %v2729 = vunpack.c.l.b16 %v567
        %v2730 = vunpack.c.h.b16 %v567
        %v2731 = vunpack.c.l.b16 %v568
        %v2732 = vunpack.c.h.b16 %v568
        %v2733 = vunpack.c.l.b16 %v569
        %v2734 = vunpack.c.h.b16 %v569
        %v2735 = vunpack.c.l.b16 %v570
        %v2736 = vunpack.c.h.b16 %v570
        %v2737 = vunpack.c.l.b16 %v571
        %v2738 = vunpack.c.h.b16 %v571
        %v2739 = vunpack.c.l.b16 %v572
        %v2740 = vunpack.c.h.b16 %v572
        %v2741 = vunpack.c.l.b16 %v573
        %v2742 = vunpack.c.h.b16 %v573
        %v2743 = vunpack.c.l.b16 %v574
        %v2744 = vunpack.c.h.b16 %v574
        %v2745 = vunpack.c.l.b16 %v575
        %v2746 = vunpack.c.h.b16 %v575
        %v2747 = vunpack.c.l.b16 %v576
        %v2748 = vunpack.c.h.b16 %v576
        %v2749 = vunpack.c.l.b16 %v577
        %v2750 = vunpack.c.h.b16 %v577
        %v2751 = vunpack.c.l.b16 %v578
        %v2752 = vunpack.c.h.b16 %v578
        %v2753 = vunpack.c.l.b16 %v579
        %v2754 = vunpack.c.h.b16 %v579
        %v2755 = vunpack.c.l.b16 %v580
        %v2756 = vunpack.c.h.b16 %v580
        %v2757 = vunpack.c.l.b16 %v581
        %v2758 = vunpack.c.h.b16 %v581
        %v2759 = vunpack.c.l.b16 %v582
        %v2760 = vunpack.c.h.b16 %v582
        %v2761 = vunpack.c.l.b16 %v583
        %v2762 = vunpack.c.h.b16 %v583
        %v2763 = vunpack.c.l.b16 %v584
        %v2764 = vunpack.c.h.b16 %v584
        %v2765 = vunpack.c.l.b16 %v585
        %v2766 = vunpack.c.h.b16 %v585
        %v2767 = vunpack.c.l.b16 %v586
        %v2768 = vunpack.c.h.b16 %v586
        %v2769 = vunpack.c.l.b16 %v587
        %v2770 = vunpack.c.h.b16 %v587
        %v2771 = vunpack.c.l.b16 %v588
        %v2772 = vunpack.c.h.b16 %v588
        %v2773 = vunpack.c.l.b16 %v589
        %v2774 = vunpack.c.h.b16 %v589
        %v2775 = vunpack.c.l.b16 %v590
        %v2776 = vunpack.c.h.b16 %v590
        %v2777 = vunpack.c.l.b16 %v591
        %v2778 = vunpack.c.h.b16 %v591
        %v2779 = vunpack.c.l.b16 %v592
        %v2780 = vunpack.c.h.b16 %v592
        %v2781 = vunpack.c.l.b16 %v593
        %v2782 = vunpack.c.h.b16 %v593
        %v2783 = vunpack.c.l.b16 %v594
        %v2784 = vunpack.c.h.b16 %v594
        %v2785 = vunpack.c.l.b16 %v595
        %v2786 = vunpack.c.h.b16 %v595
        %v2787 = vunpack.c.l.b16 %v596
        %v2788 = vunpack.c.h.b16 %v596
        %v2789 = vunpack.c.l.b16 %v597
        %v2790 = vunpack.c.h.b16 %v597
        %v2791 = vunpack.c.l.b16 %v598
        %v2792 = vunpack.c.h.b16 %v598
        %v2793 = vunpack.c.l.b16 %v599
        %v2794 = vunpack.c.h.b16 %v599
        %v2795 = vunpack.c.l.b16 %v600
        %v2796 = vunpack.c.h.b16 %v600
        %v2797 = vunpack.c.l.b16 %v601
        %v2798 = vunpack.c.h.b16 %v601
        %v2799 = vunpack.c.l.b16 %v602
        %v2800 = vunpack.c.h.b16 %v602
        %v2801 = vunpack.c.l.b16 %v603
        %v2802 = vunpack.c.h.b16 %v603
        %v2803 = vunpack.c.l.b16 %v604
        %v2804 = vunpack.c.h.b16 %v604
        %v2805 = vunpack.c.l.b16 %v605
        %v2806 = vunpack.c.h.b16 %v605
        %v2807 = vunpack.c.l.b16 %v606
        %v2808 = vunpack.c.h.b16 %v606
        %v2809 = vunpack.c.l.b16 %v607
        %v2810 = vunpack.c.h.b16 %v607
        %v2811 = vunpack.c.l.b16 %v608
        %v2812 = vunpack.c.h.b16 %v608
        %v2813 = vunpack.c.l.b16 %v609
        %v2814 = vunpack.c.h.b16 %v609
        %v2815 = vunpack.c.l.b16 %v610
        %v2816 = vunpack.c.h.b16 %v610
        %v2817 = vunpack.c.l.b16 %v611
        %v2818 = vunpack.c.h.b16 %v611
        %v2819 = vunpack.c.l.b16 %v612
        %v2820 = vunpack.c.h.b16 %v612
        %v2821 = vunpack.c.l.b16 %v613
        %v2822 = vunpack.c.h.b16 %v613
        %v2823 = vunpack.c.l.b16 %v614
        %v2824 = vunpack.c.h.b16 %v614
        %v2825 = vunpack.c.l.b16 %v615
        %v2826 = vunpack.c.h.b16 %v615
        %v2827 = vunpack.c.l.b16 %v616
        %v2828 = vunpack.c.h.b16 %v616
        %v2829 = vunpack.c.l.b16 %v617
        %v2830 = vunpack.c.h.b16 %v617
        %v2831 = vunpack.c.l.b16 %v618
        %v2832 = vunpack.c.h.b16 %v618
        %v2833 = vunpack.c.l.b16 %v619
        %v2834 = vunpack.c.h.b16 %v619
        %v2835 = vunpack.c.l.b16 %v620
        %v2836 = vunpack.c.h.b16 %v620
        %v2837 = vunpack.c.l.b16 %v621
        %v2838 = vunpack.c.h.b16 %v621
        %v2839 = vunpack.c.l.b16 %v622
        %v2840 = vunpack.c.h.b16 %v622
        %v2841 = vunpack.c.l.b16 %v623
        %v2842 = vunpack.c.h.b16 %v623
        %v2843 = vunpack.c.l.b16 %v624
        %v2844 = vunpack.c.h.b16 %v624
        %v2845 = vunpack.c.l.b16 %v625
        %v2846 = vunpack.c.h.b16 %v625
        %v2847 = vunpack.c.l.b16 %v626
        %v2848 = vunpack.c.h.b16 %v626
        %v2849 = vunpack.c.l.b16 %v627
        %v2850 = vunpack.c.h.b16 %v627
        %v2851 = vunpack.c.l.b16 %v628
        %v2852 = vunpack.c.h.b16 %v628
        %v2853 = vunpack.c.l.b16 %v629
        %v2854 = vunpack.c.h.b16 %v629
        %v2855 = vunpack.c.l.b16 %v630
        %v2856 = vunpack.c.h.b16 %v630
        %v2857 = vunpack.c.l.b16 %v631
        %v2858 = vunpack.c.h.b16 %v631
        %v2859 = vunpack.c.l.b16 %v632
        %v2860 = vunpack.c.h.b16 %v632
        %v2861 = vunpack.c.l.b16 %v633
        %v2862 = vunpack.c.h.b16 %v633
        %v2863 = vunpack.c.l.b16 %v634
        %v2864 = vunpack.c.h.b16 %v634
        %v2865 = vunpack.c.l.b16 %v635
        %v2866 = vunpack.c.h.b16 %v635
        %v2867 = vunpack.c.l.b16 %v636
        %v2868 = vunpack.c.h.b16 %v636
        %v2869 = vunpack.c.l.b16 %v637
        %v2870 = vunpack.c.h.b16 %v637
        %v2871 = vunpack.c.l.b16 %v638
        %v2872 = vunpack.c.h.b16 %v638
        %v2873 = vunpack.c.l.b16 %v639
        %v2874 = vunpack.c.h.b16 %v639
        %v2875 = vunpack.c.l.b16 %v640
        %v2876 = vunpack.c.h.b16 %v640
        %v2877 = vunpack.c.l.b16 %v641
        %v2878 = vunpack.c.h.b16 %v641
        %v2879 = vunpack.c.l.b16 %v642
        %v2880 = vunpack.c.h.b16 %v642
        %v2881 = vunpack.c.l.b16 %v643
        %v2882 = vunpack.c.h.b16 %v643
        %v2883 = vunpack.c.l.b16 %v644
        %v2884 = vunpack.c.h.b16 %v644
        %v2885 = vunpack.c.l.b16 %v645
        %v2886 = vunpack.c.h.b16 %v645
        %v2887 = vunpack.c.l.b16 %v646
        %v2888 = vunpack.c.h.b16 %v646
        %v2889 = vunpack.c.l.b16 %v647
        %v2890 = vunpack.c.h.b16 %v647
        %v2891 = vunpack.c.l.b16 %v648
        %v2892 = vunpack.c.h.b16 %v648
        %v2893 = vunpack.c.l.b16 %v649
        %v2894 = vunpack.c.h.b16 %v649
        %v2895 = vunpack.c.l.b16 %v650
        %v2896 = vunpack.c.h.b16 %v650
        %v2897 = vunpack.c.l.b16 %v651
        %v2898 = vunpack.c.h.b16 %v651
        %v2899 = vunpack.c.l.b16 %v652
        %v2900 = vunpack.c.h.b16 %v652
        %v2901 = vunpack.c.l.b16 %v653
        %v2902 = vunpack.c.h.b16 %v653
        %v2903 = vunpack.c.l.b16 %v654
        %v2904 = vunpack.c.h.b16 %v654
        %v2905 = vunpack.c.l.b16 %v655
        %v2906 = vunpack.c.h.b16 %v655
        %v2907 = vunpack.c.l.b16 %v656
        %v2908 = vunpack.c.h.b16 %v656
        %v2909 = vunpack.c.l.b16 %v657
        %v2910 = vunpack.c.h.b16 %v657
        %v2911 = vunpack.c.l.b16 %v658
        %v2912 = vunpack.c.h.b16 %v658
        %v2913 = vunpack.c.l.b16 %v659
        %v2914 = vunpack.c.h.b16 %v659
        %v2915 = vunpack.c.l.b16 %v660
        %v2916 = vunpack.c.h.b16 %v660
        %v2917 = vunpack.c.l.b16 %v661
        %v2918 = vunpack.c.h.b16 %v661
        %v2919 = vunpack.c.l.b16 %v662
        %v2920 = vunpack.c.h.b16 %v662
        %v2921 = vunpack.c.l.b16 %v663
        %v2922 = vunpack.c.h.b16 %v663
        %v2923 = vunpack.c.l.b16 %v664
        %v2924 = vunpack.c.h.b16 %v664
        %v2925 = vunpack.c.l.b16 %v665
        %v2926 = vunpack.c.h.b16 %v665
        %v2927 = vunpack.c.l.b16 %v666
        %v2928 = vunpack.c.h.b16 %v666
        %v2929 = vunpack.c.l.b16 %v667
        %v2930 = vunpack.c.h.b16 %v667
        %v2931 = vunpack.c.l.b16 %v668
        %v2932 = vunpack.c.h.b16 %v668
        %v2933 = vunpack.c.l.b16 %v669
        %v2934 = vunpack.c.h.b16 %v669
        %v2935 = vunpack.c.l.b16 %v670
        %v2936 = vunpack.c.h.b16 %v670
        %v2937 = vunpack.c.l.b16 %v671
        %v2938 = vunpack.c.h.b16 %v671
        %v2939 = vunpack.c.l.b16 %v672
        %v2940 = vunpack.c.h.b16 %v672
        %v2941 = vunpack.c.l.b16 %v673
        %v2942 = vunpack.c.h.b16 %v673
        %v2943 = vunpack.c.l.b16 %v674
        %v2944 = vunpack.c.h.b16 %v674
        %v2945 = vunpack.c.l.b16 %v675
        %v2946 = vunpack.c.h.b16 %v675
        %v2947 = vunpack.c.l.b16 %v676
        %v2948 = vunpack.c.h.b16 %v676
        %v2949 = vunpack.c.l.b16 %v677
        %v2950 = vunpack.c.h.b16 %v677
        %v2951 = vunpack.c.l.b16 %v678
        %v2952 = vunpack.c.h.b16 %v678
        %v2953 = vunpack.c.l.b16 %v679
        %v2954 = vunpack.c.h.b16 %v679
        %v2955 = vunpack.c.l.b16 %v680
        %v2956 = vunpack.c.h.b16 %v680
        %v2957 = vunpack.c.l.b16 %v681
        %v2958 = vunpack.c.h.b16 %v681
        %v2959 = vunpack.c.l.b16 %v682
        %v2960 = vunpack.c.h.b16 %v682
        %v2961 = vunpack.c.l.b16 %v683
        %v2962 = vunpack.c.h.b16 %v683
        %v2963 = vunpack.c.l.b16 %v684
        %v2964 = vunpack.c.h.b16 %v684
        %v2965 = vunpack.c.l.b16 %v685
        %v2966 = vunpack.c.h.b16 %v685
        %v2967 = vunpack.c.l.b16 %v686
        %v2968 = vunpack.c.h.b16 %v686
        %v2969 = vunpack.c.l.b16 %v687
        %v2970 = vunpack.c.h.b16 %v687
        %v2971 = vunpack.c.l.b16 %v688
        %v2972 = vunpack.c.h.b16 %v688
        %v2973 = vunpack.c.l.b16 %v689
        %v2974 = vunpack.c.h.b16 %v689
        %v2975 = vunpack.c.l.b16 %v690
        %v2976 = vunpack.c.h.b16 %v690
        %v2977 = vunpack.c.l.b16 %v691
        %v2978 = vunpack.c.h.b16 %v691
        %v2979 = vunpack.c.l.b16 %v692
        %v2980 = vunpack.c.h.b16 %v692
        %v2981 = vunpack.c.l.b16 %v693
        %v2982 = vunpack.c.h.b16 %v693
        %v2983 = vunpack.c.l.b16 %v694
        %v2984 = vunpack.c.h.b16 %v694
        %v2985 = vunpack.c.l.b16 %v695
        %v2986 = vunpack.c.h.b16 %v695
        %v2987 = vunpack.c.l.b16 %v696
        %v2988 = vunpack.c.h.b16 %v696
        %v2989 = vunpack.c.l.b16 %v697
        %v2990 = vunpack.c.h.b16 %v697
        %v2991 = vunpack.c.l.b16 %v698
        %v2992 = vunpack.c.h.b16 %v698
        %v2993 = vunpack.c.l.b16 %v699
        %v2994 = vunpack.c.h.b16 %v699
        %v2995 = vunpack.c.l.b16 %v700
        %v2996 = vunpack.c.h.b16 %v700
        %v2997 = vunpack.c.l.b16 %v701
        %v2998 = vunpack.c.h.b16 %v701
        %v2999 = vunpack.c.l.b16 %v702
        %v3000 = vunpack.c.h.b16 %v702
        %v3001 = vunpack.c.l.b16 %v703
        %v3002 = vunpack.c.h.b16 %v703
        %v3003 = vunpack.c.l.b16 %v704
        %v3004 = vunpack.c.h.b16 %v704
        %v3005 = vunpack.c.l.b16 %v705
        %v3006 = vunpack.c.h.b16 %v705
        %v3007 = vunpack.c.l.b16 %v706
        %v3008 = vunpack.c.h.b16 %v706
        %v3009 = vunpack.c.l.b16 %v707
        %v3010 = vunpack.c.h.b16 %v707
        %v3011 = vunpack.c.l.b16 %v708
        %v3012 = vunpack.c.h.b16 %v708
        %v3013 = vunpack.c.l.b16 %v709
        %v3014 = vunpack.c.h.b16 %v709
        %v3015 = vunpack.c.l.b16 %v710
        %v3016 = vunpack.c.h.b16 %v710
        %v3017 = vunpack.c.l.b16 %v711
        %v3018 = vunpack.c.h.b16 %v711
        %v3019 = vunpack.c.l.b16 %v712
        %v3020 = vunpack.c.h.b16 %v712
        %v3021 = vunpack.c.l.b16 %v713
        %v3022 = vunpack.c.h.b16 %v713
        %v3023 = vunpack.c.l.b16 %v714
        %v3024 = vunpack.c.h.b16 %v714
        %v3025 = vunpack.c.l.b16 %v715
        %v3026 = vunpack.c.h.b16 %v715
        %v3027 = vunpack.c.l.b16 %v716
        %v3028 = vunpack.c.h.b16 %v716
        %v3029 = vunpack.c.l.b16 %v717
        %v3030 = vunpack.c.h.b16 %v717
        %v3031 = vunpack.c.l.b16 %v718
        %v3032 = vunpack.c.h.b16 %v718
        %v3033 = vunpack.c.l.b16 %v719
        %v3034 = vunpack.c.h.b16 %v719
        %v3035 = vunpack.c.l.b16 %v720
        %v3036 = vunpack.c.h.b16 %v720
        %v3037 = vunpack.c.l.b16 %v721
        %v3038 = vunpack.c.h.b16 %v721
        %v3039 = vunpack.c.l.b16 %v722
        %v3040 = vunpack.c.h.b16 %v722
        %v3041 = vunpack.c.l.b16 %v723
        %v3042 = vunpack.c.h.b16 %v723
        %v3043 = vunpack.c.l.b16 %v724
        %v3044 = vunpack.c.h.b16 %v724
        %v3045 = vunpack.c.l.b16 %v725
        %v3046 = vunpack.c.h.b16 %v725
        %v3047 = vunpack.c.l.b16 %v726
        %v3048 = vunpack.c.h.b16 %v726
        %v3049 = vunpack.c.l.b16 %v727
        %v3050 = vunpack.c.h.b16 %v727
        %v3051 = vunpack.c.l.b16 %v728
        %v3052 = vunpack.c.h.b16 %v728
        %v3053 = vunpack.c.l.b16 %v729
        %v3054 = vunpack.c.h.b16 %v729
        %v3055 = vunpack.c.l.b16 %v730
        %v3056 = vunpack.c.h.b16 %v730
        %v3057 = vunpack.c.l.b16 %v731
        %v3058 = vunpack.c.h.b16 %v731
        %v3059 = vunpack.c.l.b16 %v732
        %v3060 = vunpack.c.h.b16 %v732
        %v3061 = vunpack.c.l.b16 %v733
        %v3062 = vunpack.c.h.b16 %v733
        %v3063 = vunpack.c.l.b16 %v734
        %v3064 = vunpack.c.h.b16 %v734
        %v3065 = vunpack.c.l.b16 %v735
        %v3066 = vunpack.c.h.b16 %v735
        %v3067 = vunpack.c.l.b16 %v736
        %v3068 = vunpack.c.h.b16 %v736
        %v3069 = vunpack.c.l.b16 %v737
        %v3070 = vunpack.c.h.b16 %v737
        %v3071 = vunpack.c.l.b16 %v738
        %v3072 = vunpack.c.h.b16 %v738
        %v3073 = vunpack.c.l.b16 %v739
        %v3074 = vunpack.c.h.b16 %v739
        %v3075 = vunpack.c.l.b16 %v740
        %v3076 = vunpack.c.h.b16 %v740
        %v3077 = vunpack.c.l.b16 %v741
        %v3078 = vunpack.c.h.b16 %v741
        %v3079 = vunpack.c.l.b16 %v742
        %v3080 = vunpack.c.h.b16 %v742
        %v3081 = vunpack.c.l.b16 %v743
        %v3082 = vunpack.c.h.b16 %v743
        %v3083 = vunpack.c.l.b16 %v744
        %v3084 = vunpack.c.h.b16 %v744
        %v3085 = vunpack.c.l.b16 %v745
        %v3086 = vunpack.c.h.b16 %v745
        %v3087 = vunpack.c.l.b16 %v746
        %v3088 = vunpack.c.h.b16 %v746
        %v3089 = vunpack.c.l.b16 %v747
        %v3090 = vunpack.c.h.b16 %v747
        %v3091 = vunpack.c.l.b16 %v748
        %v3092 = vunpack.c.h.b16 %v748
        %v3093 = vunpack.c.l.b16 %v749
        %v3094 = vunpack.c.h.b16 %v749
        %v3095 = vunpack.c.l.b16 %v750
        %v3096 = vunpack.c.h.b16 %v750
        %v3097 = vunpack.c.l.b16 %v751
        %v3098 = vunpack.c.h.b16 %v751
        %v3099 = vunpack.c.l.b16 %v752
        %v3100 = vunpack.c.h.b16 %v752
        %v3101 = vunpack.c.l.b16 %v753
        %v3102 = vunpack.c.h.b16 %v753
        %v3103 = vunpack.c.l.b16 %v754
        %v3104 = vunpack.c.h.b16 %v754
        %v3105 = vunpack.c.l.b16 %v755
        %v3106 = vunpack.c.h.b16 %v755
        %v3107 = vunpack.c.l.b16 %v756
        %v3108 = vunpack.c.h.b16 %v756
        %v3109 = vunpack.c.l.b16 %v757
        %v3110 = vunpack.c.h.b16 %v757
        %v3111 = vunpack.c.l.b16 %v758
        %v3112 = vunpack.c.h.b16 %v758
        %v3113 = vunpack.c.l.b16 %v759
        %v3114 = vunpack.c.h.b16 %v759
        %v3115 = vunpack.c.l.b16 %v760
        %v3116 = vunpack.c.h.b16 %v760
        %v3117 = vunpack.c.l.b16 %v761
        %v3118 = vunpack.c.h.b16 %v761
        %v3119 = vunpack.c.l.b16 %v762
        %v3120 = vunpack.c.h.b16 %v762
        %v3121 = vunpack.c.l.b16 %v763
        %v3122 = vunpack.c.h.b16 %v763
        %v3123 = vunpack.c.l.b16 %v764
        %v3124 = vunpack.c.h.b16 %v764
        %v3125 = vunpack.c.l.b16 %v765
        %v3126 = vunpack.c.h.b16 %v765
        %v3127 = vunpack.c.l.b16 %v766
        %v3128 = vunpack.c.h.b16 %v766
        %v3129 = vunpack.c.l.b16 %v767
        %v3130 = vunpack.c.h.b16 %v767
        %v3131 = vunpack.c.l.b16 %v768
        %v3132 = vunpack.c.h.b16 %v768
        %v3133 = vunpack.c.l.b16 %v769
        %v3134 = vunpack.c.h.b16 %v769
        %v3135 = vunpack.c.l.b16 %v770
        %v3136 = vunpack.c.h.b16 %v770
        %v3137 = vunpack.c.l.b16 %v771
        %v3138 = vunpack.c.h.b16 %v771
        %v3139 = vunpack.c.l.b16 %v772
        %v3140 = vunpack.c.h.b16 %v772
        %v3141 = vunpack.c.l.b16 %v773
        %v3142 = vunpack.c.h.b16 %v773
        %v3143 = vunpack.c.l.b16 %v774
        %v3144 = vunpack.c.h.b16 %v774
        %v3145 = vunpack.c.l.b16 %v775
        %v3146 = vunpack.c.h.b16 %v775
        %v3147 = vunpack.c.l.b16 %v776
        %v3148 = vunpack.c.h.b16 %v776
        %v3149 = vunpack.c.l.b16 %v777
        %v3150 = vunpack.c.h.b16 %v777
        %v3151 = vunpack.c.l.b16 %v778
        %v3152 = vunpack.c.h.b16 %v778
        %v3153 = vunpack.c.l.b16 %v779
        %v3154 = vunpack.c.h.b16 %v779
        %v3155 = vunpack.c.l.b16 %v780
        %v3156 = vunpack.c.h.b16 %v780
        %v3157 = vunpack.c.l.b16 %v781
        %v3158 = vunpack.c.h.b16 %v781
        %v3159 = vunpack.c.l.b16 %v782
        %v3160 = vunpack.c.h.b16 %v782
        %v3161 = vunpack.c.l.b16 %v783
        %v3162 = vunpack.c.h.b16 %v783
        %v3163 = vunpack.c.l.b16 %v784
        %v3164 = vunpack.c.h.b16 %v784
        %v3165 = vunpack.c.l.b16 %v785
        %v3166 = vunpack.c.h.b16 %v785
        %v3167 = vunpack.c.l.b16 %v786
        %v3168 = vunpack.c.h.b16 %v786
        %v3169 = vunpack.c.l.b16 %v787
        %v3170 = vunpack.c.h.b16 %v787
        %v3171 = vunpack.c.l.b16 %v788
        %v3172 = vunpack.c.h.b16 %v788
        %v3173 = vunpack.c.l.b16 %v789
        %v3174 = vunpack.c.h.b16 %v789
        %v3175 = vunpack.c.l.b16 %v790
        %v3176 = vunpack.c.h.b16 %v790
        %v3177 = vunpack.c.l.b16 %v791
        %v3178 = vunpack.c.h.b16 %v791
        %v3179 = vunpack.c.l.b16 %v792
        %v3180 = vunpack.c.h.b16 %v792
        %v3181 = vunpack.c.l.b16 %v793
        %v3182 = vunpack.c.h.b16 %v793
        %v3183 = vunpack.c.l.b16 %v794
        %v3184 = vunpack.c.h.b16 %v794
        %v3185 = vunpack.c.l.b16 %v795
        %v3186 = vunpack.c.h.b16 %v795
        %v3187 = vunpack.c.l.b16 %v796
        %v3188 = vunpack.c.h.b16 %v796
        %v3189 = vunpack.c.l.b16 %v797
        %v3190 = vunpack.c.h.b16 %v797
        %v3191 = vunpack.c.l.b16 %v798
        %v3192 = vunpack.c.h.b16 %v798
        %v3193 = vunpack.c.l.b16 %v799
        %v3194 = vunpack.c.h.b16 %v799
        %v3195 = vunpack.c.l.b16 %v800
        %v3196 = vunpack.c.h.b16 %v800
        %v3197 = vunpack.c.l.b16 %v801
        %v3198 = vunpack.c.h.b16 %v801
        %v3199 = vunpack.c.l.b16 %v802
        %v3200 = vunpack.c.h.b16 %v802
        %v3201 = vunpack.c.l.b16 %v803
        %v3202 = vunpack.c.h.b16 %v803
        %v3203 = vunpack.c.l.b16 %v804
        %v3204 = vunpack.c.h.b16 %v804
        %v3205 = vunpack.c.l.b16 %v805
        %v3206 = vunpack.c.h.b16 %v805
        %v3207 = vunpack.c.l.b16 %v806
        %v3208 = vunpack.c.h.b16 %v806
        %v3209 = vunpack.c.l.b16 %v807
        %v3210 = vunpack.c.h.b16 %v807
        %v3211 = vunpack.c.l.b16 %v808
        %v3212 = vunpack.c.h.b16 %v808
        %v3213 = vunpack.c.l.b16 %v809
        %v3214 = vunpack.c.h.b16 %v809
        %v3215 = vunpack.c.l.b16 %v810
        %v3216 = vunpack.c.h.b16 %v810
        %v3217 = vunpack.c.l.b16 %v811
        %v3218 = vunpack.c.h.b16 %v811
        %v3219 = vunpack.c.l.b16 %v812
        %v3220 = vunpack.c.h.b16 %v812
        %v3221 = vunpack.c.l.b16 %v813
        %v3222 = vunpack.c.h.b16 %v813
        %v3223 = vunpack.c.l.b16 %v814
        %v3224 = vunpack.c.h.b16 %v814
        %v3225 = vunpack.c.l.b16 %v815
        %v3226 = vunpack.c.h.b16 %v815
        %v3227 = vunpack.c.l.b16 %v816
        %v3228 = vunpack.c.h.b16 %v816
        %v3229 = vunpack.c.l.b16 %v817
        %v3230 = vunpack.c.h.b16 %v817
        %v3231 = vunpack.c.l.b16 %v818
        %v3232 = vunpack.c.h.b16 %v818
        %v3233 = vunpack.c.l.b16 %v819
        %v3234 = vunpack.c.h.b16 %v819
        %v3235 = vunpack.c.l.b16 %v820
        %v3236 = vunpack.c.h.b16 %v820
        %v3237 = vunpack.c.l.b16 %v821
        %v3238 = vunpack.c.h.b16 %v821
        %v3239 = vunpack.c.l.b16 %v822
        %v3240 = vunpack.c.h.b16 %v822
        %v3241 = vunpack.c.l.b16 %v823
        %v3242 = vunpack.c.h.b16 %v823
        %v3243 = vunpack.c.l.b16 %v824
        %v3244 = vunpack.c.h.b16 %v824
        %v3245 = vunpack.c.l.b16 %v825
        %v3246 = vunpack.c.h.b16 %v825
        %v3247 = vunpack.c.l.b16 %v826
        %v3248 = vunpack.c.h.b16 %v826
        %v3249 = vunpack.c.l.b16 %v827
        %v3250 = vunpack.c.h.b16 %v827
        %v3251 = vunpack.c.l.b16 %v828
        %v3252 = vunpack.c.h.b16 %v828
        %v3253 = vunpack.c.l.b16 %v829
        %v3254 = vunpack.c.h.b16 %v829
        %v3255 = vunpack.c.l.b16 %v830
        %v3256 = vunpack.c.h.b16 %v830
        %v3257 = vunpack.c.l.b16 %v831
        %v3258 = vunpack.c.h.b16 %v831
        %v3259 = vunpack.c.l.b16 %v832
        %v3260 = vunpack.c.h.b16 %v832
        %v3261 = vunpack.c.l.b16 %v833
        %v3262 = vunpack.c.h.b16 %v833
        %v3263 = vunpack.c.l.b16 %v834
        %v3264 = vunpack.c.h.b16 %v834
        %v3265 = vunpack.c.l.b16 %v835
        %v3266 = vunpack.c.h.b16 %v835
        %v3267 = vunpack.c.l.b16 %v836
        %v3268 = vunpack.c.h.b16 %v836
        %v3269 = vunpack.c.l.b16 %v837
        %v3270 = vunpack.c.h.b16 %v837
        %v3271 = vunpack.c.l.b16 %v838
        %v3272 = vunpack.c.h.b16 %v838
        %v3273 = vunpack.c.l.b16 %v839
        %v3274 = vunpack.c.h.b16 %v839
        %v3275 = vunpack.c.l.b16 %v840
        %v3276 = vunpack.c.h.b16 %v840
        %v3277 = vunpack.c.l.b16 %v841
        %v3278 = vunpack.c.h.b16 %v841
        %v3279 = vunpack.c.l.b16 %v842
        %v3280 = vunpack.c.h.b16 %v842
        %v3281 = vunpack.c.l.b16 %v843
        %v3282 = vunpack.c.h.b16 %v843
        %v3283 = vunpack.c.l.b16 %v844
        %v3284 = vunpack.c.h.b16 %v844
        %v3285 = vunpack.c.l.b16 %v845
        %v3286 = vunpack.c.h.b16 %v845
        %v3287 = vunpack.c.l.b16 %v846
        %v3288 = vunpack.c.h.b16 %v846
        %v3289 = vunpack.c.l.b16 %v847
        %v3290 = vunpack.c.h.b16 %v847
        %v3291 = vunpack.c.l.b16 %v848
        %v3292 = vunpack.c.h.b16 %v848
        %v3293 = vunpack.c.l.b16 %v849
        %v3294 = vunpack.c.h.b16 %v849
        %v3295 = vunpack.c.l.b16 %v850
        %v3296 = vunpack.c.h.b16 %v850
        %v3297 = vunpack.c.l.b16 %v851
        %v3298 = vunpack.c.h.b16 %v851
        %v3299 = vunpack.c.l.b16 %v852
        %v3300 = vunpack.c.h.b16 %v852
        %v3301 = vunpack.c.l.b16 %v853
        %v3302 = vunpack.c.h.b16 %v853
        %v3303 = vunpack.c.l.b16 %v854
        %v3304 = vunpack.c.h.b16 %v854
        %v3305 = vunpack.c.l.b16 %v855
        %v3306 = vunpack.c.h.b16 %v855
        %v3307 = vunpack.c.l.b16 %v856
        %v3308 = vunpack.c.h.b16 %v856
        %v3309 = vunpack.c.l.b16 %v857
        %v3310 = vunpack.c.h.b16 %v857
        %v3311 = vunpack.c.l.b16 %v858
        %v3312 = vunpack.c.h.b16 %v858
        %v3313 = vunpack.c.l.b16 %v859
        %v3314 = vunpack.c.h.b16 %v859
        %v3315 = vunpack.c.l.b16 %v860
        %v3316 = vunpack.c.h.b16 %v860
        %v3317 = vunpack.c.l.b16 %v861
        %v3318 = vunpack.c.h.b16 %v861
        %v3319 = vunpack.c.l.b16 %v862
        %v3320 = vunpack.c.h.b16 %v862
        %v3321 = vunpack.c.l.b16 %v863
        %v3322 = vunpack.c.h.b16 %v863
        %v3323 = vunpack.c.l.b16 %v864
        %v3324 = vunpack.c.h.b16 %v864
        %v3325 = vunpack.c.l.b16 %v865
        %v3326 = vunpack.c.h.b16 %v865
        %v3327 = vunpack.c.l.b16 %v866
        %v3328 = vunpack.c.h.b16 %v866
        %v3329 = vunpack.c.l.b16 %v867
        %v3330 = vunpack.c.h.b16 %v867
        %v3331 = vunpack.c.l.b16 %v868
        %v3332 = vunpack.c.h.b16 %v868
        %v3333 = vunpack.c.l.b16 %v869
        %v3334 = vunpack.c.h.b16 %v869
        %v3335 = vunpack.c.l.b16 %v870
        %v3336 = vunpack.c.h.b16 %v870
        %v3337 = vunpack.c.l.b16 %v871
        %v3338 = vunpack.c.h.b16 %v871
        %v3339 = vunpack.c.l.b16 %v872
        %v3340 = vunpack.c.h.b16 %v872
        %v3341 = vunpack.c.l.b16 %v873
        %v3342 = vunpack.c.h.b16 %v873
        %v3343 = vunpack.c.l.b16 %v874
        %v3344 = vunpack.c.h.b16 %v874
        %v3345 = vunpack.c.l.b16 %v875
        %v3346 = vunpack.c.h.b16 %v875
        %v3347 = vunpack.c.l.b16 %v876
        %v3348 = vunpack.c.h.b16 %v876
        %v3349 = vunpack.c.l.b16 %v877
        %v3350 = vunpack.c.h.b16 %v877
        %v3351 = vunpack.c.l.b16 %v878
        %v3352 = vunpack.c.h.b16 %v878
        %v3353 = vunpack.c.l.b16 %v879
        %v3354 = vunpack.c.h.b16 %v879
        %v3355 = vunpack.c.l.b16 %v880
        %v3356 = vunpack.c.h.b16 %v880
        %v3357 = vunpack.c.l.b16 %v881
        %v3358 = vunpack.c.h.b16 %v881
        %v3359 = vunpack.c.l.b16 %v882
        %v3360 = vunpack.c.h.b16 %v882
        %v3361 = vunpack.c.l.b16 %v883
        %v3362 = vunpack.c.h.b16 %v883
        %v3363 = vunpack.c.l.b16 %v884
        %v3364 = vunpack.c.h.b16 %v884
        %v3365 = vunpack.c.l.b16 %v885
        %v3366 = vunpack.c.h.b16 %v885
        %v3367 = vunpack.c.l.b16 %v886
        %v3368 = vunpack.c.h.b16 %v886
        %v3369 = vunpack.c.l.b16 %v887
        %v3370 = vunpack.c.h.b16 %v887
        %v3371 = vunpack.c.l.b16 %v888
        %v3372 = vunpack.c.h.b16 %v888
        %v3373 = vunpack.c.l.b16 %v889
        %v3374 = vunpack.c.h.b16 %v889
        %v3375 = vunpack.c.l.b16 %v890
        %v3376 = vunpack.c.h.b16 %v890
        %v3377 = vunpack.c.l.b16 %v891
        %v3378 = vunpack.c.h.b16 %v891
        %v3379 = vunpack.c.l.b16 %v892
        %v3380 = vunpack.c.h.b16 %v892
        %v3381 = vunpack.c.l.b16 %v893
        %v3382 = vunpack.c.h.b16 %v893
        %v3383 = vunpack.c.l.b16 %v894
        %v3384 = vunpack.c.h.b16 %v894
        %v3385 = vunpack.c.l.b16 %v895
        %v3386 = vunpack.c.h.b16 %v895
        %v3387 = vunpack.c.l.b16 %v896
        %v3388 = vunpack.c.h.b16 %v896
        %v3389 = vunpack.c.l.b16 %v897
        %v3390 = vunpack.c.h.b16 %v897
        %v3391 = vunpack.c.l.b16 %v898
        %v3392 = vunpack.c.h.b16 %v898
        %v3393 = vunpack.c.l.b16 %v899
        %v3394 = vunpack.c.h.b16 %v899
        %v3395 = vunpack.c.l.b16 %v900
        %v3396 = vunpack.c.h.b16 %v900
        %v3397 = vunpack.c.l.b16 %v901
        %v3398 = vunpack.c.h.b16 %v901
        %v3399 = vunpack.c.l.b16 %v902
        %v3400 = vunpack.c.h.b16 %v902
        %v3401 = vunpack.c.l.b16 %v903
        %v3402 = vunpack.c.h.b16 %v903
        %v3403 = vunpack.c.l.b16 %v904
        %v3404 = vunpack.c.h.b16 %v904
        %v3405 = vunpack.c.l.b16 %v905
        %v3406 = vunpack.c.h.b16 %v905
        %v3407 = vunpack.c.l.b16 %v906
        %v3408 = vunpack.c.h.b16 %v906
        %v3409 = vunpack.c.l.b16 %v907
        %v3410 = vunpack.c.h.b16 %v907
        %v3411 = vunpack.c.l.b16 %v908
        %v3412 = vunpack.c.h.b16 %v908
        %v3413 = vunpack.c.l.b16 %v909
        %v3414 = vunpack.c.h.b16 %v909
        %v3415 = vunpack.c.l.b16 %v910
        %v3416 = vunpack.c.h.b16 %v910
        %v3417 = vunpack.c.l.b16 %v911
        %v3418 = vunpack.c.h.b16 %v911
        %v3419 = vunpack.c.l.b16 %v912
        %v3420 = vunpack.c.h.b16 %v912
        %v3421 = vunpack.c.l.b16 %v913
        %v3422 = vunpack.c.h.b16 %v913
        %v3423 = vunpack.c.l.b16 %v914
        %v3424 = vunpack.c.h.b16 %v914
        %v3425 = vunpack.c.l.b16 %v915
        %v3426 = vunpack.c.h.b16 %v915
        %v3427 = vunpack.c.l.b16 %v916
        %v3428 = vunpack.c.h.b16 %v916
        %v3429 = vunpack.c.l.b16 %v917
        %v3430 = vunpack.c.h.b16 %v917
        %v3431 = vunpack.c.l.b16 %v918
        %v3432 = vunpack.c.h.b16 %v918
        %v3433 = vunpack.c.l.b16 %v919
        %v3434 = vunpack.c.h.b16 %v919
        %v3435 = vunpack.c.l.b16 %v920
        %v3436 = vunpack.c.h.b16 %v920
        %v3437 = vunpack.c.l.b16 %v921
        %v3438 = vunpack.c.h.b16 %v921
        %v3439 = vunpack.c.l.b16 %v922
        %v3440 = vunpack.c.h.b16 %v922
        %v3441 = vunpack.c.l.b16 %v923
        %v3442 = vunpack.c.h.b16 %v923
        %v3443 = vunpack.c.l.b16 %v924
        %v3444 = vunpack.c.h.b16 %v924
        %v3445 = vunpack.c.l.b16 %v925
        %v3446 = vunpack.c.h.b16 %v925
        %v3447 = vunpack.c.l.b16 %v926
        %v3448 = vunpack.c.h.b16 %v926
        %v3449 = vunpack.c.l.b16 %v927
        %v3450 = vunpack.c.h.b16 %v927
        %v3451 = vunpack.c.l.b16 %v928
        %v3452 = vunpack.c.h.b16 %v928
        %v3453 = vunpack.c.l.b16 %v929
        %v3454 = vunpack.c.h.b16 %v929
        %v3455 = vunpack.c.l.b16 %v930
        %v3456 = vunpack.c.h.b16 %v930
        %v3457 = vunpack.c.l.b16 %v931
        %v3458 = vunpack.c.h.b16 %v931
        %v3459 = vunpack.c.l.b16 %v932
        %v3460 = vunpack.c.h.b16 %v932
        %v3461 = vunpack.c.l.b16 %v933
        %v3462 = vunpack.c.h.b16 %v933
        %v3463 = vunpack.c.l.b16 %v934
        %v3464 = vunpack.c.h.b16 %v934
        %v3465 = vunpack.c.l.b16 %v935
        %v3466 = vunpack.c.h.b16 %v935
        %v3467 = vunpack.c.l.b16 %v936
        %v3468 = vunpack.c.h.b16 %v936
        %v3469 = vunpack.c.l.b16 %v937
        %v3470 = vunpack.c.h.b16 %v937
        %v3471 = vunpack.c.l.b16 %v938
        %v3472 = vunpack.c.h.b16 %v938
        %v3473 = vunpack.c.l.b16 %v939
        %v3474 = vunpack.c.h.b16 %v939
        %v3475 = vunpack.c.l.b16 %v940
        %v3476 = vunpack.c.h.b16 %v940
        %v3477 = vunpack.c.l.b16 %v941
        %v3478 = vunpack.c.h.b16 %v941
        %v3479 = vunpack.c.l.b16 %v942
        %v3480 = vunpack.c.h.b16 %v942
        %v3481 = vunpack.c.l.b16 %v943
        %v3482 = vunpack.c.h.b16 %v943
        %v3483 = vunpack.c.l.b16 %v944
        %v3484 = vunpack.c.h.b16 %v944
        %v3485 = vunpack.c.l.b16 %v945
        %v3486 = vunpack.c.h.b16 %v945
        %v3487 = vunpack.c.l.b16 %v946
        %v3488 = vunpack.c.h.b16 %v946
        %v3489 = vunpack.c.l.b16 %v947
        %v3490 = vunpack.c.h.b16 %v947
        %v3491 = vunpack.c.l.b16 %v948
        %v3492 = vunpack.c.h.b16 %v948
        %v3493 = vunpack.c.l.b16 %v949
        %v3494 = vunpack.c.h.b16 %v949
        %v3495 = vunpack.c.l.b16 %v950
        %v3496 = vunpack.c.h.b16 %v950
        %v3497 = vunpack.c.l.b16 %v951
        %v3498 = vunpack.c.h.b16 %v951
        %v3499 = vunpack.c.l.b16 %v952
        %v3500 = vunpack.c.h.b16 %v952
        %v3501 = vunpack.c.l.b16 %v953
        %v3502 = vunpack.c.h.b16 %v953
        %v3503 = vunpack.c.l.b16 %v954
        %v3504 = vunpack.c.h.b16 %v954
        %v3505 = vunpack.c.l.b16 %v955
        %v3506 = vunpack.c.h.b16 %v955
        %v3507 = vunpack.c.l.b16 %v956
        %v3508 = vunpack.c.h.b16 %v956
        %v3509 = vunpack.c.l.b16 %v957
        %v3510 = vunpack.c.h.b16 %v957
        %v3511 = vunpack.c.l.b16 %v958
        %v3512 = vunpack.c.h.b16 %v958
        %v3513 = vunpack.c.l.b16 %v959
        %v3514 = vunpack.c.h.b16 %v959
        %v3515 = vunpack.c.l.b16 %v960
        %v3516 = vunpack.c.h.b16 %v960
        %v3517 = vunpack.c.l.b16 %v961
        %v3518 = vunpack.c.h.b16 %v961
        %v3519 = vunpack.c.l.b16 %v962
        %v3520 = vunpack.c.h.b16 %v962
        %v3521 = vunpack.c.l.b16 %v963
        %v3522 = vunpack.c.h.b16 %v963
        %v3523 = vunpack.c.l.b16 %v964
        %v3524 = vunpack.c.h.b16 %v964
        %v3525 = vunpack.c.l.b16 %v965
        %v3526 = vunpack.c.h.b16 %v965
        %v3527 = vunpack.c.l.b16 %v966
        %v3528 = vunpack.c.h.b16 %v966
        %v3529 = vunpack.c.l.b16 %v967
        %v3530 = vunpack.c.h.b16 %v967
        %v3531 = vunpack.c.l.b16 %v968
        %v3532 = vunpack.c.h.b16 %v968
        %v3533 = vunpack.c.l.b16 %v969
        %v3534 = vunpack.c.h.b16 %v969
        %v3535 = vunpack.c.l.b16 %v970
        %v3536 = vunpack.c.h.b16 %v970
        %v3537 = vunpack.c.l.b16 %v971
        %v3538 = vunpack.c.h.b16 %v971
        %v3539 = vunpack.c.l.b16 %v972
        %v3540 = vunpack.c.h.b16 %v972
        %v3541 = vunpack.c.l.b16 %v973
        %v3542 = vunpack.c.h.b16 %v973
        %v3543 = vunpack.c.l.b16 %v974
        %v3544 = vunpack.c.h.b16 %v974
        %v3545 = vunpack.c.l.b16 %v975
        %v3546 = vunpack.c.h.b16 %v975
        %v3547 = vunpack.c.l.b16 %v976
        %v3548 = vunpack.c.h.b16 %v976
        %v3549 = vunpack.c.l.b16 %v977
        %v3550 = vunpack.c.h.b16 %v977
        %v3551 = vunpack.c.l.b16 %v978
        %v3552 = vunpack.c.h.b16 %v978
        %v3553 = vunpack.c.l.b16 %v979
        %v3554 = vunpack.c.h.b16 %v979
        %v3555 = vunpack.c.l.b16 %v980
        %v3556 = vunpack.c.h.b16 %v980
        %v3557 = vunpack.c.l.b16 %v981
        %v3558 = vunpack.c.h.b16 %v981
        %v3559 = vunpack.c.l.b16 %v982
        %v3560 = vunpack.c.h.b16 %v982
        %v3561 = vunpack.c.l.b16 %v983
        %v3562 = vunpack.c.h.b16 %v983
        %v3563 = vunpack.c.l.b16 %v984
        %v3564 = vunpack.c.h.b16 %v984
        %v3565 = vunpack.c.l.b16 %v985
        %v3566 = vunpack.c.h.b16 %v985
        %v3567 = vunpack.c.l.b16 %v986
        %v3568 = vunpack.c.h.b16 %v986
        %v3569 = vunpack.c.l.b16 %v987
        %v3570 = vunpack.c.h.b16 %v987
        %v3571 = vunpack.c.l.b16 %v988
        %v3572 = vunpack.c.h.b16 %v988
        %v3573 = vunpack.c.l.b16 %v989
        %v3574 = vunpack.c.h.b16 %v989
        %v3575 = vunpack.c.l.b16 %v990
        %v3576 = vunpack.c.h.b16 %v990
        %v3577 = vunpack.c.l.b16 %v991
        %v3578 = vunpack.c.h.b16 %v991
        %v3579 = vunpack.c.l.b16 %v992
        %v3580 = vunpack.c.h.b16 %v992
        %v3581 = vunpack.c.l.b16 %v993
        %v3582 = vunpack.c.h.b16 %v993
        %v3583 = vunpack.c.l.b16 %v994
        %v3584 = vunpack.c.h.b16 %v994
        %v3585 = vunpack.c.l.b16 %v995
        %v3586 = vunpack.c.h.b16 %v995
        %v3587 = vunpack.c.l.b16 %v996
        %v3588 = vunpack.c.h.b16 %v996
        %v3589 = vunpack.c.l.b16 %v997
        %v3590 = vunpack.c.h.b16 %v997
        %v3591 = vunpack.c.l.b16 %v998
        %v3592 = vunpack.c.h.b16 %v998
        %v3593 = vunpack.c.l.b16 %v999
        %v3594 = vunpack.c.h.b16 %v999
        %v3595 = vunpack.c.l.b16 %v1000
        %v3596 = vunpack.c.h.b16 %v1000
        %v3597 = vunpack.c.l.b16 %v1001
        %v3598 = vunpack.c.h.b16 %v1001
        %v3599 = vunpack.c.l.b16 %v1002
        %v3600 = vunpack.c.h.b16 %v1002
        %v3601 = vunpack.c.l.b16 %v1003
        %v3602 = vunpack.c.h.b16 %v1003
        %v3603 = vunpack.c.l.b16 %v1004
        %v3604 = vunpack.c.h.b16 %v1004
        %v3605 = vunpack.c.l.b16 %v1005
        %v3606 = vunpack.c.h.b16 %v1005
        %v3607 = vunpack.c.l.b16 %v1006
        %v3608 = vunpack.c.h.b16 %v1006
        %v3609 = vunpack.c.l.b16 %v1007
        %v3610 = vunpack.c.h.b16 %v1007
        %v3611 = vunpack.c.l.b16 %v1008
        %v3612 = vunpack.c.h.b16 %v1008
        %v3613 = vunpack.c.l.b16 %v1009
        %v3614 = vunpack.c.h.b16 %v1009
        %v3615 = vunpack.c.l.b16 %v1010
        %v3616 = vunpack.c.h.b16 %v1010
        %v3617 = vunpack.c.l.b16 %v1011
        %v3618 = vunpack.c.h.b16 %v1011
        %v3619 = vunpack.c.l.b16 %v1012
        %v3620 = vunpack.c.h.b16 %v1012
        %v3621 = vunpack.c.l.b16 %v1013
        %v3622 = vunpack.c.h.b16 %v1013
        %v3623 = vunpack.c.l.b16 %v1014
        %v3624 = vunpack.c.h.b16 %v1014
        %v3625 = vunpack.c.l.b16 %v1015
        %v3626 = vunpack.c.h.b16 %v1015
        %v3627 = vunpack.c.l.b16 %v1016
        %v3628 = vunpack.c.h.b16 %v1016
        %v3629 = vunpack.c.l.b16 %v1017
        %v3630 = vunpack.c.h.b16 %v1017
        %v3631 = vunpack.c.l.b16 %v1018
        %v3632 = vunpack.c.h.b16 %v1018
        %v3633 = vunpack.c.l.b16 %v1019
        %v3634 = vunpack.c.h.b16 %v1019
        %v3635 = vunpack.c.l.b16 %v1020
        %v3636 = vunpack.c.h.b16 %v1020
        %v3637 = vunpack.c.l.b16 %v1021
        %v3638 = vunpack.c.h.b16 %v1021
        %v3639 = vunpack.c.l.b16 %v1022
        %v3640 = vunpack.c.h.b16 %v1022
        %v3641 = vunpack.c.l.b16 %v1023
        %v3642 = vunpack.c.h.b16 %v1023
        %v3643 = vunpack.c.l.b16 %v1024
        %v3644 = vunpack.c.h.b16 %v1024
        %v3645 = vunpack.c.l.b16 %v1025
        %v3646 = vunpack.c.h.b16 %v1025
        %v3647 = vunpack.c.l.b16 %v1026
        %v3648 = vunpack.c.h.b16 %v1026
        %v3649 = vunpack.c.l.b16 %v1027
        %v3650 = vunpack.c.h.b16 %v1027
        %v3651 = vunpack.c.l.b16 %v1028
        %v3652 = vunpack.c.h.b16 %v1028
        %v3653 = vunpack.c.l.b16 %v1029
        %v3654 = vunpack.c.h.b16 %v1029
        %v3655 = vunpack.c.l.b16 %v1030
        %v3656 = vunpack.c.h.b16 %v1030
        %v3657 = vunpack.c.l.b16 %v1031
        %v3658 = vunpack.c.h.b16 %v1031
        %v3659 = vunpack.c.l.b16 %v1032
        %v3660 = vunpack.c.h.b16 %v1032
        %v3661 = vunpack.c.l.b16 %v1033
        %v3662 = vunpack.c.h.b16 %v1033
        %v3663 = vunpack.c.l.b16 %v1034
        %v3664 = vunpack.c.h.b16 %v1034
        %v3665 = vunpack.c.l.b16 %v1035
        %v3666 = vunpack.c.h.b16 %v1035
        %v3667 = vunpack.c.l.b16 %v1036
        %v3668 = vunpack.c.h.b16 %v1036
        %v3669 = vunpack.c.l.b16 %v1037
        %v3670 = vunpack.c.h.b16 %v1037
        %v3671 = vunpack.c.l.b16 %v1038
        %v3672 = vunpack.c.h.b16 %v1038
        %v3673 = vunpack.c.l.b16 %v1039
        %v3674 = vunpack.c.h.b16 %v1039
        %v3675 = vunpack.c.l.b16 %v1040
        %v3676 = vunpack.c.h.b16 %v1040
        %v3677 = vunpack.c.l.b16 %v1041
        %v3678 = vunpack.c.h.b16 %v1041
        %v3679 = vunpack.c.l.b16 %v1042
        %v3680 = vunpack.c.h.b16 %v1042
        %v3681 = vunpack.c.l.b16 %v1043
        %v3682 = vunpack.c.h.b16 %v1043
        %v3683 = vunpack.c.l.b16 %v1044
        %v3684 = vunpack.c.h.b16 %v1044
        %v3685 = vunpack.c.l.b16 %v1045
        %v3686 = vunpack.c.h.b16 %v1045
        %v3687 = vunpack.c.l.b16 %v1046
        %v3688 = vunpack.c.h.b16 %v1046
        %v3689 = vunpack.c.l.b16 %v1047
        %v3690 = vunpack.c.h.b16 %v1047
        %v3691 = vunpack.c.l.b16 %v1048
        %v3692 = vunpack.c.h.b16 %v1048
        %v3693 = vunpack.c.l.b16 %v1049
        %v3694 = vunpack.c.h.b16 %v1049
        %v3695 = vunpack.c.l.b16 %v1050
        %v3696 = vunpack.c.h.b16 %v1050
        %v3697 = vunpack.c.l.b16 %v1051
        %v3698 = vunpack.c.h.b16 %v1051
        %v3699 = vunpack.c.l.b16 %v1052
        %v3700 = vunpack.c.h.b16 %v1052
        %v3701 = vunpack.c.l.b16 %v1053
        %v3702 = vunpack.c.h.b16 %v1053
        %v3703 = vunpack.c.l.b16 %v1054
        %v3704 = vunpack.c.h.b16 %v1054
        %v3705 = vunpack.c.l.b16 %v1055
        %v3706 = vunpack.c.h.b16 %v1055
        %v3707 = vunpack.c.l.b16 %v1056
        %v3708 = vunpack.c.h.b16 %v1056
        %v3709 = vunpack.c.l.b16 %v1057
        %v3710 = vunpack.c.h.b16 %v1057
        %v3711 = vunpack.c.l.b16 %v1058
        %v3712 = vunpack.c.h.b16 %v1058
        %v3713 = vunpack.c.l.b16 %v1059
        %v3714 = vunpack.c.h.b16 %v1059
        %v3715 = vunpack.c.l.b16 %v1060
        %v3716 = vunpack.c.h.b16 %v1060
        %v3717 = vunpack.c.l.b16 %v1061
        %v3718 = vunpack.c.h.b16 %v1061
        %v3719 = vunpack.c.l.b16 %v1062
        %v3720 = vunpack.c.h.b16 %v1062
        %v3721 = vunpack.c.l.b16 %v1063
        %v3722 = vunpack.c.h.b16 %v1063
        %v3723 = vunpack.c.l.b16 %v1064
        %v3724 = vunpack.c.h.b16 %v1064
        %v3725 = vunpack.c.l.b16 %v1065
        %v3726 = vunpack.c.h.b16 %v1065
        %v3727 = vunpack.c.l.b16 %v1066
        %v3728 = vunpack.c.h.b16 %v1066
        %v3729 = vunpack.c.l.b16 %v1067
        %v3730 = vunpack.c.h.b16 %v1067
        %v3731 = vunpack.c.l.b16 %v1068
        %v3732 = vunpack.c.h.b16 %v1068
        %v3733 = vunpack.c.l.b16 %v1069
        %v3734 = vunpack.c.h.b16 %v1069
        %v3735 = vunpack.c.l.b16 %v1070
        %v3736 = vunpack.c.h.b16 %v1070
        %v3737 = vunpack.c.l.b16 %v1071
        %v3738 = vunpack.c.h.b16 %v1071
        %v3739 = vunpack.c.l.b16 %v1072
        %v3740 = vunpack.c.h.b16 %v1072
        %v3741 = vunpack.c.l.b16 %v1073
        %v3742 = vunpack.c.h.b16 %v1073
        %v3743 = vunpack.c.l.b16 %v1074
        %v3744 = vunpack.c.h.b16 %v1074
        %v3745 = vunpack.c.l.b16 %v1075
        %v3746 = vunpack.c.h.b16 %v1075
        %v3747 = vunpack.c.l.b16 %v1076
        %v3748 = vunpack.c.h.b16 %v1076
        %v3749 = vunpack.c.l.b16 %v1077
        %v3750 = vunpack.c.h.b16 %v1077
        %v3751 = vunpack.c.l.b16 %v1078
        %v3752 = vunpack.c.h.b16 %v1078
        %v3753 = vunpack.c.l.b16 %v1079
        %v3754 = vunpack.c.h.b16 %v1079
        %v3755 = vunpack.c.l.b16 %v1080
        %v3756 = vunpack.c.h.b16 %v1080
        %v3757 = vunpack.c.l.b16 %v1081
        %v3758 = vunpack.c.h.b16 %v1081
        %v3759 = vunpack.c.l.b16 %v1082
        %v3760 = vunpack.c.h.b16 %v1082
        %v3761 = vunpack.c.l.b16 %v1083
        %v3762 = vunpack.c.h.b16 %v1083
        %v3763 = vunpack.c.l.b16 %v1084
        %v3764 = vunpack.c.h.b16 %v1084
        %v3765 = vunpack.c.l.b16 %v1085
        %v3766 = vunpack.c.h.b16 %v1085
        %v3767 = vunpack.c.l.b16 %v1086
        %v3768 = vunpack.c.h.b16 %v1086
        %v3769 = vunpack.c.l.b16 %v1087
        %v3770 = vunpack.c.h.b16 %v1087
        %v3771 = vunpack.c.l.b16 %v1088
        %v3772 = vunpack.c.h.b16 %v1088
        %v3773 = vunpack.c.l.b16 %v1089
        %v3774 = vunpack.c.h.b16 %v1089
        %v3775 = vunpack.c.l.b16 %v1090
        %v3776 = vunpack.c.h.b16 %v1090
        %v3777 = vunpack.c.l.b16 %v1091
        %v3778 = vunpack.c.h.b16 %v1091
        %v3779 = vunpack.c.l.b16 %v1092
        %v3780 = vunpack.c.h.b16 %v1092
        %v3781 = vunpack.c.l.b16 %v1093
        %v3782 = vunpack.c.h.b16 %v1093
        %v3783 = vunpack.c.l.b16 %v1094
        %v3784 = vunpack.c.h.b16 %v1094
        %v3785 = vunpack.c.l.b16 %v1095
        %v3786 = vunpack.c.h.b16 %v1095
        %v3787 = vunpack.c.l.b16 %v1096
        %v3788 = vunpack.c.h.b16 %v1096
        %v3789 = vunpack.c.l.b16 %v1097
        %v3790 = vunpack.c.h.b16 %v1097
        %v3791 = vunpack.c.l.b16 %v1098
        %v3792 = vunpack.c.h.b16 %v1098
        %v3793 = vunpack.c.l.b16 %v1099
        %v3794 = vunpack.c.h.b16 %v1099
        %v3795 = vunpack.c.l.b16 %v1100
        %v3796 = vunpack.c.h.b16 %v1100
        %v3797 = vunpack.c.l.b16 %v1101
        %v3798 = vunpack.c.h.b16 %v1101
        %v3799 = vunpack.c.l.b16 %v1102
        %v3800 = vunpack.c.h.b16 %v1102
        %v3801 = vunpack.c.l.b16 %v1103
        %v3802 = vunpack.c.h.b16 %v1103
        %v3803 = vunpack.c.l.b16 %v1104
        %v3804 = vunpack.c.h.b16 %v1104
        %v3805 = vunpack.c.l.b16 %v1105
        %v3806 = vunpack.c.h.b16 %v1105
        %v3807 = vunpack.c.l.b16 %v1106
        %v3808 = vunpack.c.h.b16 %v1106
        %v3809 = vunpack.c.l.b16 %v1107
        %v3810 = vunpack.c.h.b16 %v1107
        %v3811 = vunpack.c.l.b16 %v1108
        %v3812 = vunpack.c.h.b16 %v1108
        %v3813 = vunpack.c.l.b16 %v1109
        %v3814 = vunpack.c.h.b16 %v1109
        %v3815 = vunpack.c.l.b16 %v1110
        %v3816 = vunpack.c.h.b16 %v1110
        %v3817 = vunpack.c.l.b16 %v1111
        %v3818 = vunpack.c.h.b16 %v1111
        %v3819 = vunpack.c.l.b16 %v1112
        %v3820 = vunpack.c.h.b16 %v1112
        %v3821 = vunpack.c.l.b16 %v1113
        %v3822 = vunpack.c.h.b16 %v1113
        %v3823 = vunpack.c.l.b16 %v1114
        %v3824 = vunpack.c.h.b16 %v1114
        %v3825 = vunpack.c.l.b16 %v1115
        %v3826 = vunpack.c.h.b16 %v1115
        %v3827 = vunpack.c.l.b16 %v1116
        %v3828 = vunpack.c.h.b16 %v1116
        %v3829 = vunpack.c.l.b16 %v1117
        %v3830 = vunpack.c.h.b16 %v1117
        %v3831 = vunpack.c.l.b16 %v1118
        %v3832 = vunpack.c.h.b16 %v1118
        %v3833 = vunpack.c.l.b16 %v1119
        %v3834 = vunpack.c.h.b16 %v1119
        %v3835 = vunpack.c.l.b16 %v1120
        %v3836 = vunpack.c.h.b16 %v1120
        %v3837 = vunpack.c.l.b16 %v1121
        %v3838 = vunpack.c.h.b16 %v1121
        %v3839 = vunpack.c.l.b16 %v1122
        %v3840 = vunpack.c.h.b16 %v1122
        %v3841 = vunpack.c.l.b16 %v1123
        %v3842 = vunpack.c.h.b16 %v1123
        %v3843 = vunpack.c.l.b16 %v1124
        %v3844 = vunpack.c.h.b16 %v1124
        %v3845 = vunpack.c.l.b16 %v1125
        %v3846 = vunpack.c.h.b16 %v1125
        %v3847 = vunpack.c.l.b16 %v1126
        %v3848 = vunpack.c.h.b16 %v1126
        %v3849 = vunpack.c.l.b16 %v1127
        %v3850 = vunpack.c.h.b16 %v1127
        %v3851 = vunpack.c.l.b16 %v1128
        %v3852 = vunpack.c.h.b16 %v1128
        %v3853 = vunpack.c.l.b16 %v1129
        %v3854 = vunpack.c.h.b16 %v1129
        %v3855 = vunpack.c.l.b16 %v1130
        %v3856 = vunpack.c.h.b16 %v1130
        %v3857 = vunpack.c.l.b16 %v1131
        %v3858 = vunpack.c.h.b16 %v1131
        %v3859 = vunpack.c.l.b16 %v1132
        %v3860 = vunpack.c.h.b16 %v1132
        %v3861 = vunpack.c.l.b16 %v1133
        %v3862 = vunpack.c.h.b16 %v1133
        %v3863 = vunpack.c.l.b16 %v1134
        %v3864 = vunpack.c.h.b16 %v1134
        %v3865 = vunpack.c.l.b16 %v1135
        %v3866 = vunpack.c.h.b16 %v1135
        %v3867 = vunpack.c.l.b16 %v1136
        %v3868 = vunpack.c.h.b16 %v1136
        %v3869 = vunpack.c.l.b16 %v1137
        %v3870 = vunpack.c.h.b16 %v1137
        %v3871 = vunpack.c.l.b16 %v1138
        %v3872 = vunpack.c.h.b16 %v1138
        %v3873 = vunpack.c.l.b16 %v1139
        %v3874 = vunpack.c.h.b16 %v1139
        %v3875 = vunpack.c.l.b16 %v1140
        %v3876 = vunpack.c.h.b16 %v1140
        %v3877 = vunpack.c.l.b16 %v1141
        %v3878 = vunpack.c.h.b16 %v1141
        %v3879 = vunpack.c.l.b16 %v1142
        %v3880 = vunpack.c.h.b16 %v1142
        %v3881 = vunpack.c.l.b16 %v1143
        %v3882 = vunpack.c.h.b16 %v1143
        %v3883 = vunpack.c.l.b16 %v1144
        %v3884 = vunpack.c.h.b16 %v1144
        %v3885 = vunpack.c.l.b16 %v1145
        %v3886 = vunpack.c.h.b16 %v1145
        %v3887 = vunpack.c.l.b16 %v1146
        %v3888 = vunpack.c.h.b16 %v1146
        %v3889 = vunpack.c.l.b16 %v1147
        %v3890 = vunpack.c.h.b16 %v1147
        %v3891 = vunpack.c.l.b16 %v1148
        %v3892 = vunpack.c.h.b16 %v1148
        %v3893 = vunpack.c.l.b16 %v1149
        %v3894 = vunpack.c.h.b16 %v1149
        %v3895 = vunpack.c.l.b16 %v1150
        %v3896 = vunpack.c.h.b16 %v1150
        %v3897 = vunpack.c.l.b16 %v1151
        %v3898 = vunpack.c.h.b16 %v1151
        %v3899 = vunpack.c.l.b16 %v1152
        %v3900 = vunpack.c.h.b16 %v1152
        %v3901 = vunpack.c.l.b16 %v1153
        %v3902 = vunpack.c.h.b16 %v1153
        %v3903 = vunpack.c.l.b16 %v1154
        %v3904 = vunpack.c.h.b16 %v1154
        %v3905 = vunpack.c.l.b16 %v1155
        %v3906 = vunpack.c.h.b16 %v1155
        %v3907 = vunpack.c.l.b16 %v1156
        %v3908 = vunpack.c.h.b16 %v1156
        %v3909 = vunpack.c.l.b16 %v1157
        %v3910 = vunpack.c.h.b16 %v1157
        %v3911 = vunpack.c.l.b16 %v1158
        %v3912 = vunpack.c.h.b16 %v1158
        %v3913 = vunpack.c.l.b16 %v1159
        %v3914 = vunpack.c.h.b16 %v1159
        %v3915 = vunpack.c.l.b16 %v1160
        %v3916 = vunpack.c.h.b16 %v1160
        %v3917 = vunpack.c.l.b16 %v1161
        %v3918 = vunpack.c.h.b16 %v1161
        %v3919 = vunpack.c.l.b16 %v1162
        %v3920 = vunpack.c.h.b16 %v1162
        %v3921 = vunpack.c.l.b16 %v1163
        %v3922 = vunpack.c.h.b16 %v1163
        %v3923 = vunpack.c.l.b16 %v1164
        %v3924 = vunpack.c.h.b16 %v1164
        %v3925 = vunpack.c.l.b16 %v1165
        %v3926 = vunpack.c.h.b16 %v1165
        %v3927 = vunpack.c.l.b16 %v1166
        %v3928 = vunpack.c.h.b16 %v1166
        %v3929 = vunpack.c.l.b16 %v1167
        %v3930 = vunpack.c.h.b16 %v1167
        %v3931 = vunpack.c.l.b16 %v1168
        %v3932 = vunpack.c.h.b16 %v1168
        %v3933 = vunpack.c.l.b16 %v1169
        %v3934 = vunpack.c.h.b16 %v1169
        %v3935 = vunpack.c.l.b16 %v1170
        %v3936 = vunpack.c.h.b16 %v1170
        %v3937 = vunpack.c.l.b16 %v1171
        %v3938 = vunpack.c.h.b16 %v1171
        %v3939 = vunpack.c.l.b16 %v1172
        %v3940 = vunpack.c.h.b16 %v1172
        %v3941 = vunpack.c.l.b16 %v1173
        %v3942 = vunpack.c.h.b16 %v1173
        %v3943 = vunpack.c.l.b16 %v1174
        %v3944 = vunpack.c.h.b16 %v1174
        %v3945 = vunpack.c.l.b16 %v1175
        %v3946 = vunpack.c.h.b16 %v1175
        %v3947 = vunpack.c.l.b16 %v1176
        %v3948 = vunpack.c.h.b16 %v1176
        %v3949 = vunpack.c.l.b16 %v1177
        %v3950 = vunpack.c.h.b16 %v1177
        %v3951 = vunpack.c.l.b16 %v1178
        %v3952 = vunpack.c.h.b16 %v1178
        %v3953 = vunpack.c.l.b16 %v1179
        %v3954 = vunpack.c.h.b16 %v1179
        %v3955 = vunpack.c.l.b16 %v1180
        %v3956 = vunpack.c.h.b16 %v1180
        %v3957 = vunpack.c.l.b16 %v1181
        %v3958 = vunpack.c.h.b16 %v1181
        %v3959 = vunpack.c.l.b16 %v1182
        %v3960 = vunpack.c.h.b16 %v1182
        %v3961 = vunpack.c.l.b16 %v1183
        %v3962 = vunpack.c.h.b16 %v1183
        %v3963 = vunpack.c.l.b16 %v1184
        %v3964 = vunpack.c.h.b16 %v1184
        %v3965 = vunpack.c.l.b16 %v1185
        %v3966 = vunpack.c.h.b16 %v1185
        %v3967 = vunpack.c.l.b16 %v1186
        %v3968 = vunpack.c.h.b16 %v1186
        %v3969 = vunpack.c.l.b16 %v1187
        %v3970 = vunpack.c.h.b16 %v1187
        %v3971 = vunpack.c.l.b16 %v1188
        %v3972 = vunpack.c.h.b16 %v1188
        %v3973 = vunpack.c.l.b16 %v1189
        %v3974 = vunpack.c.h.b16 %v1189
        %v3975 = vunpack.c.l.b16 %v1190
        %v3976 = vunpack.c.h.b16 %v1190
        %v3977 = vunpack.c.l.b16 %v1191
        %v3978 = vunpack.c.h.b16 %v1191
        %v3979 = vunpack.c.l.b16 %v1192
        %v3980 = vunpack.c.h.b16 %v1192
        %v3981 = vunpack.c.l.b16 %v1193
        %v3982 = vunpack.c.h.b16 %v1193
        %v3983 = vunpack.c.l.b16 %v1194
        %v3984 = vunpack.c.h.b16 %v1194
        %v3985 = vunpack.c.l.b16 %v1195
        %v3986 = vunpack.c.h.b16 %v1195
        %v3987 = vunpack.c.l.b16 %v1196
        %v3988 = vunpack.c.h.b16 %v1196
        %v3989 = vunpack.c.l.b16 %v1197
        %v3990 = vunpack.c.h.b16 %v1197
        %v3991 = vunpack.c.l.b16 %v1198
        %v3992 = vunpack.c.h.b16 %v1198
        %v3993 = vunpack.c.l.b16 %v1199
        %v3994 = vunpack.c.h.b16 %v1199
        %v3995 = vunpack.c.l.b16 %v1200
        %v3996 = vunpack.c.h.b16 %v1200
        %v3997 = vunpack.c.l.b16 %v1201
        %v3998 = vunpack.c.h.b16 %v1201
        %v3999 = vunpack.c.l.b16 %v1202
        %v4000 = vunpack.c.h.b16 %v1202
        %v4001 = vunpack.c.l.b16 %v1203
        %v4002 = vunpack.c.h.b16 %v1203
        %v4003 = vunpack.c.l.b16 %v1204
        %v4004 = vunpack.c.h.b16 %v1204
        %v4005 = vunpack.c.l.b16 %v1205
        %v4006 = vunpack.c.h.b16 %v1205
        %v4007 = vunpack.c.l.b16 %v1206
        %v4008 = vunpack.c.h.b16 %v1206
        %v4009 = vunpack.c.l.b16 %v1207
        %v4010 = vunpack.c.h.b16 %v1207
        %v4011 = vunpack.c.l.b16 %v1208
        %v4012 = vunpack.c.h.b16 %v1208
        %v4013 = vunpack.c.l.b16 %v1209
        %v4014 = vunpack.c.h.b16 %v1209
        %v4015 = vunpack.c.l.b16 %v1210
        %v4016 = vunpack.c.h.b16 %v1210
        %v4017 = vunpack.c.l.b16 %v1211
        %v4018 = vunpack.c.h.b16 %v1211
        %v4019 = vunpack.c.l.b16 %v1212
        %v4020 = vunpack.c.h.b16 %v1212
        %v4021 = vunpack.c.l.b16 %v1213
        %v4022 = vunpack.c.h.b16 %v1213
        %v4023 = vunpack.c.l.b16 %v1214
        %v4024 = vunpack.c.h.b16 %v1214
        %v4025 = vunpack.c.l.b16 %v1215
        %v4026 = vunpack.c.h.b16 %v1215
        %v4027 = vunpack.c.l.b16 %v1216
        %v4028 = vunpack.c.h.b16 %v1216
        %v4029 = vunpack.c.l.b16 %v1217
        %v4030 = vunpack.c.h.b16 %v1217
        %v4031 = vunpack.c.l.b16 %v1218
        %v4032 = vunpack.c.h.b16 %v1218
        %v4033 = vunpack.c.l.b16 %v1219
        %v4034 = vunpack.c.h.b16 %v1219
        %v4035 = vunpack.c.l.b16 %v1220
        %v4036 = vunpack.c.h.b16 %v1220
        %v4037 = vunpack.c.l.b16 %v1221
        %v4038 = vunpack.c.h.b16 %v1221
        %v4039 = vunpack.c.l.b16 %v1222
        %v4040 = vunpack.c.h.b16 %v1222
        %v4041 = vunpack.c.l.b16 %v1223
        %v4042 = vunpack.c.h.b16 %v1223
        %v4043 = vunpack.c.l.b16 %v1224
        %v4044 = vunpack.c.h.b16 %v1224
        %v4045 = vunpack.c.l.b16 %v1225
        %v4046 = vunpack.c.h.b16 %v1225
        %v4047 = vunpack.c.l.b16 %v1226
        %v4048 = vunpack.c.h.b16 %v1226
        %v4049 = vunpack.c.l.b16 %v1227
        %v4050 = vunpack.c.h.b16 %v1227
        %v4051 = vunpack.c.l.b16 %v1228
        %v4052 = vunpack.c.h.b16 %v1228
        %v4053 = vunpack.c.l.b16 %v1229
        %v4054 = vunpack.c.h.b16 %v1229
        %v4055 = vunpack.c.l.b16 %v1230
        %v4056 = vunpack.c.h.b16 %v1230
        %v4057 = vunpack.c.l.b16 %v1231
        %v4058 = vunpack.c.h.b16 %v1231
        %v4059 = vunpack.c.l.b16 %v1232
        %v4060 = vunpack.c.h.b16 %v1232
        %v4061 = vunpack.c.l.b16 %v1233
        %v4062 = vunpack.c.h.b16 %v1233
        %v4063 = vunpack.c.l.b16 %v1234
        %v4064 = vunpack.c.h.b16 %v1234
        %v4065 = vunpack.c.l.b16 %v1235
        %v4066 = vunpack.c.h.b16 %v1235
        %v4067 = vunpack.c.l.b16 %v1236
        %v4068 = vunpack.c.h.b16 %v1236
        %v4069 = vunpack.c.l.b16 %v1237
        %v4070 = vunpack.c.h.b16 %v1237
        %v4071 = vunpack.c.l.b16 %v1238
        %v4072 = vunpack.c.h.b16 %v1238
        %v4073 = vunpack.c.l.b16 %v1239
        %v4074 = vunpack.c.h.b16 %v1239
        %v4075 = vunpack.c.l.b16 %v1240
        %v4076 = vunpack.c.h.b16 %v1240
        %v4077 = vunpack.c.l.b16 %v1241
        %v4078 = vunpack.c.h.b16 %v1241
        %v4079 = vunpack.c.l.b16 %v1242
        %v4080 = vunpack.c.h.b16 %v1242
        %v4081 = vunpack.c.l.b16 %v1243
        %v4082 = vunpack.c.h.b16 %v1243
        %v4083 = vunpack.c.l.b16 %v1244
        %v4084 = vunpack.c.h.b16 %v1244
        %v4085 = vunpack.c.l.b16 %v1245
        %v4086 = vunpack.c.h.b16 %v1245
        %v4087 = vunpack.c.l.b16 %v1246
        %v4088 = vunpack.c.h.b16 %v1246
        %v4089 = vunpack.c.l.b16 %v1247
        %v4090 = vunpack.c.h.b16 %v1247
        %v4091 = vunpack.c.l.b16 %v1248
        %v4092 = vunpack.c.h.b16 %v1248
        %v4093 = vunpack.c.l.b16 %v1249
        %v4094 = vunpack.c.h.b16 %v1249
        %v4095 = vunpack.c.l.b16 %v1250
        %v4096 = vunpack.c.h.b16 %v1250
        %v4097 = vunpack.c.l.b16 %v1251
        %v4098 = vunpack.c.h.b16 %v1251
        %v4099 = vunpack.c.l.b16 %v1252
        %v4100 = vunpack.c.h.b16 %v1252
        %v4101 = vunpack.c.l.b16 %v1253
        %v4102 = vunpack.c.h.b16 %v1253
        %v4103 = vunpack.c.l.b16 %v1254
        %v4104 = vunpack.c.h.b16 %v1254
        %v4105 = vunpack.c.l.b16 %v1255
        %v4106 = vunpack.c.h.b16 %v1255
        %v4107 = vunpack.c.l.b16 %v1256
        %v4108 = vunpack.c.h.b16 %v1256
        %v4109 = vunpack.c.l.b16 %v1257
        %v4110 = vunpack.c.h.b16 %v1257
        %v4111 = vunpack.c.l.b16 %v1258
        %v4112 = vunpack.c.h.b16 %v1258
        %v4113 = vunpack.c.l.b16 %v1259
        %v4114 = vunpack.c.h.b16 %v1259
        %v4115 = vunpack.c.l.b16 %v1260
        %v4116 = vunpack.c.h.b16 %v1260
        %v4117 = vunpack.c.l.b16 %v1261
        %v4118 = vunpack.c.h.b16 %v1261
        %v4119 = vunpack.c.l.b16 %v1262
        %v4120 = vunpack.c.h.b16 %v1262
        %v4121 = vunpack.c.l.b16 %v1263
        %v4122 = vunpack.c.h.b16 %v1263
        %v4123 = vunpack.c.l.b16 %v1264
        %v4124 = vunpack.c.h.b16 %v1264
        %v4125 = vunpack.c.l.b16 %v1265
        %v4126 = vunpack.c.h.b16 %v1265
        %v4127 = vunpack.c.l.b16 %v1266
        %v4128 = vunpack.c.h.b16 %v1266
        %v4129 = vunpack.c.l.b16 %v1267
        %v4130 = vunpack.c.h.b16 %v1267
        %v4131 = vunpack.c.l.b16 %v1268
        %v4132 = vunpack.c.h.b16 %v1268
        %v4133 = vunpack.c.l.b16 %v1269
        %v4134 = vunpack.c.h.b16 %v1269
        %v4135 = vunpack.c.l.b16 %v1270
        %v4136 = vunpack.c.h.b16 %v1270
        %v4137 = vunpack.c.l.b16 %v1271
        %v4138 = vunpack.c.h.b16 %v1271
        %v4139 = vunpack.c.l.b16 %v1272
        %v4140 = vunpack.c.h.b16 %v1272
        %v4141 = vunpack.c.l.b16 %v1273
        %v4142 = vunpack.c.h.b16 %v1273
        %v4143 = vunpack.c.l.b16 %v1274
        %v4144 = vunpack.c.h.b16 %v1274
        %v4145 = vunpack.c.l.b16 %v1275
        %v4146 = vunpack.c.h.b16 %v1275
        %v4147 = vunpack.c.l.b16 %v1276
        %v4148 = vunpack.c.h.b16 %v1276
        %v4149 = vunpack.c.l.b16 %v1277
        %v4150 = vunpack.c.h.b16 %v1277
        %v4151 = vunpack.c.l.b16 %v1278
        %v4152 = vunpack.c.h.b16 %v1278
        %v4153 = vunpack.c.l.b16 %v1279
        %v4154 = vunpack.c.h.b16 %v1279
        %v4155 = vunpack.c.l.b16 %v1280
        %v4156 = vunpack.c.h.b16 %v1280
        %v4157 = vunpack.c.l.b16 %v1281
        %v4158 = vunpack.c.h.b16 %v1281
        %v4159 = vunpack.c.l.b16 %v1282
        %v4160 = vunpack.c.h.b16 %v1282
        %v4161 = vunpack.c.l.b16 %v1283
        %v4162 = vunpack.c.h.b16 %v1283
        %v4163 = vunpack.c.l.b16 %v1284
        %v4164 = vunpack.c.h.b16 %v1284
        %v4165 = vunpack.c.l.b16 %v1285
        %v4166 = vunpack.c.h.b16 %v1285
        %v4167 = vunpack.c.l.b16 %v1286
        %v4168 = vunpack.c.h.b16 %v1286
        %v4169 = vunpack.c.l.b16 %v1287
        %v4170 = vunpack.c.h.b16 %v1287
        %v4171 = vunpack.c.l.b16 %v1288
        %v4172 = vunpack.c.h.b16 %v1288
        %v4173 = vunpack.c.l.b16 %v1289
        %v4174 = vunpack.c.h.b16 %v1289
        %v4175 = vunpack.c.l.b16 %v1290
        %v4176 = vunpack.c.h.b16 %v1290
        %v4177 = vunpack.c.l.b16 %v1291
        %v4178 = vunpack.c.h.b16 %v1291
        %v4179 = vunpack.c.l.b16 %v1292
        %v4180 = vunpack.c.h.b16 %v1292
        %v4181 = vunpack.c.l.b16 %v1293
        %v4182 = vunpack.c.h.b16 %v1293
        %v4183 = vunpack.c.l.b16 %v1294
        %v4184 = vunpack.c.h.b16 %v1294
        %v4185 = vunpack.c.l.b16 %v1295
        %v4186 = vunpack.c.h.b16 %v1295
        %v4187 = vunpack.c.l.b16 %v1296
        %v4188 = vunpack.c.h.b16 %v1296
        %v4189 = vunpack.c.l.b16 %v1297
        %v4190 = vunpack.c.h.b16 %v1297
        %v4191 = vunpack.c.l.b16 %v1298
        %v4192 = vunpack.c.h.b16 %v1298
        %v4193 = vunpack.c.l.b16 %v1299
        %v4194 = vunpack.c.h.b16 %v1299
        %v4195 = vunpack.c.l.b16 %v1300
        %v4196 = vunpack.c.h.b16 %v1300
        %v4197 = vunpack.c.l.b16 %v1301
        %v4198 = vunpack.c.h.b16 %v1301
        %v4199 = vunpack.c.l.b16 %v1302
        %v4200 = vunpack.c.h.b16 %v1302
        %v4201 = vunpack.c.l.b16 %v1303
        %v4202 = vunpack.c.h.b16 %v1303
        %v4203 = vunpack.c.l.b16 %v1304
        %v4204 = vunpack.c.h.b16 %v1304
        %v4205 = vunpack.c.l.b16 %v1305
        %v4206 = vunpack.c.h.b16 %v1305
        %v4207 = vunpack.c.l.b16 %v1306
        %v4208 = vunpack.c.h.b16 %v1306
        %v4209 = vunpack.c.l.b16 %v1307
        %v4210 = vunpack.c.h.b16 %v1307
        %v4211 = vunpack.c.l.b16 %v1308
        %v4212 = vunpack.c.h.b16 %v1308
        %v4213 = vunpack.c.l.b16 %v1309
        %v4214 = vunpack.c.h.b16 %v1309
        %v4215 = vunpack.c.l.b16 %v1310
        %v4216 = vunpack.c.h.b16 %v1310
        %v4217 = vunpack.c.l.b16 %v1311
        %v4218 = vunpack.c.h.b16 %v1311
        %v4219 = vunpack.c.l.b16 %v1312
        %v4220 = vunpack.c.h.b16 %v1312
        %v4221 = vunpack.c.l.b16 %v1313
        %v4222 = vunpack.c.h.b16 %v1313
        %v4223 = vunpack.c.l.b16 %v1314
        %v4224 = vunpack.c.h.b16 %v1314
        %v4225 = vunpack.c.l.b16 %v1315
        %v4226 = vunpack.c.h.b16 %v1315
        %v4227 = vunpack.c.l.b16 %v1316
        %v4228 = vunpack.c.h.b16 %v1316
        %v4229 = vunpack.c.l.b16 %v1317
        %v4230 = vunpack.c.h.b16 %v1317
        %v4231 = vunpack.c.l.b16 %v1318
        %v4232 = vunpack.c.h.b16 %v1318
        %v4233 = vunpack.c.l.b16 %v1319
        %v4234 = vunpack.c.h.b16 %v1319
        %v4235 = vunpack.c.l.b16 %v1320
        %v4236 = vunpack.c.h.b16 %v1320
        %v4237 = vunpack.c.l.b16 %v1321
        %v4238 = vunpack.c.h.b16 %v1321
        %v4239 = vunpack.c.l.b16 %v1322
        %v4240 = vunpack.c.h.b16 %v1322
        %v4241 = vunpack.c.l.b16 %v1323
        %v4242 = vunpack.c.h.b16 %v1323
        %v4243 = vunpack.c.l.b16 %v1324
        %v4244 = vunpack.c.h.b16 %v1324
        %v4245 = vunpack.c.l.b16 %v1325
        %v4246 = vunpack.c.h.b16 %v1325
        %v4247 = vunpack.c.l.b16 %v1326
        %v4248 = vunpack.c.h.b16 %v1326
        %v4249 = vunpack.c.l.b16 %v1327
        %v4250 = vunpack.c.h.b16 %v1327
        %v4251 = vunpack.c.l.b16 %v1328
        %v4252 = vunpack.c.h.b16 %v1328
        %v4253 = vunpack.c.l.b16 %v1329
        %v4254 = vunpack.c.h.b16 %v1329
        %v4255 = vunpack.c.l.b16 %v1330
        %v4256 = vunpack.c.h.b16 %v1330
        %v4257 = vunpack.c.l.b16 %v1331
        %v4258 = vunpack.c.h.b16 %v1331
        %v4259 = vunpack.c.l.b16 %v1332
        %v4260 = vunpack.c.h.b16 %v1332
        %v4261 = vunpack.c.l.b16 %v1333
        %v4262 = vunpack.c.h.b16 %v1333
        %v4263 = vunpack.c.l.b16 %v1334
        %v4264 = vunpack.c.h.b16 %v1334
        %v4265 = vunpack.c.l.b16 %v1335
        %v4266 = vunpack.c.h.b16 %v1335
        %v4267 = vunpack.c.l.b16 %v1336
        %v4268 = vunpack.c.h.b16 %v1336
        %v4269 = vunpack.c.l.b16 %v1337
        %v4270 = vunpack.c.h.b16 %v1337
        %v4271 = vunpack.c.l.b16 %v1338
        %v4272 = vunpack.c.h.b16 %v1338
        %v4273 = vunpack.c.l.b16 %v1339
        %v4274 = vunpack.c.h.b16 %v1339
        %v4275 = vunpack.c.l.b16 %v1340
        %v4276 = vunpack.c.h.b16 %v1340
        %v4277 = vunpack.c.l.b16 %v1341
        %v4278 = vunpack.c.h.b16 %v1341
        %v4279 = vunpack.c.l.b16 %v1342
        %v4280 = vunpack.c.h.b16 %v1342
        %v4281 = vunpack.c.l.b16 %v1343
        %v4282 = vunpack.c.h.b16 %v1343
        %v4283 = vunpack.c.l.b16 %v1344
        %v4284 = vunpack.c.h.b16 %v1344
        %v4285 = vunpack.c.l.b16 %v1345
        %v4286 = vunpack.c.h.b16 %v1345
        %v4287 = vunpack.c.l.b16 %v1346
        %v4288 = vunpack.c.h.b16 %v1346
        %v4289 = vunpack.c.l.b16 %v1347
        %v4290 = vunpack.c.h.b16 %v1347
        %v4291 = vunpack.c.l.b16 %v1348
        %v4292 = vunpack.c.h.b16 %v1348
        %v4293 = vunpack.c.l.b16 %v1349
        %v4294 = vunpack.c.h.b16 %v1349
        %v4295 = vunpack.c.l.b16 %v1350
        %v4296 = vunpack.c.h.b16 %v1350
        %v4297 = vunpack.c.l.b16 %v1351
        %v4298 = vunpack.c.h.b16 %v1351
        %v4299 = vunpack.c.l.b16 %v1352
        %v4300 = vunpack.c.h.b16 %v1352
        %v4301 = vunpack.c.l.b16 %v1353
        %v4302 = vunpack.c.h.b16 %v1353
        %v4303 = vunpack.c.l.b16 %v1354
        %v4304 = vunpack.c.h.b16 %v1354
        %v4305 = vunpack.c.l.b16 %v1355
        %v4306 = vunpack.c.h.b16 %v1355
        %v4307 = vunpack.c.l.b16 %v1356
        %v4308 = vunpack.c.h.b16 %v1356
        %v4309 = vunpack.c.l.b16 %v1357
        %v4310 = vunpack.c.h.b16 %v1357
        %v4311 = vunpack.c.l.b16 %v1358
        %v4312 = vunpack.c.h.b16 %v1358
        %v4313 = vunpack.c.l.b16 %v1359
        %v4314 = vunpack.c.h.b16 %v1359
        %v4315 = vunpack.c.l.b16 %v1360
        %v4316 = vunpack.c.h.b16 %v1360
        %v4317 = vunpack.c.l.b16 %v1361
        %v4318 = vunpack.c.h.b16 %v1361
        %v4319 = vunpack.c.l.b16 %v1362
        %v4320 = vunpack.c.h.b16 %v1362
        %v4321 = vunpack.c.l.b16 %v1363
        %v4322 = vunpack.c.h.b16 %v1363
        %v4323 = vunpack.c.l.b16 %v1364
        %v4324 = vunpack.c.h.b16 %v1364
        %v4325 = vunpack.c.l.b16 %v1365
        %v4326 = vunpack.c.h.b16 %v1365
        %v4327 = vunpack.c.l.b16 %v1366
        %v4328 = vunpack.c.h.b16 %v1366
        %v4329 = vunpack.c.l.b16 %v1367
        %v4330 = vunpack.c.h.b16 %v1367
        %v4331 = vunpack.c.l.b16 %v1368
        %v4332 = vunpack.c.h.b16 %v1368
        %v4333 = vunpack.c.l.b16 %v1369
        %v4334 = vunpack.c.h.b16 %v1369
        %v4335 = vunpack.c.l.b16 %v1370
        %v4336 = vunpack.c.h.b16 %v1370
        %v4337 = vunpack.c.l.b16 %v1371
        %v4338 = vunpack.c.h.b16 %v1371
        %v4339 = vunpack.c.l.b16 %v1372
        %v4340 = vunpack.c.h.b16 %v1372
        %v4341 = vunpack.c.l.b16 %v1373
        %v4342 = vunpack.c.h.b16 %v1373
        %v4343 = vunpack.c.l.b16 %v1374
        %v4344 = vunpack.c.h.b16 %v1374
        %v4345 = vunpack.c.l.b16 %v1375
        %v4346 = vunpack.c.h.b16 %v1375
        %v4347 = vunpack.c.l.b16 %v1376
        %v4348 = vunpack.c.h.b16 %v1376
        %v4349 = vunpack.c.l.b16 %v1377
        %v4350 = vunpack.c.h.b16 %v1377
        %v4351 = vunpack.c.l.b16 %v1378
        %v4352 = vunpack.c.h.b16 %v1378
        %v4353 = vunpack.c.l.b16 %v1379
        %v4354 = vunpack.c.h.b16 %v1379
        %v4355 = vunpack.c.l.b16 %v1380
        %v4356 = vunpack.c.h.b16 %v1380
        %v4357 = vunpack.c.l.b16 %v1381
        %v4358 = vunpack.c.h.b16 %v1381
        %v4359 = vunpack.c.l.b16 %v1382
        %v4360 = vunpack.c.h.b16 %v1382
        %v4361 = vunpack.c.l.b16 %v1383
        %v4362 = vunpack.c.h.b16 %v1383
        %v4363 = vunpack.c.l.b16 %v1384
        %v4364 = vunpack.c.h.b16 %v1384
        %v4365 = vunpack.c.l.b16 %v1385
        %v4366 = vunpack.c.h.b16 %v1385
        %v4367 = vunpack.c.l.b16 %v1386
        %v4368 = vunpack.c.h.b16 %v1386
        %v4369 = vunpack.c.l.b16 %v1387
        %v4370 = vunpack.c.h.b16 %v1387
        %v4371 = vunpack.c.l.b16 %v1388
        %v4372 = vunpack.c.h.b16 %v1388
        %v4373 = vunpack.c.l.b16 %v1389
        %v4374 = vunpack.c.h.b16 %v1389
        %v4375 = vunpack.c.l.b16 %v1390
        %v4376 = vunpack.c.h.b16 %v1390
        %v4377 = vunpack.c.l.b16 %v1391
        %v4378 = vunpack.c.h.b16 %v1391
        %v4379 = vunpack.c.l.b16 %v1392
        %v4380 = vunpack.c.h.b16 %v1392
        %v4381 = vunpack.c.l.b16 %v1393
        %v4382 = vunpack.c.h.b16 %v1393
        %v4383 = vunpack.c.l.b16 %v1394
        %v4384 = vunpack.c.h.b16 %v1394
        %v4385 = vunpack.c.l.b16 %v1395
        %v4386 = vunpack.c.h.b16 %v1395
        %v4387 = vunpack.c.l.b16 %v1396
        %v4388 = vunpack.c.h.b16 %v1396
        %v4389 = vunpack.c.l.b16 %v1397
        %v4390 = vunpack.c.h.b16 %v1397
        %v4391 = vunpack.c.l.b16 %v1398
        %v4392 = vunpack.c.h.b16 %v1398
        %v4393 = vunpack.c.l.b16 %v1399
        %v4394 = vunpack.c.h.b16 %v1399
        %v4395 = vunpack.c.l.b16 %v1400
        %v4396 = vunpack.c.h.b16 %v1400
        %v4397 = vunpack.c.l.b16 %v1401
        %v4398 = vunpack.c.h.b16 %v1401
        %v4399 = vunpack.c.l.b16 %v1402
        %v4400 = vunpack.c.h.b16 %v1402
        %v4401 = vunpack.c.l.b16 %v1403
        %v4402 = vunpack.c.h.b16 %v1403
        %v4403 = vunpack.c.l.b16 %v1404
        %v4404 = vunpack.c.h.b16 %v1404
        %v4405 = vunpack.c.l.b16 %v1405
        %v4406 = vunpack.c.h.b16 %v1405
        %v4407 = vpack.c.b16 %v2415, %v2407
        %v4408 = vpack.c.b16 %v2416, %v2408
        %v4409 = vpack.c.b16 %v2417, %v2409
        %v4410 = vpack.c.b16 %v2418, %v2410
        %v4411 = vpack.c.b16 %v2419, %v2411
        %v4412 = vpack.c.b16 %v2420, %v2412
        %v4413 = vpack.c.b16 %v2421, %v2413
        %v4414 = vpack.c.b16 %v2422, %v2414
        %v4415 = vpack.c.b16 %v2431, %v2423
        %v4416 = vpack.c.b16 %v2432, %v2424
        %v4417 = vpack.c.b16 %v2433, %v2425
        %v4418 = vpack.c.b16 %v2434, %v2426
        %v4419 = vpack.c.b16 %v2435, %v2427
        %v4420 = vpack.c.b16 %v2436, %v2428
        %v4421 = vpack.c.b16 %v2437, %v2429
        %v4422 = vpack.c.b16 %v2438, %v2430
        %v4423 = vpack.c.b16 %v2447, %v2439
        %v4424 = vpack.c.b16 %v2448, %v2440
        %v4425 = vpack.c.b16 %v2449, %v2441
        %v4426 = vpack.c.b16 %v2450, %v2442
        %v4427 = vpack.c.b16 %v2451, %v2443
        %v4428 = vpack.c.b16 %v2452, %v2444
        %v4429 = vpack.c.b16 %v2453, %v2445
        %v4430 = vpack.c.b16 %v2454, %v2446
        %v4431 = vpack.c.b16 %v2463, %v2455
        %v4432 = vpack.c.b16 %v2464, %v2456
        %v4433 = vpack.c.b16 %v2465, %v2457
        %v4434 = vpack.c.b16 %v2466, %v2458
        %v4435 = vpack.c.b16 %v2467, %v2459
        %v4436 = vpack.c.b16 %v2468, %v2460
        %v4437 = vpack.c.b16 %v2469, %v2461
        %v4438 = vpack.c.b16 %v2470, %v2462
        %v4439 = vpack.c.b16 %v2479, %v2471
        %v4440 = vpack.c.b16 %v2480, %v2472
        %v4441 = vpack.c.b16 %v2481, %v2473
        %v4442 = vpack.c.b16 %v2482, %v2474
        %v4443 = vpack.c.b16 %v2483, %v2475
        %v4444 = vpack.c.b16 %v2484, %v2476
        %v4445 = vpack.c.b16 %v2485, %v2477
        %v4446 = vpack.c.b16 %v2486, %v2478
        %v4447 = vpack.c.b16 %v2495, %v2487
        %v4448 = vpack.c.b16 %v2496, %v2488
        %v4449 = vpack.c.b16 %v2497, %v2489
        %v4450 = vpack.c.b16 %v2498, %v2490
        %v4451 = vpack.c.b16 %v2499, %v2491
        %v4452 = vpack.c.b16 %v2500, %v2492
        %v4453 = vpack.c.b16 %v2501, %v2493
        %v4454 = vpack.c.b16 %v2502, %v2494
        %v4455 = vpack.c.b16 %v2511, %v2503
        %v4456 = vpack.c.b16 %v2512, %v2504
        %v4457 = vpack.c.b16 %v2513, %v2505
        %v4458 = vpack.c.b16 %v2514, %v2506
        %v4459 = vpack.c.b16 %v2515, %v2507
        %v4460 = vpack.c.b16 %v2516, %v2508
        %v4461 = vpack.c.b16 %v2517, %v2509
        %v4462 = vpack.c.b16 %v2518, %v2510
        %v4463 = vpack.c.b16 %v2527, %v2519
        %v4464 = vpack.c.b16 %v2528, %v2520
        %v4465 = vpack.c.b16 %v2529, %v2521
        %v4466 = vpack.c.b16 %v2530, %v2522
        %v4467 = vpack.c.b16 %v2531, %v2523
        %v4468 = vpack.c.b16 %v2532, %v2524
        %v4469 = vpack.c.b16 %v2533, %v2525
        %v4470 = vpack.c.b16 %v2534, %v2526
        %v4471 = vpack.c.b16 %v2543, %v2535
        %v4472 = vpack.c.b16 %v2544, %v2536
        %v4473 = vpack.c.b16 %v2545, %v2537
        %v4474 = vpack.c.b16 %v2546, %v2538
        %v4475 = vpack.c.b16 %v2547, %v2539
        %v4476 = vpack.c.b16 %v2548, %v2540
        %v4477 = vpack.c.b16 %v2549, %v2541
        %v4478 = vpack.c.b16 %v2550, %v2542
        %v4479 = vpack.c.b16 %v2559, %v2551
        %v4480 = vpack.c.b16 %v2560, %v2552
        %v4481 = vpack.c.b16 %v2561, %v2553
        %v4482 = vpack.c.b16 %v2562, %v2554
        %v4483 = vpack.c.b16 %v2563, %v2555
        %v4484 = vpack.c.b16 %v2564, %v2556
        %v4485 = vpack.c.b16 %v2565, %v2557
        %v4486 = vpack.c.b16 %v2566, %v2558
        %v4487 = vpack.c.b16 %v2575, %v2567
        %v4488 = vpack.c.b16 %v2576, %v2568
        %v4489 = vpack.c.b16 %v2577, %v2569
        %v4490 = vpack.c.b16 %v2578, %v2570
        %v4491 = vpack.c.b16 %v2579, %v2571
        %v4492 = vpack.c.b16 %v2580, %v2572
        %v4493 = vpack.c.b16 %v2581, %v2573
        %v4494 = vpack.c.b16 %v2582, %v2574
        %v4495 = vpack.c.b16 %v2591, %v2583
        %v4496 = vpack.c.b16 %v2592, %v2584
        %v4497 = vpack.c.b16 %v2593, %v2585
        %v4498 = vpack.c.b16 %v2594, %v2586
        %v4499 = vpack.c.b16 %v2595, %v2587
        %v4500 = vpack.c.b16 %v2596, %v2588
        %v4501 = vpack.c.b16 %v2597, %v2589
        %v4502 = vpack.c.b16 %v2598, %v2590
        %v4503 = vpack.c.b16 %v2607, %v2599
        %v4504 = vpack.c.b16 %v2608, %v2600
        %v4505 = vpack.c.b16 %v2609, %v2601
        %v4506 = vpack.c.b16 %v2610, %v2602
        %v4507 = vpack.c.b16 %v2611, %v2603
        %v4508 = vpack.c.b16 %v2612, %v2604
        %v4509 = vpack.c.b16 %v2613, %v2605
        %v4510 = vpack.c.b16 %v2614, %v2606
        %v4511 = vpack.c.b16 %v2623, %v2615
        %v4512 = vpack.c.b16 %v2624, %v2616
        %v4513 = vpack.c.b16 %v2625, %v2617
        %v4514 = vpack.c.b16 %v2626, %v2618
        %v4515 = vpack.c.b16 %v2627, %v2619
        %v4516 = vpack.c.b16 %v2628, %v2620
        %v4517 = vpack.c.b16 %v2629, %v2621
        %v4518 = vpack.c.b16 %v2630, %v2622
        %v4519 = vpack.c.b16 %v2639, %v2631
        %v4520 = vpack.c.b16 %v2640, %v2632
        %v4521 = vpack.c.b16 %v2641, %v2633
        %v4522 = vpack.c.b16 %v2642, %v2634
        %v4523 = vpack.c.b16 %v2643, %v2635
        %v4524 = vpack.c.b16 %v2644, %v2636
        %v4525 = vpack.c.b16 %v2645, %v2637
        %v4526 = vpack.c.b16 %v2646, %v2638
        %v4527 = vpack.c.b16 %v2655, %v2647
        %v4528 = vpack.c.b16 %v2656, %v2648
        %v4529 = vpack.c.b16 %v2657, %v2649
        %v4530 = vpack.c.b16 %v2658, %v2650
        %v4531 = vpack.c.b16 %v2659, %v2651
        %v4532 = vpack.c.b16 %v2660, %v2652
        %v4533 = vpack.c.b16 %v2661, %v2653
        %v4534 = vpack.c.b16 %v2662, %v2654
        %v4535 = vpack.c.b16 %v2671, %v2663
        %v4536 = vpack.c.b16 %v2672, %v2664
        %v4537 = vpack.c.b16 %v2673, %v2665
        %v4538 = vpack.c.b16 %v2674, %v2666
        %v4539 = vpack.c.b16 %v2675, %v2667
        %v4540 = vpack.c.b16 %v2676, %v2668
        %v4541 = vpack.c.b16 %v2677, %v2669
        %v4542 = vpack.c.b16 %v2678, %v2670
        %v4543 = vpack.c.b16 %v2687, %v2679
        %v4544 = vpack.c.b16 %v2688, %v2680
        %v4545 = vpack.c.b16 %v2689, %v2681
        %v4546 = vpack.c.b16 %v2690, %v2682
        %v4547 = vpack.c.b16 %v2691, %v2683
        %v4548 = vpack.c.b16 %v2692, %v2684
        %v4549 = vpack.c.b16 %v2693, %v2685
        %v4550 = vpack.c.b16 %v2694, %v2686
        %v4551 = vpack.c.b16 %v2703, %v2695
        %v4552 = vpack.c.b16 %v2704, %v2696
        %v4553 = vpack.c.b16 %v2705, %v2697
        %v4554 = vpack.c.b16 %v2706, %v2698
        %v4555 = vpack.c.b16 %v2707, %v2699
        %v4556 = vpack.c.b16 %v2708, %v2700
        %v4557 = vpack.c.b16 %v2709, %v2701
        %v4558 = vpack.c.b16 %v2710, %v2702
        %v4559 = vpack.c.b16 %v2719, %v2711
        %v4560 = vpack.c.b16 %v2720, %v2712
        %v4561 = vpack.c.b16 %v2721, %v2713
        %v4562 = vpack.c.b16 %v2722, %v2714
        %v4563 = vpack.c.b16 %v2723, %v2715
        %v4564 = vpack.c.b16 %v2724, %v2716
        %v4565 = vpack.c.b16 %v2725, %v2717
        %v4566 = vpack.c.b16 %v2726, %v2718
        %v4567 = vpack.c.b16 %v2735, %v2727
        %v4568 = vpack.c.b16 %v2736, %v2728
        %v4569 = vpack.c.b16 %v2737, %v2729
        %v4570 = vpack.c.b16 %v2738, %v2730
        %v4571 = vpack.c.b16 %v2739, %v2731
        %v4572 = vpack.c.b16 %v2740, %v2732
        %v4573 = vpack.c.b16 %v2741, %v2733
        %v4574 = vpack.c.b16 %v2742, %v2734
        %v4575 = vpack.c.b16 %v2751, %v2743
        %v4576 = vpack.c.b16 %v2752, %v2744
        %v4577 = vpack.c.b16 %v2753, %v2745
        %v4578 = vpack.c.b16 %v2754, %v2746
        %v4579 = vpack.c.b16 %v2755, %v2747
        %v4580 = vpack.c.b16 %v2756, %v2748
        %v4581 = vpack.c.b16 %v2757, %v2749
        %v4582 = vpack.c.b16 %v2758, %v2750
        %v4583 = vpack.c.b16 %v2767, %v2759
        %v4584 = vpack.c.b16 %v2768, %v2760
        %v4585 = vpack.c.b16 %v2769, %v2761
        %v4586 = vpack.c.b16 %v2770, %v2762
        %v4587 = vpack.c.b16 %v2771, %v2763
        %v4588 = vpack.c.b16 %v2772, %v2764
        %v4589 = vpack.c.b16 %v2773, %v2765
        %v4590 = vpack.c.b16 %v2774, %v2766
        %v4591 = vpack.c.b16 %v2783, %v2775
        %v4592 = vpack.c.b16 %v2784, %v2776
        %v4593 = vpack.c.b16 %v2785, %v2777
        %v4594 = vpack.c.b16 %v2786, %v2778
        %v4595 = vpack.c.b16 %v2787, %v2779
        %v4596 = vpack.c.b16 %v2788, %v2780
        %v4597 = vpack.c.b16 %v2789, %v2781
        %v4598 = vpack.c.b16 %v2790, %v2782
        %v4599 = vpack.c.b16 %v2799, %v2791
        %v4600 = vpack.c.b16 %v2800, %v2792
        %v4601 = vpack.c.b16 %v2801, %v2793
        %v4602 = vpack.c.b16 %v2802, %v2794
        %v4603 = vpack.c.b16 %v2803, %v2795
        %v4604 = vpack.c.b16 %v2804, %v2796
        %v4605 = vpack.c.b16 %v2805, %v2797
        %v4606 = vpack.c.b16 %v2806, %v2798
        %v4607 = vpack.c.b16 %v2815, %v2807
        %v4608 = vpack.c.b16 %v2816, %v2808
        %v4609 = vpack.c.b16 %v2817, %v2809
        %v4610 = vpack.c.b16 %v2818, %v2810
        %v4611 = vpack.c.b16 %v2819, %v2811
        %v4612 = vpack.c.b16 %v2820, %v2812
        %v4613 = vpack.c.b16 %v2821, %v2813
        %v4614 = vpack.c.b16 %v2822, %v2814
        %v4615 = vpack.c.b16 %v2831, %v2823
        %v4616 = vpack.c.b16 %v2832, %v2824
        %v4617 = vpack.c.b16 %v2833, %v2825
        %v4618 = vpack.c.b16 %v2834, %v2826
        %v4619 = vpack.c.b16 %v2835, %v2827
        %v4620 = vpack.c.b16 %v2836, %v2828
        %v4621 = vpack.c.b16 %v2837, %v2829
        %v4622 = vpack.c.b16 %v2838, %v2830
        %v4623 = vpack.c.b16 %v2847, %v2839
        %v4624 = vpack.c.b16 %v2848, %v2840
        %v4625 = vpack.c.b16 %v2849, %v2841
        %v4626 = vpack.c.b16 %v2850, %v2842
        %v4627 = vpack.c.b16 %v2851, %v2843
        %v4628 = vpack.c.b16 %v2852, %v2844
        %v4629 = vpack.c.b16 %v2853, %v2845
        %v4630 = vpack.c.b16 %v2854, %v2846
        %v4631 = vpack.c.b16 %v2863, %v2855
        %v4632 = vpack.c.b16 %v2864, %v2856
        %v4633 = vpack.c.b16 %v2865, %v2857
        %v4634 = vpack.c.b16 %v2866, %v2858
        %v4635 = vpack.c.b16 %v2867, %v2859
        %v4636 = vpack.c.b16 %v2868, %v2860
        %v4637 = vpack.c.b16 %v2869, %v2861
        %v4638 = vpack.c.b16 %v2870, %v2862
        %v4639 = vpack.c.b16 %v2879, %v2871
        %v4640 = vpack.c.b16 %v2880, %v2872
        %v4641 = vpack.c.b16 %v2881, %v2873
        %v4642 = vpack.c.b16 %v2882, %v2874
        %v4643 = vpack.c.b16 %v2883, %v2875
        %v4644 = vpack.c.b16 %v2884, %v2876
        %v4645 = vpack.c.b16 %v2885, %v2877
        %v4646 = vpack.c.b16 %v2886, %v2878
        %v4647 = vpack.c.b16 %v2895, %v2887
        %v4648 = vpack.c.b16 %v2896, %v2888
        %v4649 = vpack.c.b16 %v2897, %v2889
        %v4650 = vpack.c.b16 %v2898, %v2890
        %v4651 = vpack.c.b16 %v2899, %v2891
        %v4652 = vpack.c.b16 %v2900, %v2892
        %v4653 = vpack.c.b16 %v2901, %v2893
        %v4654 = vpack.c.b16 %v2902, %v2894
        %v4655 = vpack.c.b16 %v2911, %v2903
        %v4656 = vpack.c.b16 %v2912, %v2904
        %v4657 = vpack.c.b16 %v2913, %v2905
        %v4658 = vpack.c.b16 %v2914, %v2906
        %v4659 = vpack.c.b16 %v2915, %v2907
        %v4660 = vpack.c.b16 %v2916, %v2908
        %v4661 = vpack.c.b16 %v2917, %v2909
        %v4662 = vpack.c.b16 %v2918, %v2910
        %v4663 = vpack.c.b16 %v2927, %v2919
        %v4664 = vpack.c.b16 %v2928, %v2920
        %v4665 = vpack.c.b16 %v2929, %v2921
        %v4666 = vpack.c.b16 %v2930, %v2922
        %v4667 = vpack.c.b16 %v2931, %v2923
        %v4668 = vpack.c.b16 %v2932, %v2924
        %v4669 = vpack.c.b16 %v2933, %v2925
        %v4670 = vpack.c.b16 %v2934, %v2926
        %v4671 = vpack.c.b16 %v2943, %v2935
        %v4672 = vpack.c.b16 %v2944, %v2936
        %v4673 = vpack.c.b16 %v2945, %v2937
        %v4674 = vpack.c.b16 %v2946, %v2938
        %v4675 = vpack.c.b16 %v2947, %v2939
        %v4676 = vpack.c.b16 %v2948, %v2940
        %v4677 = vpack.c.b16 %v2949, %v2941
        %v4678 = vpack.c.b16 %v2950, %v2942
        %v4679 = vpack.c.b16 %v2959, %v2951
        %v4680 = vpack.c.b16 %v2960, %v2952
        %v4681 = vpack.c.b16 %v2961, %v2953
        %v4682 = vpack.c.b16 %v2962, %v2954
        %v4683 = vpack.c.b16 %v2963, %v2955
        %v4684 = vpack.c.b16 %v2964, %v2956
        %v4685 = vpack.c.b16 %v2965, %v2957
        %v4686 = vpack.c.b16 %v2966, %v2958
        %v4687 = vpack.c.b16 %v2975, %v2967
        %v4688 = vpack.c.b16 %v2976, %v2968
        %v4689 = vpack.c.b16 %v2977, %v2969
        %v4690 = vpack.c.b16 %v2978, %v2970
        %v4691 = vpack.c.b16 %v2979, %v2971
        %v4692 = vpack.c.b16 %v2980, %v2972
        %v4693 = vpack.c.b16 %v2981, %v2973
        %v4694 = vpack.c.b16 %v2982, %v2974
        %v4695 = vpack.c.b16 %v2991, %v2983
        %v4696 = vpack.c.b16 %v2992, %v2984
        %v4697 = vpack.c.b16 %v2993, %v2985
        %v4698 = vpack.c.b16 %v2994, %v2986
        %v4699 = vpack.c.b16 %v2995, %v2987
        %v4700 = vpack.c.b16 %v2996, %v2988
        %v4701 = vpack.c.b16 %v2997, %v2989
        %v4702 = vpack.c.b16 %v2998, %v2990
        %v4703 = vpack.c.b16 %v3007, %v2999
        %v4704 = vpack.c.b16 %v3008, %v3000
        %v4705 = vpack.c.b16 %v3009, %v3001
        %v4706 = vpack.c.b16 %v3010, %v3002
        %v4707 = vpack.c.b16 %v3011, %v3003
        %v4708 = vpack.c.b16 %v3012, %v3004
        %v4709 = vpack.c.b16 %v3013, %v3005
        %v4710 = vpack.c.b16 %v3014, %v3006
        %v4711 = vpack.c.b16 %v3023, %v3015
        %v4712 = vpack.c.b16 %v3024, %v3016
        %v4713 = vpack.c.b16 %v3025, %v3017
        %v4714 = vpack.c.b16 %v3026, %v3018
        %v4715 = vpack.c.b16 %v3027, %v3019
        %v4716 = vpack.c.b16 %v3028, %v3020
        %v4717 = vpack.c.b16 %v3029, %v3021
        %v4718 = vpack.c.b16 %v3030, %v3022
        %v4719 = vpack.c.b16 %v3039, %v3031
        %v4720 = vpack.c.b16 %v3040, %v3032
        %v4721 = vpack.c.b16 %v3041, %v3033
        %v4722 = vpack.c.b16 %v3042, %v3034
        %v4723 = vpack.c.b16 %v3043, %v3035
        %v4724 = vpack.c.b16 %v3044, %v3036
        %v4725 = vpack.c.b16 %v3045, %v3037
        %v4726 = vpack.c.b16 %v3046, %v3038
        %v4727 = vpack.c.b16 %v3055, %v3047
        %v4728 = vpack.c.b16 %v3056, %v3048
        %v4729 = vpack.c.b16 %v3057, %v3049
        %v4730 = vpack.c.b16 %v3058, %v3050
        %v4731 = vpack.c.b16 %v3059, %v3051
        %v4732 = vpack.c.b16 %v3060, %v3052
        %v4733 = vpack.c.b16 %v3061, %v3053
        %v4734 = vpack.c.b16 %v3062, %v3054
        %v4735 = vpack.c.b16 %v3071, %v3063
        %v4736 = vpack.c.b16 %v3072, %v3064
        %v4737 = vpack.c.b16 %v3073, %v3065
        %v4738 = vpack.c.b16 %v3074, %v3066
        %v4739 = vpack.c.b16 %v3075, %v3067
        %v4740 = vpack.c.b16 %v3076, %v3068
        %v4741 = vpack.c.b16 %v3077, %v3069
        %v4742 = vpack.c.b16 %v3078, %v3070
        %v4743 = vpack.c.b16 %v3087, %v3079
        %v4744 = vpack.c.b16 %v3088, %v3080
        %v4745 = vpack.c.b16 %v3089, %v3081
        %v4746 = vpack.c.b16 %v3090, %v3082
        %v4747 = vpack.c.b16 %v3091, %v3083
        %v4748 = vpack.c.b16 %v3092, %v3084
        %v4749 = vpack.c.b16 %v3093, %v3085
        %v4750 = vpack.c.b16 %v3094, %v3086
        %v4751 = vpack.c.b16 %v3103, %v3095
        %v4752 = vpack.c.b16 %v3104, %v3096
        %v4753 = vpack.c.b16 %v3105, %v3097
        %v4754 = vpack.c.b16 %v3106, %v3098
        %v4755 = vpack.c.b16 %v3107, %v3099
        %v4756 = vpack.c.b16 %v3108, %v3100
        %v4757 = vpack.c.b16 %v3109, %v3101
        %v4758 = vpack.c.b16 %v3110, %v3102
        %v4759 = vpack.c.b16 %v3119, %v3111
        %v4760 = vpack.c.b16 %v3120, %v3112
        %v4761 = vpack.c.b16 %v3121, %v3113
        %v4762 = vpack.c.b16 %v3122, %v3114
        %v4763 = vpack.c.b16 %v3123, %v3115
        %v4764 = vpack.c.b16 %v3124, %v3116
        %v4765 = vpack.c.b16 %v3125, %v3117
        %v4766 = vpack.c.b16 %v3126, %v3118
        %v4767 = vpack.c.b16 %v3135, %v3127
        %v4768 = vpack.c.b16 %v3136, %v3128
        %v4769 = vpack.c.b16 %v3137, %v3129
        %v4770 = vpack.c.b16 %v3138, %v3130
        %v4771 = vpack.c.b16 %v3139, %v3131
        %v4772 = vpack.c.b16 %v3140, %v3132
        %v4773 = vpack.c.b16 %v3141, %v3133
        %v4774 = vpack.c.b16 %v3142, %v3134
        %v4775 = vpack.c.b16 %v3151, %v3143
        %v4776 = vpack.c.b16 %v3152, %v3144
        %v4777 = vpack.c.b16 %v3153, %v3145
        %v4778 = vpack.c.b16 %v3154, %v3146
        %v4779 = vpack.c.b16 %v3155, %v3147
        %v4780 = vpack.c.b16 %v3156, %v3148
        %v4781 = vpack.c.b16 %v3157, %v3149
        %v4782 = vpack.c.b16 %v3158, %v3150
        %v4783 = vpack.c.b16 %v3167, %v3159
        %v4784 = vpack.c.b16 %v3168, %v3160
        %v4785 = vpack.c.b16 %v3169, %v3161
        %v4786 = vpack.c.b16 %v3170, %v3162
        %v4787 = vpack.c.b16 %v3171, %v3163
        %v4788 = vpack.c.b16 %v3172, %v3164
        %v4789 = vpack.c.b16 %v3173, %v3165
        %v4790 = vpack.c.b16 %v3174, %v3166
        %v4791 = vpack.c.b16 %v3183, %v3175
        %v4792 = vpack.c.b16 %v3184, %v3176
        %v4793 = vpack.c.b16 %v3185, %v3177
        %v4794 = vpack.c.b16 %v3186, %v3178
        %v4795 = vpack.c.b16 %v3187, %v3179
        %v4796 = vpack.c.b16 %v3188, %v3180
        %v4797 = vpack.c.b16 %v3189, %v3181
        %v4798 = vpack.c.b16 %v3190, %v3182
        %v4799 = vpack.c.b16 %v3199, %v3191
        %v4800 = vpack.c.b16 %v3200, %v3192
        %v4801 = vpack.c.b16 %v3201, %v3193
        %v4802 = vpack.c.b16 %v3202, %v3194
        %v4803 = vpack.c.b16 %v3203, %v3195
        %v4804 = vpack.c.b16 %v3204, %v3196
        %v4805 = vpack.c.b16 %v3205, %v3197
        %v4806 = vpack.c.b16 %v3206, %v3198
        %v4807 = vpack.c.b16 %v3215, %v3207
        %v4808 = vpack.c.b16 %v3216, %v3208
        %v4809 = vpack.c.b16 %v3217, %v3209
        %v4810 = vpack.c.b16 %v3218, %v3210
        %v4811 = vpack.c.b16 %v3219, %v3211
        %v4812 = vpack.c.b16 %v3220, %v3212
        %v4813 = vpack.c.b16 %v3221, %v3213
        %v4814 = vpack.c.b16 %v3222, %v3214
        %v4815 = vpack.c.b16 %v3231, %v3223
        %v4816 = vpack.c.b16 %v3232, %v3224
        %v4817 = vpack.c.b16 %v3233, %v3225
        %v4818 = vpack.c.b16 %v3234, %v3226
        %v4819 = vpack.c.b16 %v3235, %v3227
        %v4820 = vpack.c.b16 %v3236, %v3228
        %v4821 = vpack.c.b16 %v3237, %v3229
        %v4822 = vpack.c.b16 %v3238, %v3230
        %v4823 = vpack.c.b16 %v3247, %v3239
        %v4824 = vpack.c.b16 %v3248, %v3240
        %v4825 = vpack.c.b16 %v3249, %v3241
        %v4826 = vpack.c.b16 %v3250, %v3242
        %v4827 = vpack.c.b16 %v3251, %v3243
        %v4828 = vpack.c.b16 %v3252, %v3244
        %v4829 = vpack.c.b16 %v3253, %v3245
        %v4830 = vpack.c.b16 %v3254, %v3246
        %v4831 = vpack.c.b16 %v3263, %v3255
        %v4832 = vpack.c.b16 %v3264, %v3256
        %v4833 = vpack.c.b16 %v3265, %v3257
        %v4834 = vpack.c.b16 %v3266, %v3258
        %v4835 = vpack.c.b16 %v3267, %v3259
        %v4836 = vpack.c.b16 %v3268, %v3260
        %v4837 = vpack.c.b16 %v3269, %v3261
        %v4838 = vpack.c.b16 %v3270, %v3262
        %v4839 = vpack.c.b16 %v3279, %v3271
        %v4840 = vpack.c.b16 %v3280, %v3272
        %v4841 = vpack.c.b16 %v3281, %v3273
        %v4842 = vpack.c.b16 %v3282, %v3274
        %v4843 = vpack.c.b16 %v3283, %v3275
        %v4844 = vpack.c.b16 %v3284, %v3276
        %v4845 = vpack.c.b16 %v3285, %v3277
        %v4846 = vpack.c.b16 %v3286, %v3278
        %v4847 = vpack.c.b16 %v3295, %v3287
        %v4848 = vpack.c.b16 %v3296, %v3288
        %v4849 = vpack.c.b16 %v3297, %v3289
        %v4850 = vpack.c.b16 %v3298, %v3290
        %v4851 = vpack.c.b16 %v3299, %v3291
        %v4852 = vpack.c.b16 %v3300, %v3292
        %v4853 = vpack.c.b16 %v3301, %v3293
        %v4854 = vpack.c.b16 %v3302, %v3294
        %v4855 = vpack.c.b16 %v3311, %v3303
        %v4856 = vpack.c.b16 %v3312, %v3304
        %v4857 = vpack.c.b16 %v3313, %v3305
        %v4858 = vpack.c.b16 %v3314, %v3306
        %v4859 = vpack.c.b16 %v3315, %v3307
        %v4860 = vpack.c.b16 %v3316, %v3308
        %v4861 = vpack.c.b16 %v3317, %v3309
        %v4862 = vpack.c.b16 %v3318, %v3310
        %v4863 = vpack.c.b16 %v3327, %v3319
        %v4864 = vpack.c.b16 %v3328, %v3320
        %v4865 = vpack.c.b16 %v3329, %v3321
        %v4866 = vpack.c.b16 %v3330, %v3322
        %v4867 = vpack.c.b16 %v3331, %v3323
        %v4868 = vpack.c.b16 %v3332, %v3324
        %v4869 = vpack.c.b16 %v3333, %v3325
        %v4870 = vpack.c.b16 %v3334, %v3326
        %v4871 = vpack.c.b16 %v3343, %v3335
        %v4872 = vpack.c.b16 %v3344, %v3336
        %v4873 = vpack.c.b16 %v3345, %v3337
        %v4874 = vpack.c.b16 %v3346, %v3338
        %v4875 = vpack.c.b16 %v3347, %v3339
        %v4876 = vpack.c.b16 %v3348, %v3340
        %v4877 = vpack.c.b16 %v3349, %v3341
        %v4878 = vpack.c.b16 %v3350, %v3342
        %v4879 = vpack.c.b16 %v3359, %v3351
        %v4880 = vpack.c.b16 %v3360, %v3352
        %v4881 = vpack.c.b16 %v3361, %v3353
        %v4882 = vpack.c.b16 %v3362, %v3354
        %v4883 = vpack.c.b16 %v3363, %v3355
        %v4884 = vpack.c.b16 %v3364, %v3356
        %v4885 = vpack.c.b16 %v3365, %v3357
        %v4886 = vpack.c.b16 %v3366, %v3358
        %v4887 = vpack.c.b16 %v3375, %v3367
        %v4888 = vpack.c.b16 %v3376, %v3368
        %v4889 = vpack.c.b16 %v3377, %v3369
        %v4890 = vpack.c.b16 %v3378, %v3370
        %v4891 = vpack.c.b16 %v3379, %v3371
        %v4892 = vpack.c.b16 %v3380, %v3372
        %v4893 = vpack.c.b16 %v3381, %v3373
        %v4894 = vpack.c.b16 %v3382, %v3374
        %v4895 = vpack.c.b16 %v3391, %v3383
        %v4896 = vpack.c.b16 %v3392, %v3384
        %v4897 = vpack.c.b16 %v3393, %v3385
        %v4898 = vpack.c.b16 %v3394, %v3386
        %v4899 = vpack.c.b16 %v3395, %v3387
        %v4900 = vpack.c.b16 %v3396, %v3388
        %v4901 = vpack.c.b16 %v3397, %v3389
        %v4902 = vpack.c.b16 %v3398, %v3390
        %v4903 = vpack.c.b16 %v3407, %v3399
        %v4904 = vpack.c.b16 %v3408, %v3400
        %v4905 = vpack.c.b16 %v3409, %v3401
        %v4906 = vpack.c.b16 %v3410, %v3402
        %v4907 = vpack.c.b16 %v3411, %v3403
        %v4908 = vpack.c.b16 %v3412, %v3404
        %v4909 = vpack.c.b16 %v3413, %v3405
        %v4910 = vpack.c.b16 %v3414, %v3406
        %v4911 = vpack.c.b16 %v3423, %v3415
        %v4912 = vpack.c.b16 %v3424, %v3416
        %v4913 = vpack.c.b16 %v3425, %v3417
        %v4914 = vpack.c.b16 %v3426, %v3418
        %v4915 = vpack.c.b16 %v3427, %v3419
        %v4916 = vpack.c.b16 %v3428, %v3420
        %v4917 = vpack.c.b16 %v3429, %v3421
        %v4918 = vpack.c.b16 %v3430, %v3422
        %v4919 = vpack.c.b16 %v3439, %v3431
        %v4920 = vpack.c.b16 %v3440, %v3432
        %v4921 = vpack.c.b16 %v3441, %v3433
        %v4922 = vpack.c.b16 %v3442, %v3434
        %v4923 = vpack.c.b16 %v3443, %v3435
        %v4924 = vpack.c.b16 %v3444, %v3436
        %v4925 = vpack.c.b16 %v3445, %v3437
        %v4926 = vpack.c.b16 %v3446, %v3438
        %v4927 = vpack.c.b16 %v3455, %v3447
        %v4928 = vpack.c.b16 %v3456, %v3448
        %v4929 = vpack.c.b16 %v3457, %v3449
        %v4930 = vpack.c.b16 %v3458, %v3450
        %v4931 = vpack.c.b16 %v3459, %v3451
        %v4932 = vpack.c.b16 %v3460, %v3452
        %v4933 = vpack.c.b16 %v3461, %v3453
        %v4934 = vpack.c.b16 %v3462, %v3454
        %v4935 = vpack.c.b16 %v3471, %v3463
        %v4936 = vpack.c.b16 %v3472, %v3464
        %v4937 = vpack.c.b16 %v3473, %v3465
        %v4938 = vpack.c.b16 %v3474, %v3466
        %v4939 = vpack.c.b16 %v3475, %v3467
        %v4940 = vpack.c.b16 %v3476, %v3468
        %v4941 = vpack.c.b16 %v3477, %v3469
        %v4942 = vpack.c.b16 %v3478, %v3470
        %v4943 = vpack.c.b16 %v3487, %v3479
        %v4944 = vpack.c.b16 %v3488, %v3480
        %v4945 = vpack.c.b16 %v3489, %v3481
        %v4946 = vpack.c.b16 %v3490, %v3482
        %v4947 = vpack.c.b16 %v3491, %v3483
        %v4948 = vpack.c.b16 %v3492, %v3484
        %v4949 = vpack.c.b16 %v3493, %v3485
        %v4950 = vpack.c.b16 %v3494, %v3486
        %v4951 = vpack.c.b16 %v3503, %v3495
        %v4952 = vpack.c.b16 %v3504, %v3496
        %v4953 = vpack.c.b16 %v3505, %v3497
        %v4954 = vpack.c.b16 %v3506, %v3498
        %v4955 = vpack.c.b16 %v3507, %v3499
        %v4956 = vpack.c.b16 %v3508, %v3500
        %v4957 = vpack.c.b16 %v3509, %v3501
        %v4958 = vpack.c.b16 %v3510, %v3502
        %v4959 = vpack.c.b16 %v3519, %v3511
        %v4960 = vpack.c.b16 %v3520, %v3512
        %v4961 = vpack.c.b16 %v3521, %v3513
        %v4962 = vpack.c.b16 %v3522, %v3514
        %v4963 = vpack.c.b16 %v3523, %v3515
        %v4964 = vpack.c.b16 %v3524, %v3516
        %v4965 = vpack.c.b16 %v3525, %v3517
        %v4966 = vpack.c.b16 %v3526, %v3518
        %v4967 = vpack.c.b16 %v3535, %v3527
        %v4968 = vpack.c.b16 %v3536, %v3528
        %v4969 = vpack.c.b16 %v3537, %v3529
        %v4970 = vpack.c.b16 %v3538, %v3530
        %v4971 = vpack.c.b16 %v3539, %v3531
        %v4972 = vpack.c.b16 %v3540, %v3532
        %v4973 = vpack.c.b16 %v3541, %v3533
        %v4974 = vpack.c.b16 %v3542, %v3534
        %v4975 = vpack.c.b16 %v3551, %v3543
        %v4976 = vpack.c.b16 %v3552, %v3544
        %v4977 = vpack.c.b16 %v3553, %v3545
        %v4978 = vpack.c.b16 %v3554, %v3546
        %v4979 = vpack.c.b16 %v3555, %v3547
        %v4980 = vpack.c.b16 %v3556, %v3548
        %v4981 = vpack.c.b16 %v3557, %v3549
        %v4982 = vpack.c.b16 %v3558, %v3550
        %v4983 = vpack.c.b16 %v3567, %v3559
        %v4984 = vpack.c.b16 %v3568, %v3560
        %v4985 = vpack.c.b16 %v3569, %v3561
        %v4986 = vpack.c.b16 %v3570, %v3562
        %v4987 = vpack.c.b16 %v3571, %v3563
        %v4988 = vpack.c.b16 %v3572, %v3564
        %v4989 = vpack.c.b16 %v3573, %v3565
        %v4990 = vpack.c.b16 %v3574, %v3566
        %v4991 = vpack.c.b16 %v3583, %v3575
        %v4992 = vpack.c.b16 %v3584, %v3576
        %v4993 = vpack.c.b16 %v3585, %v3577
        %v4994 = vpack.c.b16 %v3586, %v3578
        %v4995 = vpack.c.b16 %v3587, %v3579
        %v4996 = vpack.c.b16 %v3588, %v3580
        %v4997 = vpack.c.b16 %v3589, %v3581
        %v4998 = vpack.c.b16 %v3590, %v3582
        %v4999 = vpack.c.b16 %v3599, %v3591
        %v5000 = vpack.c.b16 %v3600, %v3592
        %v5001 = vpack.c.b16 %v3601, %v3593
        %v5002 = vpack.c.b16 %v3602, %v3594
        %v5003 = vpack.c.b16 %v3603, %v3595
        %v5004 = vpack.c.b16 %v3604, %v3596
        %v5005 = vpack.c.b16 %v3605, %v3597
        %v5006 = vpack.c.b16 %v3606, %v3598
        %v5007 = vpack.c.b16 %v3615, %v3607
        %v5008 = vpack.c.b16 %v3616, %v3608
        %v5009 = vpack.c.b16 %v3617, %v3609
        %v5010 = vpack.c.b16 %v3618, %v3610
        %v5011 = vpack.c.b16 %v3619, %v3611
        %v5012 = vpack.c.b16 %v3620, %v3612
        %v5013 = vpack.c.b16 %v3621, %v3613
        %v5014 = vpack.c.b16 %v3622, %v3614
        %v5015 = vpack.c.b16 %v3631, %v3623
        %v5016 = vpack.c.b16 %v3632, %v3624
        %v5017 = vpack.c.b16 %v3633, %v3625
        %v5018 = vpack.c.b16 %v3634, %v3626
        %v5019 = vpack.c.b16 %v3635, %v3627
        %v5020 = vpack.c.b16 %v3636, %v3628
        %v5021 = vpack.c.b16 %v3637, %v3629
        %v5022 = vpack.c.b16 %v3638, %v3630
        %v5023 = vpack.c.b16 %v3647, %v3639
        %v5024 = vpack.c.b16 %v3648, %v3640
        %v5025 = vpack.c.b16 %v3649, %v3641
        %v5026 = vpack.c.b16 %v3650, %v3642
        %v5027 = vpack.c.b16 %v3651, %v3643
        %v5028 = vpack.c.b16 %v3652, %v3644
        %v5029 = vpack.c.b16 %v3653, %v3645
        %v5030 = vpack.c.b16 %v3654, %v3646
        %v5031 = vpack.c.b16 %v3663, %v3655
        %v5032 = vpack.c.b16 %v3664, %v3656
        %v5033 = vpack.c.b16 %v3665, %v3657
        %v5034 = vpack.c.b16 %v3666, %v3658
        %v5035 = vpack.c.b16 %v3667, %v3659
        %v5036 = vpack.c.b16 %v3668, %v3660
        %v5037 = vpack.c.b16 %v3669, %v3661
        %v5038 = vpack.c.b16 %v3670, %v3662
        %v5039 = vpack.c.b16 %v3679, %v3671
        %v5040 = vpack.c.b16 %v3680, %v3672
        %v5041 = vpack.c.b16 %v3681, %v3673
        %v5042 = vpack.c.b16 %v3682, %v3674
        %v5043 = vpack.c.b16 %v3683, %v3675
        %v5044 = vpack.c.b16 %v3684, %v3676
        %v5045 = vpack.c.b16 %v3685, %v3677
        %v5046 = vpack.c.b16 %v3686, %v3678
        %v5047 = vpack.c.b16 %v3695, %v3687
        %v5048 = vpack.c.b16 %v3696, %v3688
        %v5049 = vpack.c.b16 %v3697, %v3689
        %v5050 = vpack.c.b16 %v3698, %v3690
        %v5051 = vpack.c.b16 %v3699, %v3691
        %v5052 = vpack.c.b16 %v3700, %v3692
        %v5053 = vpack.c.b16 %v3701, %v3693
        %v5054 = vpack.c.b16 %v3702, %v3694
        %v5055 = vpack.c.b16 %v3711, %v3703
        %v5056 = vpack.c.b16 %v3712, %v3704
        %v5057 = vpack.c.b16 %v3713, %v3705
        %v5058 = vpack.c.b16 %v3714, %v3706
        %v5059 = vpack.c.b16 %v3715, %v3707
        %v5060 = vpack.c.b16 %v3716, %v3708
        %v5061 = vpack.c.b16 %v3717, %v3709
        %v5062 = vpack.c.b16 %v3718, %v3710
        %v5063 = vpack.c.b16 %v3727, %v3719
        %v5064 = vpack.c.b16 %v3728, %v3720
        %v5065 = vpack.c.b16 %v3729, %v3721
        %v5066 = vpack.c.b16 %v3730, %v3722
        %v5067 = vpack.c.b16 %v3731, %v3723
        %v5068 = vpack.c.b16 %v3732, %v3724
        %v5069 = vpack.c.b16 %v3733, %v3725
        %v5070 = vpack.c.b16 %v3734, %v3726
        %v5071 = vpack.c.b16 %v3743, %v3735
        %v5072 = vpack.c.b16 %v3744, %v3736
        %v5073 = vpack.c.b16 %v3745, %v3737
        %v5074 = vpack.c.b16 %v3746, %v3738
        %v5075 = vpack.c.b16 %v3747, %v3739
        %v5076 = vpack.c.b16 %v3748, %v3740
        %v5077 = vpack.c.b16 %v3749, %v3741
        %v5078 = vpack.c.b16 %v3750, %v3742
        %v5079 = vpack.c.b16 %v3759, %v3751
        %v5080 = vpack.c.b16 %v3760, %v3752
        %v5081 = vpack.c.b16 %v3761, %v3753
        %v5082 = vpack.c.b16 %v3762, %v3754
        %v5083 = vpack.c.b16 %v3763, %v3755
        %v5084 = vpack.c.b16 %v3764, %v3756
        %v5085 = vpack.c.b16 %v3765, %v3757
        %v5086 = vpack.c.b16 %v3766, %v3758
        %v5087 = vpack.c.b16 %v3775, %v3767
        %v5088 = vpack.c.b16 %v3776, %v3768
        %v5089 = vpack.c.b16 %v3777, %v3769
        %v5090 = vpack.c.b16 %v3778, %v3770
        %v5091 = vpack.c.b16 %v3779, %v3771
        %v5092 = vpack.c.b16 %v3780, %v3772
        %v5093 = vpack.c.b16 %v3781, %v3773
        %v5094 = vpack.c.b16 %v3782, %v3774
        %v5095 = vpack.c.b16 %v3791, %v3783
        %v5096 = vpack.c.b16 %v3792, %v3784
        %v5097 = vpack.c.b16 %v3793, %v3785
        %v5098 = vpack.c.b16 %v3794, %v3786
        %v5099 = vpack.c.b16 %v3795, %v3787
        %v5100 = vpack.c.b16 %v3796, %v3788
        %v5101 = vpack.c.b16 %v3797, %v3789
        %v5102 = vpack.c.b16 %v3798, %v3790
        %v5103 = vpack.c.b16 %v3807, %v3799
        %v5104 = vpack.c.b16 %v3808, %v3800
        %v5105 = vpack.c.b16 %v3809, %v3801
        %v5106 = vpack.c.b16 %v3810, %v3802
        %v5107 = vpack.c.b16 %v3811, %v3803
        %v5108 = vpack.c.b16 %v3812, %v3804
        %v5109 = vpack.c.b16 %v3813, %v3805
        %v5110 = vpack.c.b16 %v3814, %v3806
        %v5111 = vpack.c.b16 %v3823, %v3815
        %v5112 = vpack.c.b16 %v3824, %v3816
        %v5113 = vpack.c.b16 %v3825, %v3817
        %v5114 = vpack.c.b16 %v3826, %v3818
        %v5115 = vpack.c.b16 %v3827, %v3819
        %v5116 = vpack.c.b16 %v3828, %v3820
        %v5117 = vpack.c.b16 %v3829, %v3821
        %v5118 = vpack.c.b16 %v3830, %v3822
        %v5119 = vpack.c.b16 %v3839, %v3831
        %v5120 = vpack.c.b16 %v3840, %v3832
        %v5121 = vpack.c.b16 %v3841, %v3833
        %v5122 = vpack.c.b16 %v3842, %v3834
        %v5123 = vpack.c.b16 %v3843, %v3835
        %v5124 = vpack.c.b16 %v3844, %v3836
        %v5125 = vpack.c.b16 %v3845, %v3837
        %v5126 = vpack.c.b16 %v3846, %v3838
        %v5127 = vpack.c.b16 %v3855, %v3847
        %v5128 = vpack.c.b16 %v3856, %v3848
        %v5129 = vpack.c.b16 %v3857, %v3849
        %v5130 = vpack.c.b16 %v3858, %v3850
        %v5131 = vpack.c.b16 %v3859, %v3851
        %v5132 = vpack.c.b16 %v3860, %v3852
        %v5133 = vpack.c.b16 %v3861, %v3853
        %v5134 = vpack.c.b16 %v3862, %v3854
        %v5135 = vpack.c.b16 %v3871, %v3863
        %v5136 = vpack.c.b16 %v3872, %v3864
        %v5137 = vpack.c.b16 %v3873, %v3865
        %v5138 = vpack.c.b16 %v3874, %v3866
        %v5139 = vpack.c.b16 %v3875, %v3867
        %v5140 = vpack.c.b16 %v3876, %v3868
        %v5141 = vpack.c.b16 %v3877, %v3869
        %v5142 = vpack.c.b16 %v3878, %v3870
        %v5143 = vpack.c.b16 %v3887, %v3879
        %v5144 = vpack.c.b16 %v3888, %v3880
        %v5145 = vpack.c.b16 %v3889, %v3881
        %v5146 = vpack.c.b16 %v3890, %v3882
        %v5147 = vpack.c.b16 %v3891, %v3883
        %v5148 = vpack.c.b16 %v3892, %v3884
        %v5149 = vpack.c.b16 %v3893, %v3885
        %v5150 = vpack.c.b16 %v3894, %v3886
        %v5151 = vpack.c.b16 %v3903, %v3895
        %v5152 = vpack.c.b16 %v3904, %v3896
        %v5153 = vpack.c.b16 %v3905, %v3897
        %v5154 = vpack.c.b16 %v3906, %v3898
        %v5155 = vpack.c.b16 %v3907, %v3899
        %v5156 = vpack.c.b16 %v3908, %v3900
        %v5157 = vpack.c.b16 %v3909, %v3901
        %v5158 = vpack.c.b16 %v3910, %v3902
        %v5159 = vpack.c.b16 %v3919, %v3911
        %v5160 = vpack.c.b16 %v3920, %v3912
        %v5161 = vpack.c.b16 %v3921, %v3913
        %v5162 = vpack.c.b16 %v3922, %v3914
        %v5163 = vpack.c.b16 %v3923, %v3915
        %v5164 = vpack.c.b16 %v3924, %v3916
        %v5165 = vpack.c.b16 %v3925, %v3917
        %v5166 = vpack.c.b16 %v3926, %v3918
        %v5167 = vpack.c.b16 %v3935, %v3927
        %v5168 = vpack.c.b16 %v3936, %v3928
        %v5169 = vpack.c.b16 %v3937, %v3929
        %v5170 = vpack.c.b16 %v3938, %v3930
        %v5171 = vpack.c.b16 %v3939, %v3931
        %v5172 = vpack.c.b16 %v3940, %v3932
        %v5173 = vpack.c.b16 %v3941, %v3933
        %v5174 = vpack.c.b16 %v3942, %v3934
        %v5175 = vpack.c.b16 %v3951, %v3943
        %v5176 = vpack.c.b16 %v3952, %v3944
        %v5177 = vpack.c.b16 %v3953, %v3945
        %v5178 = vpack.c.b16 %v3954, %v3946
        %v5179 = vpack.c.b16 %v3955, %v3947
        %v5180 = vpack.c.b16 %v3956, %v3948
        %v5181 = vpack.c.b16 %v3957, %v3949
        %v5182 = vpack.c.b16 %v3958, %v3950
        %v5183 = vpack.c.b16 %v3967, %v3959
        %v5184 = vpack.c.b16 %v3968, %v3960
        %v5185 = vpack.c.b16 %v3969, %v3961
        %v5186 = vpack.c.b16 %v3970, %v3962
        %v5187 = vpack.c.b16 %v3971, %v3963
        %v5188 = vpack.c.b16 %v3972, %v3964
        %v5189 = vpack.c.b16 %v3973, %v3965
        %v5190 = vpack.c.b16 %v3974, %v3966
        %v5191 = vpack.c.b16 %v3983, %v3975
        %v5192 = vpack.c.b16 %v3984, %v3976
        %v5193 = vpack.c.b16 %v3985, %v3977
        %v5194 = vpack.c.b16 %v3986, %v3978
        %v5195 = vpack.c.b16 %v3987, %v3979
        %v5196 = vpack.c.b16 %v3988, %v3980
        %v5197 = vpack.c.b16 %v3989, %v3981
        %v5198 = vpack.c.b16 %v3990, %v3982
        %v5199 = vpack.c.b16 %v3999, %v3991
        %v5200 = vpack.c.b16 %v4000, %v3992
        %v5201 = vpack.c.b16 %v4001, %v3993
        %v5202 = vpack.c.b16 %v4002, %v3994
        %v5203 = vpack.c.b16 %v4003, %v3995
        %v5204 = vpack.c.b16 %v4004, %v3996
        %v5205 = vpack.c.b16 %v4005, %v3997
        %v5206 = vpack.c.b16 %v4006, %v3998
        %v5207 = vpack.c.b16 %v4015, %v4007
        %v5208 = vpack.c.b16 %v4016, %v4008
        %v5209 = vpack.c.b16 %v4017, %v4009
        %v5210 = vpack.c.b16 %v4018, %v4010
        %v5211 = vpack.c.b16 %v4019, %v4011
        %v5212 = vpack.c.b16 %v4020, %v4012
        %v5213 = vpack.c.b16 %v4021, %v4013
        %v5214 = vpack.c.b16 %v4022, %v4014
        %v5215 = vpack.c.b16 %v4031, %v4023
        %v5216 = vpack.c.b16 %v4032, %v4024
        %v5217 = vpack.c.b16 %v4033, %v4025
        %v5218 = vpack.c.b16 %v4034, %v4026
        %v5219 = vpack.c.b16 %v4035, %v4027
        %v5220 = vpack.c.b16 %v4036, %v4028
        %v5221 = vpack.c.b16 %v4037, %v4029
        %v5222 = vpack.c.b16 %v4038, %v4030
        %v5223 = vpack.c.b16 %v4047, %v4039
        %v5224 = vpack.c.b16 %v4048, %v4040
        %v5225 = vpack.c.b16 %v4049, %v4041
        %v5226 = vpack.c.b16 %v4050, %v4042
        %v5227 = vpack.c.b16 %v4051, %v4043
        %v5228 = vpack.c.b16 %v4052, %v4044
        %v5229 = vpack.c.b16 %v4053, %v4045
        %v5230 = vpack.c.b16 %v4054, %v4046
        %v5231 = vpack.c.b16 %v4063, %v4055
        %v5232 = vpack.c.b16 %v4064, %v4056
        %v5233 = vpack.c.b16 %v4065, %v4057
        %v5234 = vpack.c.b16 %v4066, %v4058
        %v5235 = vpack.c.b16 %v4067, %v4059
        %v5236 = vpack.c.b16 %v4068, %v4060
        %v5237 = vpack.c.b16 %v4069, %v4061
        %v5238 = vpack.c.b16 %v4070, %v4062
        %v5239 = vpack.c.b16 %v4079, %v4071
        %v5240 = vpack.c.b16 %v4080, %v4072
        %v5241 = vpack.c.b16 %v4081, %v4073
        %v5242 = vpack.c.b16 %v4082, %v4074
        %v5243 = vpack.c.b16 %v4083, %v4075
        %v5244 = vpack.c.b16 %v4084, %v4076
        %v5245 = vpack.c.b16 %v4085, %v4077
        %v5246 = vpack.c.b16 %v4086, %v4078
        %v5247 = vpack.c.b16 %v4095, %v4087
        %v5248 = vpack.c.b16 %v4096, %v4088
        %v5249 = vpack.c.b16 %v4097, %v4089
        %v5250 = vpack.c.b16 %v4098, %v4090
        %v5251 = vpack.c.b16 %v4099, %v4091
        %v5252 = vpack.c.b16 %v4100, %v4092
        %v5253 = vpack.c.b16 %v4101, %v4093
        %v5254 = vpack.c.b16 %v4102, %v4094
        %v5255 = vpack.c.b16 %v4111, %v4103
        %v5256 = vpack.c.b16 %v4112, %v4104
        %v5257 = vpack.c.b16 %v4113, %v4105
        %v5258 = vpack.c.b16 %v4114, %v4106
        %v5259 = vpack.c.b16 %v4115, %v4107
        %v5260 = vpack.c.b16 %v4116, %v4108
        %v5261 = vpack.c.b16 %v4117, %v4109
        %v5262 = vpack.c.b16 %v4118, %v4110
        %v5263 = vpack.c.b16 %v4127, %v4119
        %v5264 = vpack.c.b16 %v4128, %v4120
        %v5265 = vpack.c.b16 %v4129, %v4121
        %v5266 = vpack.c.b16 %v4130, %v4122
        %v5267 = vpack.c.b16 %v4131, %v4123
        %v5268 = vpack.c.b16 %v4132, %v4124
        %v5269 = vpack.c.b16 %v4133, %v4125
        %v5270 = vpack.c.b16 %v4134, %v4126
        %v5271 = vpack.c.b16 %v4143, %v4135
        %v5272 = vpack.c.b16 %v4144, %v4136
        %v5273 = vpack.c.b16 %v4145, %v4137
        %v5274 = vpack.c.b16 %v4146, %v4138
        %v5275 = vpack.c.b16 %v4147, %v4139
        %v5276 = vpack.c.b16 %v4148, %v4140
        %v5277 = vpack.c.b16 %v4149, %v4141
        %v5278 = vpack.c.b16 %v4150, %v4142
        %v5279 = vpack.c.b16 %v4159, %v4151
        %v5280 = vpack.c.b16 %v4160, %v4152
        %v5281 = vpack.c.b16 %v4161, %v4153
        %v5282 = vpack.c.b16 %v4162, %v4154
        %v5283 = vpack.c.b16 %v4163, %v4155
        %v5284 = vpack.c.b16 %v4164, %v4156
        %v5285 = vpack.c.b16 %v4165, %v4157
        %v5286 = vpack.c.b16 %v4166, %v4158
        %v5287 = vpack.c.b16 %v4175, %v4167
        %v5288 = vpack.c.b16 %v4176, %v4168
        %v5289 = vpack.c.b16 %v4177, %v4169
        %v5290 = vpack.c.b16 %v4178, %v4170
        %v5291 = vpack.c.b16 %v4179, %v4171
        %v5292 = vpack.c.b16 %v4180, %v4172
        %v5293 = vpack.c.b16 %v4181, %v4173
        %v5294 = vpack.c.b16 %v4182, %v4174
        %v5295 = vpack.c.b16 %v4191, %v4183
        %v5296 = vpack.c.b16 %v4192, %v4184
        %v5297 = vpack.c.b16 %v4193, %v4185
        %v5298 = vpack.c.b16 %v4194, %v4186
        %v5299 = vpack.c.b16 %v4195, %v4187
        %v5300 = vpack.c.b16 %v4196, %v4188
        %v5301 = vpack.c.b16 %v4197, %v4189
        %v5302 = vpack.c.b16 %v4198, %v4190
        %v5303 = vpack.c.b16 %v4207, %v4199
        %v5304 = vpack.c.b16 %v4208, %v4200
        %v5305 = vpack.c.b16 %v4209, %v4201
        %v5306 = vpack.c.b16 %v4210, %v4202
        %v5307 = vpack.c.b16 %v4211, %v4203
        %v5308 = vpack.c.b16 %v4212, %v4204
        %v5309 = vpack.c.b16 %v4213, %v4205
        %v5310 = vpack.c.b16 %v4214, %v4206
        %v5311 = vpack.c.b16 %v4223, %v4215
        %v5312 = vpack.c.b16 %v4224, %v4216
        %v5313 = vpack.c.b16 %v4225, %v4217
        %v5314 = vpack.c.b16 %v4226, %v4218
        %v5315 = vpack.c.b16 %v4227, %v4219
        %v5316 = vpack.c.b16 %v4228, %v4220
        %v5317 = vpack.c.b16 %v4229, %v4221
        %v5318 = vpack.c.b16 %v4230, %v4222
        %v5319 = vpack.c.b16 %v4239, %v4231
        %v5320 = vpack.c.b16 %v4240, %v4232
        %v5321 = vpack.c.b16 %v4241, %v4233
        %v5322 = vpack.c.b16 %v4242, %v4234
        %v5323 = vpack.c.b16 %v4243, %v4235
        %v5324 = vpack.c.b16 %v4244, %v4236
        %v5325 = vpack.c.b16 %v4245, %v4237
        %v5326 = vpack.c.b16 %v4246, %v4238
        %v5327 = vpack.c.b16 %v4255, %v4247
        %v5328 = vpack.c.b16 %v4256, %v4248
        %v5329 = vpack.c.b16 %v4257, %v4249
        %v5330 = vpack.c.b16 %v4258, %v4250
        %v5331 = vpack.c.b16 %v4259, %v4251
        %v5332 = vpack.c.b16 %v4260, %v4252
        %v5333 = vpack.c.b16 %v4261, %v4253
        %v5334 = vpack.c.b16 %v4262, %v4254
        %v5335 = vpack.c.b16 %v4271, %v4263
        %v5336 = vpack.c.b16 %v4272, %v4264
        %v5337 = vpack.c.b16 %v4273, %v4265
        %v5338 = vpack.c.b16 %v4274, %v4266
        %v5339 = vpack.c.b16 %v4275, %v4267
        %v5340 = vpack.c.b16 %v4276, %v4268
        %v5341 = vpack.c.b16 %v4277, %v4269
        %v5342 = vpack.c.b16 %v4278, %v4270
        %v5343 = vpack.c.b16 %v4287, %v4279
        %v5344 = vpack.c.b16 %v4288, %v4280
        %v5345 = vpack.c.b16 %v4289, %v4281
        %v5346 = vpack.c.b16 %v4290, %v4282
        %v5347 = vpack.c.b16 %v4291, %v4283
        %v5348 = vpack.c.b16 %v4292, %v4284
        %v5349 = vpack.c.b16 %v4293, %v4285
        %v5350 = vpack.c.b16 %v4294, %v4286
        %v5351 = vpack.c.b16 %v4303, %v4295
        %v5352 = vpack.c.b16 %v4304, %v4296
        %v5353 = vpack.c.b16 %v4305, %v4297
        %v5354 = vpack.c.b16 %v4306, %v4298
        %v5355 = vpack.c.b16 %v4307, %v4299
        %v5356 = vpack.c.b16 %v4308, %v4300
        %v5357 = vpack.c.b16 %v4309, %v4301
        %v5358 = vpack.c.b16 %v4310, %v4302
        %v5359 = vpack.c.b16 %v4319, %v4311
        %v5360 = vpack.c.b16 %v4320, %v4312
        %v5361 = vpack.c.b16 %v4321, %v4313
        %v5362 = vpack.c.b16 %v4322, %v4314
        %v5363 = vpack.c.b16 %v4323, %v4315
        %v5364 = vpack.c.b16 %v4324, %v4316
        %v5365 = vpack.c.b16 %v4325, %v4317
        %v5366 = vpack.c.b16 %v4326, %v4318
        %v5367 = vpack.c.b16 %v4335, %v4327
        %v5368 = vpack.c.b16 %v4336, %v4328
        %v5369 = vpack.c.b16 %v4337, %v4329
        %v5370 = vpack.c.b16 %v4338, %v4330
        %v5371 = vpack.c.b16 %v4339, %v4331
        %v5372 = vpack.c.b16 %v4340, %v4332
        %v5373 = vpack.c.b16 %v4341, %v4333
        %v5374 = vpack.c.b16 %v4342, %v4334
        %v5375 = vpack.c.b16 %v4351, %v4343
        %v5376 = vpack.c.b16 %v4352, %v4344
        %v5377 = vpack.c.b16 %v4353, %v4345
        %v5378 = vpack.c.b16 %v4354, %v4346
        %v5379 = vpack.c.b16 %v4355, %v4347
        %v5380 = vpack.c.b16 %v4356, %v4348
        %v5381 = vpack.c.b16 %v4357, %v4349
        %v5382 = vpack.c.b16 %v4358, %v4350
        %v5383 = vpack.c.b16 %v4367, %v4359
        %v5384 = vpack.c.b16 %v4368, %v4360
        %v5385 = vpack.c.b16 %v4369, %v4361
        %v5386 = vpack.c.b16 %v4370, %v4362
        %v5387 = vpack.c.b16 %v4371, %v4363
        %v5388 = vpack.c.b16 %v4372, %v4364
        %v5389 = vpack.c.b16 %v4373, %v4365
        %v5390 = vpack.c.b16 %v4374, %v4366
        %v5391 = vpack.c.b16 %v4383, %v4375
        %v5392 = vpack.c.b16 %v4384, %v4376
        %v5393 = vpack.c.b16 %v4385, %v4377
        %v5394 = vpack.c.b16 %v4386, %v4378
        %v5395 = vpack.c.b16 %v4387, %v4379
        %v5396 = vpack.c.b16 %v4388, %v4380
        %v5397 = vpack.c.b16 %v4389, %v4381
        %v5398 = vpack.c.b16 %v4390, %v4382
        %v5399 = vpack.c.b16 %v4399, %v4391
        %v5400 = vpack.c.b16 %v4400, %v4392
        %v5401 = vpack.c.b16 %v4401, %v4393
        %v5402 = vpack.c.b16 %v4402, %v4394
        %v5403 = vpack.c.b16 %v4403, %v4395
        %v5404 = vpack.c.b16 %v4404, %v4396
        %v5405 = vpack.c.b16 %v4405, %v4397
        %v5406 = vpack.c.b16 %v4406, %v4398
        %v6408 = vlaneseq
        %v6409 = vshrl.u32 %v6408, 7
        %v6410 = vsub.s32 0, %v6409
        %v6411 = vrot.slane %v1406, %v6410
        %v6412 = vlaneseq
        %v6413 = vshrl.u32 %v6412, 7
        %v6414 = vsub.s32 1, %v6413
        %v6415 = vrot.slane %v1406, %v6414
        %v6416 = vlaneseq
        %v6417 = vshrl.u32 %v6416, 7
        %v6418 = vsub.s32 2, %v6417
        %v6419 = vrot.slane %v1406, %v6418
        %v6420 = vlaneseq
        %v6421 = vshrl.u32 %v6420, 7
        %v6422 = vsub.s32 3, %v6421
        %v6423 = vrot.slane %v1406, %v6422
        %v6424 = vlaneseq
        %v6425 = vshrl.u32 %v6424, 7
        %v6426 = vsub.s32 4, %v6425
        %v6427 = vrot.slane %v1406, %v6426
        %v6428 = vlaneseq
        %v6429 = vshrl.u32 %v6428, 7
        %v6430 = vsub.s32 5, %v6429
        %v6431 = vrot.slane %v1406, %v6430
        %v6432 = vlaneseq
        %v6433 = vshrl.u32 %v6432, 7
        %v6434 = vsub.s32 6, %v6433
        %v6435 = vrot.slane %v1406, %v6434
        %v6436 = vlaneseq
        %v6437 = vshrl.u32 %v6436, 7
        %v6438 = vsub.s32 7, %v6437
        %v6439 = vrot.slane %v1406, %v6438
        %vm6448 = vcmask 654336
        %v6450 = vsel %vm6448, %v405, 0
        %6452 = vmatprep.subr.bf16.mxu0 %v4408
        %6453 = vmatpush1.bf16.msra.mxu0 %v4407
        %6454 = vmatprep.subr.bf16.mxu0 %v4416
        %6455 = vmatpush1.bf16.msra.mxu0 %v4415
        %6456 = vmatprep.subr.bf16.mxu0 %v4424
        %6457 = vmatpush1.bf16.msra.mxu0 %v4423
        %6458 = vmatprep.subr.bf16.mxu0 %v4432
        %6459 = vmatpush1.bf16.msra.mxu0 %v4431
        %6460 = vmatprep.subr.bf16.mxu0 %v4440
        %6461 = vmatpush1.bf16.msra.mxu0 %v4439
        %6462 = vmatprep.subr.bf16.mxu0 %v4448
        %6463 = vmatpush1.bf16.msra.mxu0 %v4447
        %6464 = vmatprep.subr.bf16.mxu0 %v4456
        %6465 = vmatpush1.bf16.msra.mxu0 %v4455
        %6466 = vmatprep.subr.bf16.mxu0 %v4464
        %6467 = vmatpush1.bf16.msra.mxu0 %v4463
        %6468 = vmatprep.subr.bf16.mxu0 %v4472
        %6469 = vmatpush1.bf16.msra.mxu0 %v4471
        %6470 = vmatprep.subr.bf16.mxu0 %v4480
        %6471 = vmatpush1.bf16.msra.mxu0 %v4479
        %6472 = vmatprep.subr.bf16.mxu0 %v4488
        %6473 = vmatpush1.bf16.msra.mxu0 %v4487
        %6474 = vmatprep.subr.bf16.mxu0 %v4496
        %6475 = vmatpush1.bf16.msra.mxu0 %v4495
        %6476 = vmatprep.subr.bf16.mxu0 %v4504
        %6477 = vmatpush1.bf16.msra.mxu0 %v4503
        %6478 = vmatprep.subr.bf16.mxu0 %v4512
        %6479 = vmatpush1.bf16.msra.mxu0 %v4511
        %6480 = vmatprep.subr.bf16.mxu0 %v4520
        %6481 = vmatpush1.bf16.msra.mxu0 %v4519
        %6482 = vmatprep.subr.bf16.mxu0 %v4528
        %6483 = vmatpush1.bf16.msra.mxu0 %v4527
        %6484 = vmatprep.mubr.bf16.mxu0 %v391
        %6485 = vmatmul.mubr.bf16.gmra.mrb[0].mxu0 %v390
        %v6486 = vpop.f32.mrb[0].mxu0
        %v6487 = vadd.f32 %v6411, %v6486
        %v6488 = vpop.f32.mrb[0].mxu0
        %v6489 = vadd.f32 %v6415, %v6488
        %v6490 = vpop.f32.mrb[0].mxu0
        %v6491 = vpop.f32.mrb[0].mxu0
        %6492 = vdwg.mxu0
        %6493 = vmatprep.subr.bf16.mxu0 %v4536
        %6494 = vmatpush1.bf16.msra.mxu0 %v4535
        %6495 = vmatprep.subr.bf16.mxu0 %v4544
        %6496 = vmatpush1.bf16.msra.mxu0 %v4543
        %6497 = vmatprep.subr.bf16.mxu0 %v4552
        %6498 = vmatpush1.bf16.msra.mxu0 %v4551
        %6499 = vmatprep.subr.bf16.mxu0 %v4560
        %6500 = vmatpush1.bf16.msra.mxu0 %v4559
        %6501 = vmatprep.subr.bf16.mxu0 %v4568
        %6502 = vmatpush1.bf16.msra.mxu0 %v4567
        %6503 = vmatprep.subr.bf16.mxu0 %v4576
        %6504 = vmatpush1.bf16.msra.mxu0 %v4575
        %6505 = vmatprep.subr.bf16.mxu0 %v4584
        %6506 = vmatpush1.bf16.msra.mxu0 %v4583
        %6507 = vmatprep.subr.bf16.mxu0 %v4592
        %6508 = vmatpush1.bf16.msra.mxu0 %v4591
        %6509 = vmatprep.subr.bf16.mxu0 %v4600
        %6510 = vmatpush1.bf16.msra.mxu0 %v4599
        %6511 = vmatprep.subr.bf16.mxu0 %v4608
        %6512 = vmatpush1.bf16.msra.mxu0 %v4607
        %6513 = vmatprep.subr.bf16.mxu0 %v4616
        %6514 = vmatpush1.bf16.msra.mxu0 %v4615
        %6515 = vmatprep.subr.bf16.mxu0 %v4624
        %6516 = vmatpush1.bf16.msra.mxu0 %v4623
        %6517 = vmatprep.subr.bf16.mxu0 %v4632
        %6518 = vmatpush1.bf16.msra.mxu0 %v4631
        %6519 = vmatprep.subr.bf16.mxu0 %v4640
        %6520 = vmatpush1.bf16.msra.mxu0 %v4639
        %6521 = vmatprep.subr.bf16.mxu0 %v4648
        %6522 = vmatpush1.bf16.msra.mxu0 %v4647
        %6523 = vmatprep.subr.bf16.mxu0 %v4656
        %6524 = vmatpush1.bf16.msra.mxu0 %v4655
        %6525 = vmatprep.mubr.bf16.mxu0 %v393
        %6526 = vmatmul.mubr.bf16.gmra.mrb[0].mxu0 %v392
        %v6527 = vpop.f32.mrb[0].mxu0
        %v6528 = vadd.f32 %v6487, %v6527
        %v6529 = vpop.f32.mrb[0].mxu0
        %v6530 = vadd.f32 %v6489, %v6529
        %v6531 = vpop.f32.mrb[0].mxu0
        %v6532 = vpop.f32.mrb[0].mxu0
        %6533 = vdwg.mxu0
        %6534 = vmatprep.subr.bf16.mxu0 %v4664
        %6535 = vmatpush1.bf16.msra.mxu0 %v4663
        %6536 = vmatprep.subr.bf16.mxu0 %v4672
        %6537 = vmatpush1.bf16.msra.mxu0 %v4671
        %6538 = vmatprep.subr.bf16.mxu0 %v4680
        %6539 = vmatpush1.bf16.msra.mxu0 %v4679
        %6540 = vmatprep.subr.bf16.mxu0 %v4688
        %6541 = vmatpush1.bf16.msra.mxu0 %v4687
        %6542 = vmatprep.subr.bf16.mxu0 %v4696
        %6543 = vmatpush1.bf16.msra.mxu0 %v4695
        %6544 = vmatprep.subr.bf16.mxu0 %v4704
        %6545 = vmatpush1.bf16.msra.mxu0 %v4703
        %6546 = vmatprep.subr.bf16.mxu0 %v4712
        %6547 = vmatpush1.bf16.msra.mxu0 %v4711
        %6548 = vmatprep.subr.bf16.mxu0 %v4720
        %6549 = vmatpush1.bf16.msra.mxu0 %v4719
        %6550 = vmatprep.subr.bf16.mxu0 %v4728
        %6551 = vmatpush1.bf16.msra.mxu0 %v4727
        %6552 = vmatprep.subr.bf16.mxu0 %v4736
        %6553 = vmatpush1.bf16.msra.mxu0 %v4735
        %6554 = vmatprep.subr.bf16.mxu0 %v4744
        %6555 = vmatpush1.bf16.msra.mxu0 %v4743
        %6556 = vmatprep.subr.bf16.mxu0 %v4752
        %6557 = vmatpush1.bf16.msra.mxu0 %v4751
        %6558 = vmatprep.subr.bf16.mxu0 %v4760
        %6559 = vmatpush1.bf16.msra.mxu0 %v4759
        %6560 = vmatprep.subr.bf16.mxu0 %v4768
        %6561 = vmatpush1.bf16.msra.mxu0 %v4767
        %6562 = vmatprep.subr.bf16.mxu0 %v4776
        %6563 = vmatpush1.bf16.msra.mxu0 %v4775
        %6564 = vmatprep.subr.bf16.mxu0 %v4784
        %6565 = vmatpush1.bf16.msra.mxu0 %v4783
        %6566 = vmatprep.mubr.bf16.mxu0 %v395
        %6567 = vmatmul.mubr.bf16.gmra.mrb[0].mxu0 %v394
        %v6568 = vpop.f32.mrb[0].mxu0
        %v6569 = vadd.f32 %v6528, %v6568
        %v6570 = vpop.f32.mrb[0].mxu0
        %v6571 = vadd.f32 %v6530, %v6570
        %v6572 = vpop.f32.mrb[0].mxu0
        %v6573 = vpop.f32.mrb[0].mxu0
        %6574 = vdwg.mxu0
        %6575 = vmatprep.subr.bf16.mxu0 %v4792
        %6576 = vmatpush1.bf16.msra.mxu0 %v4791
        %6577 = vmatprep.subr.bf16.mxu0 %v4800
        %6578 = vmatpush1.bf16.msra.mxu0 %v4799
        %6579 = vmatprep.subr.bf16.mxu0 %v4808
        %6580 = vmatpush1.bf16.msra.mxu0 %v4807
        %6581 = vmatprep.subr.bf16.mxu0 %v4816
        %6582 = vmatpush1.bf16.msra.mxu0 %v4815
        %6583 = vmatprep.subr.bf16.mxu0 %v4824
        %6584 = vmatpush1.bf16.msra.mxu0 %v4823
        %6585 = vmatprep.subr.bf16.mxu0 %v4832
        %6586 = vmatpush1.bf16.msra.mxu0 %v4831
        %6587 = vmatprep.subr.bf16.mxu0 %v4840
        %6588 = vmatpush1.bf16.msra.mxu0 %v4839
        %6589 = vmatprep.subr.bf16.mxu0 %v4848
        %6590 = vmatpush1.bf16.msra.mxu0 %v4847
        %6591 = vmatprep.subr.bf16.mxu0 %v4856
        %6592 = vmatpush1.bf16.msra.mxu0 %v4855
        %6593 = vmatprep.subr.bf16.mxu0 %v4864
        %6594 = vmatpush1.bf16.msra.mxu0 %v4863
        %6595 = vmatprep.subr.bf16.mxu0 %v4872
        %6596 = vmatpush1.bf16.msra.mxu0 %v4871
        %6597 = vmatprep.subr.bf16.mxu0 %v4880
        %6598 = vmatpush1.bf16.msra.mxu0 %v4879
        %6599 = vmatprep.subr.bf16.mxu0 %v4888
        %6600 = vmatpush1.bf16.msra.mxu0 %v4887
        %6601 = vmatprep.subr.bf16.mxu0 %v4896
        %6602 = vmatpush1.bf16.msra.mxu0 %v4895
        %6603 = vmatprep.subr.bf16.mxu0 %v4904
        %6604 = vmatpush1.bf16.msra.mxu0 %v4903
        %6605 = vmatprep.subr.bf16.mxu0 %v4912
        %6606 = vmatpush1.bf16.msra.mxu0 %v4911
        %6607 = vmatprep.mubr.bf16.mxu0 %v397
        %6608 = vmatmul.mubr.bf16.gmra.mrb[0].mxu0 %v396
        %v6609 = vpop.f32.mrb[0].mxu0
        %v6610 = vadd.f32 %v6569, %v6609
        %v6611 = vpop.f32.mrb[0].mxu0
        %v6612 = vadd.f32 %v6571, %v6611
        %v6613 = vpop.f32.mrb[0].mxu0
        %v6614 = vpop.f32.mrb[0].mxu0
        %6615 = vdwg.mxu0
        %6616 = vmatprep.subr.bf16.mxu0 %v4920
        %6617 = vmatpush1.bf16.msra.mxu0 %v4919
        %6618 = vmatprep.subr.bf16.mxu0 %v4928
        %6619 = vmatpush1.bf16.msra.mxu0 %v4927
        %6620 = vmatprep.subr.bf16.mxu0 %v4936
        %6621 = vmatpush1.bf16.msra.mxu0 %v4935
        %6622 = vmatprep.subr.bf16.mxu0 %v4944
        %6623 = vmatpush1.bf16.msra.mxu0 %v4943
        %6624 = vmatprep.subr.bf16.mxu0 %v4952
        %6625 = vmatpush1.bf16.msra.mxu0 %v4951
        %6626 = vmatprep.subr.bf16.mxu0 %v4960
        %6627 = vmatpush1.bf16.msra.mxu0 %v4959
        %6628 = vmatprep.subr.bf16.mxu0 %v4968
        %6629 = vmatpush1.bf16.msra.mxu0 %v4967
        %6630 = vmatprep.subr.bf16.mxu0 %v4976
        %6631 = vmatpush1.bf16.msra.mxu0 %v4975
        %6632 = vmatprep.subr.bf16.mxu0 %v4984
        %6633 = vmatpush1.bf16.msra.mxu0 %v4983
        %6634 = vmatprep.subr.bf16.mxu0 %v4992
        %6635 = vmatpush1.bf16.msra.mxu0 %v4991
        %6636 = vmatprep.subr.bf16.mxu0 %v5000
        %6637 = vmatpush1.bf16.msra.mxu0 %v4999
        %6638 = vmatprep.subr.bf16.mxu0 %v5008
        %6639 = vmatpush1.bf16.msra.mxu0 %v5007
        %6640 = vmatprep.subr.bf16.mxu0 %v5016
        %6641 = vmatpush1.bf16.msra.mxu0 %v5015
        %6642 = vmatprep.subr.bf16.mxu0 %v5024
        %6643 = vmatpush1.bf16.msra.mxu0 %v5023
        %6644 = vmatprep.subr.bf16.mxu0 %v5032
        %6645 = vmatpush1.bf16.msra.mxu0 %v5031
        %6646 = vmatprep.subr.bf16.mxu0 %v5040
        %6647 = vmatpush1.bf16.msra.mxu0 %v5039
        %6648 = vmatprep.mubr.bf16.mxu0 %v399
        %6649 = vmatmul.mubr.bf16.gmra.mrb[0].mxu0 %v398
        %v6650 = vpop.f32.mrb[0].mxu0
        %v6651 = vadd.f32 %v6610, %v6650
        %v6652 = vpop.f32.mrb[0].mxu0
        %v6653 = vadd.f32 %v6612, %v6652
        %v6654 = vpop.f32.mrb[0].mxu0
        %v6655 = vpop.f32.mrb[0].mxu0
        %6656 = vdwg.mxu0
        %6657 = vmatprep.subr.bf16.mxu0 %v5048
        %6658 = vmatpush1.bf16.msra.mxu0 %v5047
        %6659 = vmatprep.subr.bf16.mxu0 %v5056
        %6660 = vmatpush1.bf16.msra.mxu0 %v5055
        %6661 = vmatprep.subr.bf16.mxu0 %v5064
        %6662 = vmatpush1.bf16.msra.mxu0 %v5063
        %6663 = vmatprep.subr.bf16.mxu0 %v5072
        %6664 = vmatpush1.bf16.msra.mxu0 %v5071
        %6665 = vmatprep.subr.bf16.mxu0 %v5080
        %6666 = vmatpush1.bf16.msra.mxu0 %v5079
        %6667 = vmatprep.subr.bf16.mxu0 %v5088
        %6668 = vmatpush1.bf16.msra.mxu0 %v5087
        %6669 = vmatprep.subr.bf16.mxu0 %v5096
        %6670 = vmatpush1.bf16.msra.mxu0 %v5095
        %6671 = vmatprep.subr.bf16.mxu0 %v5104
        %6672 = vmatpush1.bf16.msra.mxu0 %v5103
        %6673 = vmatprep.subr.bf16.mxu0 %v5112
        %6674 = vmatpush1.bf16.msra.mxu0 %v5111
        %6675 = vmatprep.subr.bf16.mxu0 %v5120
        %6676 = vmatpush1.bf16.msra.mxu0 %v5119
        %6677 = vmatprep.subr.bf16.mxu0 %v5128
        %6678 = vmatpush1.bf16.msra.mxu0 %v5127
        %6679 = vmatprep.subr.bf16.mxu0 %v5136
        %6680 = vmatpush1.bf16.msra.mxu0 %v5135
        %6681 = vmatprep.subr.bf16.mxu0 %v5144
        %6682 = vmatpush1.bf16.msra.mxu0 %v5143
        %6683 = vmatprep.subr.bf16.mxu0 %v5152
        %6684 = vmatpush1.bf16.msra.mxu0 %v5151
        %6685 = vmatprep.subr.bf16.mxu0 %v5160
        %6686 = vmatpush1.bf16.msra.mxu0 %v5159
        %6687 = vmatprep.subr.bf16.mxu0 %v5168
        %6688 = vmatpush1.bf16.msra.mxu0 %v5167
        %6689 = vmatprep.mubr.bf16.mxu0 %v401
        %6690 = vmatmul.mubr.bf16.gmra.mrb[0].mxu0 %v400
        %v6691 = vpop.f32.mrb[0].mxu0
        %v6692 = vadd.f32 %v6651, %v6691
        %v6693 = vpop.f32.mrb[0].mxu0
        %v6694 = vadd.f32 %v6653, %v6693
        %v6695 = vpop.f32.mrb[0].mxu0
        %v6696 = vpop.f32.mrb[0].mxu0
        %6697 = vdwg.mxu0
        %6698 = vmatprep.subr.bf16.mxu0 %v5176
        %6699 = vmatpush1.bf16.msra.mxu0 %v5175
        %6700 = vmatprep.subr.bf16.mxu0 %v5184
        %6701 = vmatpush1.bf16.msra.mxu0 %v5183
        %6702 = vmatprep.subr.bf16.mxu0 %v5192
        %6703 = vmatpush1.bf16.msra.mxu0 %v5191
        %6704 = vmatprep.subr.bf16.mxu0 %v5200
        %6705 = vmatpush1.bf16.msra.mxu0 %v5199
        %6706 = vmatprep.subr.bf16.mxu0 %v5208
        %6707 = vmatpush1.bf16.msra.mxu0 %v5207
        %6708 = vmatprep.subr.bf16.mxu0 %v5216
        %6709 = vmatpush1.bf16.msra.mxu0 %v5215
        %6710 = vmatprep.subr.bf16.mxu0 %v5224
        %6711 = vmatpush1.bf16.msra.mxu0 %v5223
        %6712 = vmatprep.subr.bf16.mxu0 %v5232
        %6713 = vmatpush1.bf16.msra.mxu0 %v5231
        %6714 = vmatprep.subr.bf16.mxu0 %v5240
        %6715 = vmatpush1.bf16.msra.mxu0 %v5239
        %6716 = vmatprep.subr.bf16.mxu0 %v5248
        %6717 = vmatpush1.bf16.msra.mxu0 %v5247
        %6718 = vmatprep.subr.bf16.mxu0 %v5256
        %6719 = vmatpush1.bf16.msra.mxu0 %v5255
        %6720 = vmatprep.subr.bf16.mxu0 %v5264
        %6721 = vmatpush1.bf16.msra.mxu0 %v5263
        %6722 = vmatprep.subr.bf16.mxu0 %v5272
        %6723 = vmatpush1.bf16.msra.mxu0 %v5271
        %6724 = vmatprep.subr.bf16.mxu0 %v5280
        %6725 = vmatpush1.bf16.msra.mxu0 %v5279
        %6726 = vmatprep.subr.bf16.mxu0 %v5288
        %6727 = vmatpush1.bf16.msra.mxu0 %v5287
        %6728 = vmatprep.subr.bf16.mxu0 %v5296
        %6729 = vmatpush1.bf16.msra.mxu0 %v5295
        %6730 = vmatprep.mubr.bf16.mxu0 %v403
        %6731 = vmatmul.mubr.bf16.gmra.mrb[0].mxu0 %v402
        %v6732 = vpop.f32.mrb[0].mxu0
        %v6733 = vadd.f32 %v6692, %v6732
        %v6734 = vpop.f32.mrb[0].mxu0
        %v6735 = vadd.f32 %v6694, %v6734
        %v6736 = vpop.f32.mrb[0].mxu0
        %v6737 = vpop.f32.mrb[0].mxu0
        %6738 = vdwg.mxu0
        %6739 = vmatprep.subr.bf16.mxu0 %v5304
        %6740 = vmatpush1.bf16.msra.mxu0 %v5303
        %6741 = vmatprep.subr.bf16.mxu0 %v5312
        %6742 = vmatpush1.bf16.msra.mxu0 %v5311
        %6743 = vmatprep.subr.bf16.mxu0 %v5320
        %6744 = vmatpush1.bf16.msra.mxu0 %v5319
        %6745 = vmatprep.subr.bf16.mxu0 %v5328
        %6746 = vmatpush1.bf16.msra.mxu0 %v5327
        %6747 = vmatprep.subr.bf16.mxu0 %v5336
        %6748 = vmatpush1.bf16.msra.mxu0 %v5335
        %6749 = vmatprep.subr.bf16.mxu0 %v5344
        %6750 = vmatpush1.bf16.msra.mxu0 %v5343
        %6751 = vmatprep.subr.bf16.mxu0 %v5352
        %6752 = vmatpush1.bf16.msra.mxu0 %v5351
        %6753 = vmatprep.subr.bf16.mxu0 %v5360
        %6754 = vmatpush1.bf16.msra.mxu0 %v5359
        %6755 = vmatprep.subr.bf16.mxu0 %v5368
        %6756 = vmatpush1.bf16.msra.mxu0 %v5367
        %6757 = vmatprep.subr.bf16.mxu0 %v5376
        %6758 = vmatpush1.bf16.msra.mxu0 %v5375
        %6759 = vmatprep.subr.bf16.mxu0 %v5384
        %6760 = vmatpush1.bf16.msra.mxu0 %v5383
        %6761 = vmatprep.subr.bf16.mxu0 %v5392
        %6762 = vmatpush1.bf16.msra.mxu0 %v5391
        %6763 = vmatprep.subr.bf16.mxu0 %v5400
        %6764 = vmatpush1.bf16.msra.mxu0 %v5399
        %6765 = vmatprep.subr.bf16.mxu0 0
        %6766 = vmatpush1.bf16.msra.mxu0 0
        %6767 = vmatprep.subr.bf16.mxu0 0
        %6768 = vmatpush1.bf16.msra.mxu0 0
        %6769 = vmatprep.subr.bf16.mxu0 0
        %6770 = vmatpush1.bf16.msra.mxu0 0
        %6771 = vmatprep.mubr.bf16.mxu0 %v6450
        %6772 = vmatmul.mubr.bf16.gmra.mrb[0].mxu0 %v404
        %v6773 = vpop.f32.mrb[0].mxu0
        %v6774 = vadd.f32 %v6733, %v6773
        %v6775 = vpop.f32.mrb[0].mxu0
        %v6776 = vadd.f32 %v6735, %v6775
        %v6777 = vpop.f32.mrb[0].mxu0
        %v6778 = vpop.f32.mrb[0].mxu0
        %6779 = vdwg.mxu0
        %6780 = vmatprep.subr.bf16.mxu0 %v4410
        %6781 = vmatpush1.bf16.msra.mxu0 %v4409
        %6782 = vmatprep.subr.bf16.mxu0 %v4418
        %6783 = vmatpush1.bf16.msra.mxu0 %v4417
        %6784 = vmatprep.subr.bf16.mxu0 %v4426
        %6785 = vmatpush1.bf16.msra.mxu0 %v4425
        %6786 = vmatprep.subr.bf16.mxu0 %v4434
        %6787 = vmatpush1.bf16.msra.mxu0 %v4433
        %6788 = vmatprep.subr.bf16.mxu0 %v4442
        %6789 = vmatpush1.bf16.msra.mxu0 %v4441
        %6790 = vmatprep.subr.bf16.mxu0 %v4450
        %6791 = vmatpush1.bf16.msra.mxu0 %v4449
        %6792 = vmatprep.subr.bf16.mxu0 %v4458
        %6793 = vmatpush1.bf16.msra.mxu0 %v4457
        %6794 = vmatprep.subr.bf16.mxu0 %v4466
        %6795 = vmatpush1.bf16.msra.mxu0 %v4465
        %6796 = vmatprep.subr.bf16.mxu0 %v4474
        %6797 = vmatpush1.bf16.msra.mxu0 %v4473
        %6798 = vmatprep.subr.bf16.mxu0 %v4482
        %6799 = vmatpush1.bf16.msra.mxu0 %v4481
        %6800 = vmatprep.subr.bf16.mxu0 %v4490
        %6801 = vmatpush1.bf16.msra.mxu0 %v4489
        %6802 = vmatprep.subr.bf16.mxu0 %v4498
        %6803 = vmatpush1.bf16.msra.mxu0 %v4497
        %6804 = vmatprep.subr.bf16.mxu0 %v4506
        %6805 = vmatpush1.bf16.msra.mxu0 %v4505
        %6806 = vmatprep.subr.bf16.mxu0 %v4514
        %6807 = vmatpush1.bf16.msra.mxu0 %v4513
        %6808 = vmatprep.subr.bf16.mxu0 %v4522
        %6809 = vmatpush1.bf16.msra.mxu0 %v4521
        %6810 = vmatprep.subr.bf16.mxu0 %v4530
        %6811 = vmatpush1.bf16.msra.mxu0 %v4529
        %6812 = vmatprep.mubr.bf16.mxu0 %v391
        %6813 = vmatmul.mubr.bf16.gmra.mrb[0].mxu0 %v390
        %v6814 = vpop.f32.mrb[0].mxu0
        %v6815 = vadd.f32 %v6419, %v6814
        %v6816 = vpop.f32.mrb[0].mxu0
        %v6817 = vadd.f32 %v6423, %v6816
        %v6818 = vpop.f32.mrb[0].mxu0
        %v6819 = vpop.f32.mrb[0].mxu0
        %6820 = vdwg.mxu0
        %6821 = vmatprep.subr.bf16.mxu0 %v4538
        %6822 = vmatpush1.bf16.msra.mxu0 %v4537
        %6823 = vmatprep.subr.bf16.mxu0 %v4546
        %6824 = vmatpush1.bf16.msra.mxu0 %v4545
        %6825 = vmatprep.subr.bf16.mxu0 %v4554
        %6826 = vmatpush1.bf16.msra.mxu0 %v4553
        %6827 = vmatprep.subr.bf16.mxu0 %v4562
        %6828 = vmatpush1.bf16.msra.mxu0 %v4561
        %6829 = vmatprep.subr.bf16.mxu0 %v4570
        %6830 = vmatpush1.bf16.msra.mxu0 %v4569
        %6831 = vmatprep.subr.bf16.mxu0 %v4578
        %6832 = vmatpush1.bf16.msra.mxu0 %v4577
        %6833 = vmatprep.subr.bf16.mxu0 %v4586
        %6834 = vmatpush1.bf16.msra.mxu0 %v4585
        %6835 = vmatprep.subr.bf16.mxu0 %v4594
        %6836 = vmatpush1.bf16.msra.mxu0 %v4593
        %6837 = vmatprep.subr.bf16.mxu0 %v4602
        %6838 = vmatpush1.bf16.msra.mxu0 %v4601
        %6839 = vmatprep.subr.bf16.mxu0 %v4610
        %6840 = vmatpush1.bf16.msra.mxu0 %v4609
        %6841 = vmatprep.subr.bf16.mxu0 %v4618
        %6842 = vmatpush1.bf16.msra.mxu0 %v4617
        %6843 = vmatprep.subr.bf16.mxu0 %v4626
        %6844 = vmatpush1.bf16.msra.mxu0 %v4625
        %6845 = vmatprep.subr.bf16.mxu0 %v4634
        %6846 = vmatpush1.bf16.msra.mxu0 %v4633
        %6847 = vmatprep.subr.bf16.mxu0 %v4642
        %6848 = vmatpush1.bf16.msra.mxu0 %v4641
        %6849 = vmatprep.subr.bf16.mxu0 %v4650
        %6850 = vmatpush1.bf16.msra.mxu0 %v4649
        %6851 = vmatprep.subr.bf16.mxu0 %v4658
        %6852 = vmatpush1.bf16.msra.mxu0 %v4657
        %6853 = vmatprep.mubr.bf16.mxu0 %v393
        %6854 = vmatmul.mubr.bf16.gmra.mrb[0].mxu0 %v392
        %v6855 = vpop.f32.mrb[0].mxu0
        %v6856 = vadd.f32 %v6815, %v6855
        %v6857 = vpop.f32.mrb[0].mxu0
        %v6858 = vadd.f32 %v6817, %v6857
        %v6859 = vpop.f32.mrb[0].mxu0
        %v6860 = vpop.f32.mrb[0].mxu0
        %6861 = vdwg.mxu0
        %6862 = vmatprep.subr.bf16.mxu0 %v4666
        %6863 = vmatpush1.bf16.msra.mxu0 %v4665
        %6864 = vmatprep.subr.bf16.mxu0 %v4674
        %6865 = vmatpush1.bf16.msra.mxu0 %v4673
        %6866 = vmatprep.subr.bf16.mxu0 %v4682
        %6867 = vmatpush1.bf16.msra.mxu0 %v4681
        %6868 = vmatprep.subr.bf16.mxu0 %v4690
        %6869 = vmatpush1.bf16.msra.mxu0 %v4689
        %6870 = vmatprep.subr.bf16.mxu0 %v4698
        %6871 = vmatpush1.bf16.msra.mxu0 %v4697
        %6872 = vmatprep.subr.bf16.mxu0 %v4706
        %6873 = vmatpush1.bf16.msra.mxu0 %v4705
        %6874 = vmatprep.subr.bf16.mxu0 %v4714
        %6875 = vmatpush1.bf16.msra.mxu0 %v4713
        %6876 = vmatprep.subr.bf16.mxu0 %v4722
        %6877 = vmatpush1.bf16.msra.mxu0 %v4721
        %6878 = vmatprep.subr.bf16.mxu0 %v4730
        %6879 = vmatpush1.bf16.msra.mxu0 %v4729
        %6880 = vmatprep.subr.bf16.mxu0 %v4738
        %6881 = vmatpush1.bf16.msra.mxu0 %v4737
        %6882 = vmatprep.subr.bf16.mxu0 %v4746
        %6883 = vmatpush1.bf16.msra.mxu0 %v4745
        %6884 = vmatprep.subr.bf16.mxu0 %v4754
        %6885 = vmatpush1.bf16.msra.mxu0 %v4753
        %6886 = vmatprep.subr.bf16.mxu0 %v4762
        %6887 = vmatpush1.bf16.msra.mxu0 %v4761
        %6888 = vmatprep.subr.bf16.mxu0 %v4770
        %6889 = vmatpush1.bf16.msra.mxu0 %v4769
        %6890 = vmatprep.subr.bf16.mxu0 %v4778
        %6891 = vmatpush1.bf16.msra.mxu0 %v4777
        %6892 = vmatprep.subr.bf16.mxu0 %v4786
        %6893 = vmatpush1.bf16.msra.mxu0 %v4785
        %6894 = vmatprep.mubr.bf16.mxu0 %v395
        %6895 = vmatmul.mubr.bf16.gmra.mrb[0].mxu0 %v394
        %v6896 = vpop.f32.mrb[0].mxu0
        %v6897 = vadd.f32 %v6856, %v6896
        %v6898 = vpop.f32.mrb[0].mxu0
        %v6899 = vadd.f32 %v6858, %v6898
        %v6900 = vpop.f32.mrb[0].mxu0
        %v6901 = vpop.f32.mrb[0].mxu0
        %6902 = vdwg.mxu0
        %6903 = vmatprep.subr.bf16.mxu0 %v4794
        %6904 = vmatpush1.bf16.msra.mxu0 %v4793
        %6905 = vmatprep.subr.bf16.mxu0 %v4802
        %6906 = vmatpush1.bf16.msra.mxu0 %v4801
        %6907 = vmatprep.subr.bf16.mxu0 %v4810
        %6908 = vmatpush1.bf16.msra.mxu0 %v4809
        %6909 = vmatprep.subr.bf16.mxu0 %v4818
        %6910 = vmatpush1.bf16.msra.mxu0 %v4817
        %6911 = vmatprep.subr.bf16.mxu0 %v4826
        %6912 = vmatpush1.bf16.msra.mxu0 %v4825
        %6913 = vmatprep.subr.bf16.mxu0 %v4834
        %6914 = vmatpush1.bf16.msra.mxu0 %v4833
        %6915 = vmatprep.subr.bf16.mxu0 %v4842
        %6916 = vmatpush1.bf16.msra.mxu0 %v4841
        %6917 = vmatprep.subr.bf16.mxu0 %v4850
        %6918 = vmatpush1.bf16.msra.mxu0 %v4849
        %6919 = vmatprep.subr.bf16.mxu0 %v4858
        %6920 = vmatpush1.bf16.msra.mxu0 %v4857
        %6921 = vmatprep.subr.bf16.mxu0 %v4866
        %6922 = vmatpush1.bf16.msra.mxu0 %v4865
        %6923 = vmatprep.subr.bf16.mxu0 %v4874
        %6924 = vmatpush1.bf16.msra.mxu0 %v4873
        %6925 = vmatprep.subr.bf16.mxu0 %v4882
        %6926 = vmatpush1.bf16.msra.mxu0 %v4881
        %6927 = vmatprep.subr.bf16.mxu0 %v4890
        %6928 = vmatpush1.bf16.msra.mxu0 %v4889
        %6929 = vmatprep.subr.bf16.mxu0 %v4898
        %6930 = vmatpush1.bf16.msra.mxu0 %v4897
        %6931 = vmatprep.subr.bf16.mxu0 %v4906
        %6932 = vmatpush1.bf16.msra.mxu0 %v4905
        %6933 = vmatprep.subr.bf16.mxu0 %v4914
        %6934 = vmatpush1.bf16.msra.mxu0 %v4913
        %6935 = vmatprep.mubr.bf16.mxu0 %v397
        %6936 = vmatmul.mubr.bf16.gmra.mrb[0].mxu0 %v396
        %v6937 = vpop.f32.mrb[0].mxu0
        %v6938 = vadd.f32 %v6897, %v6937
        %v6939 = vpop.f32.mrb[0].mxu0
        %v6940 = vadd.f32 %v6899, %v6939
        %v6941 = vpop.f32.mrb[0].mxu0
        %v6942 = vpop.f32.mrb[0].mxu0
        %6943 = vdwg.mxu0
        %6944 = vmatprep.subr.bf16.mxu0 %v4922
        %6945 = vmatpush1.bf16.msra.mxu0 %v4921
        %6946 = vmatprep.subr.bf16.mxu0 %v4930
        %6947 = vmatpush1.bf16.msra.mxu0 %v4929
        %6948 = vmatprep.subr.bf16.mxu0 %v4938
        %6949 = vmatpush1.bf16.msra.mxu0 %v4937
        %6950 = vmatprep.subr.bf16.mxu0 %v4946
        %6951 = vmatpush1.bf16.msra.mxu0 %v4945
        %6952 = vmatprep.subr.bf16.mxu0 %v4954
        %6953 = vmatpush1.bf16.msra.mxu0 %v4953
        %6954 = vmatprep.subr.bf16.mxu0 %v4962
        %6955 = vmatpush1.bf16.msra.mxu0 %v4961
        %6956 = vmatprep.subr.bf16.mxu0 %v4970
        %6957 = vmatpush1.bf16.msra.mxu0 %v4969
        %6958 = vmatprep.subr.bf16.mxu0 %v4978
        %6959 = vmatpush1.bf16.msra.mxu0 %v4977
        %6960 = vmatprep.subr.bf16.mxu0 %v4986
        %6961 = vmatpush1.bf16.msra.mxu0 %v4985
        %6962 = vmatprep.subr.bf16.mxu0 %v4994
        %6963 = vmatpush1.bf16.msra.mxu0 %v4993
        %6964 = vmatprep.subr.bf16.mxu0 %v5002
        %6965 = vmatpush1.bf16.msra.mxu0 %v5001
        %6966 = vmatprep.subr.bf16.mxu0 %v5010
        %6967 = vmatpush1.bf16.msra.mxu0 %v5009
        %6968 = vmatprep.subr.bf16.mxu0 %v5018
        %6969 = vmatpush1.bf16.msra.mxu0 %v5017
        %6970 = vmatprep.subr.bf16.mxu0 %v5026
        %6971 = vmatpush1.bf16.msra.mxu0 %v5025
        %6972 = vmatprep.subr.bf16.mxu0 %v5034
        %6973 = vmatpush1.bf16.msra.mxu0 %v5033
        %6974 = vmatprep.subr.bf16.mxu0 %v5042
        %6975 = vmatpush1.bf16.msra.mxu0 %v5041
        %6976 = vmatprep.mubr.bf16.mxu0 %v399
        %6977 = vmatmul.mubr.bf16.gmra.mrb[0].mxu0 %v398
        %v6978 = vpop.f32.mrb[0].mxu0
        %v6979 = vadd.f32 %v6938, %v6978
        %v6980 = vpop.f32.mrb[0].mxu0
        %v6981 = vadd.f32 %v6940, %v6980
        %v6982 = vpop.f32.mrb[0].mxu0
        %v6983 = vpop.f32.mrb[0].mxu0
        %6984 = vdwg.mxu0
        %6985 = vmatprep.subr.bf16.mxu0 %v5050
        %6986 = vmatpush1.bf16.msra.mxu0 %v5049
        %6987 = vmatprep.subr.bf16.mxu0 %v5058
        %6988 = vmatpush1.bf16.msra.mxu0 %v5057
        %6989 = vmatprep.subr.bf16.mxu0 %v5066
        %6990 = vmatpush1.bf16.msra.mxu0 %v5065
        %6991 = vmatprep.subr.bf16.mxu0 %v5074
        %6992 = vmatpush1.bf16.msra.mxu0 %v5073
        %6993 = vmatprep.subr.bf16.mxu0 %v5082
        %6994 = vmatpush1.bf16.msra.mxu0 %v5081
        %6995 = vmatprep.subr.bf16.mxu0 %v5090
        %6996 = vmatpush1.bf16.msra.mxu0 %v5089
        %6997 = vmatprep.subr.bf16.mxu0 %v5098
        %6998 = vmatpush1.bf16.msra.mxu0 %v5097
        %6999 = vmatprep.subr.bf16.mxu0 %v5106
        %7000 = vmatpush1.bf16.msra.mxu0 %v5105
        %7001 = vmatprep.subr.bf16.mxu0 %v5114
        %7002 = vmatpush1.bf16.msra.mxu0 %v5113
        %7003 = vmatprep.subr.bf16.mxu0 %v5122
        %7004 = vmatpush1.bf16.msra.mxu0 %v5121
        %7005 = vmatprep.subr.bf16.mxu0 %v5130
        %7006 = vmatpush1.bf16.msra.mxu0 %v5129
        %7007 = vmatprep.subr.bf16.mxu0 %v5138
        %7008 = vmatpush1.bf16.msra.mxu0 %v5137
        %7009 = vmatprep.subr.bf16.mxu0 %v5146
        %7010 = vmatpush1.bf16.msra.mxu0 %v5145
        %7011 = vmatprep.subr.bf16.mxu0 %v5154
        %7012 = vmatpush1.bf16.msra.mxu0 %v5153
        %7013 = vmatprep.subr.bf16.mxu0 %v5162
        %7014 = vmatpush1.bf16.msra.mxu0 %v5161
        %7015 = vmatprep.subr.bf16.mxu0 %v5170
        %7016 = vmatpush1.bf16.msra.mxu0 %v5169
        %7017 = vmatprep.mubr.bf16.mxu0 %v401
        %7018 = vmatmul.mubr.bf16.gmra.mrb[0].mxu0 %v400
        %v7019 = vpop.f32.mrb[0].mxu0
        %v7020 = vadd.f32 %v6979, %v7019
        %v7021 = vpop.f32.mrb[0].mxu0
        %v7022 = vadd.f32 %v6981, %v7021
        %v7023 = vpop.f32.mrb[0].mxu0
        %v7024 = vpop.f32.mrb[0].mxu0
        %7025 = vdwg.mxu0
        %7026 = vmatprep.subr.bf16.mxu0 %v5178
        %7027 = vmatpush1.bf16.msra.mxu0 %v5177
        %7028 = vmatprep.subr.bf16.mxu0 %v5186
        %7029 = vmatpush1.bf16.msra.mxu0 %v5185
        %7030 = vmatprep.subr.bf16.mxu0 %v5194
        %7031 = vmatpush1.bf16.msra.mxu0 %v5193
        %7032 = vmatprep.subr.bf16.mxu0 %v5202
        %7033 = vmatpush1.bf16.msra.mxu0 %v5201
        %7034 = vmatprep.subr.bf16.mxu0 %v5210
        %7035 = vmatpush1.bf16.msra.mxu0 %v5209
        %7036 = vmatprep.subr.bf16.mxu0 %v5218
        %7037 = vmatpush1.bf16.msra.mxu0 %v5217
        %7038 = vmatprep.subr.bf16.mxu0 %v5226
        %7039 = vmatpush1.bf16.msra.mxu0 %v5225
        %7040 = vmatprep.subr.bf16.mxu0 %v5234
        %7041 = vmatpush1.bf16.msra.mxu0 %v5233
        %7042 = vmatprep.subr.bf16.mxu0 %v5242
        %7043 = vmatpush1.bf16.msra.mxu0 %v5241
        %7044 = vmatprep.subr.bf16.mxu0 %v5250
        %7045 = vmatpush1.bf16.msra.mxu0 %v5249
        %7046 = vmatprep.subr.bf16.mxu0 %v5258
        %7047 = vmatpush1.bf16.msra.mxu0 %v5257
        %7048 = vmatprep.subr.bf16.mxu0 %v5266
        %7049 = vmatpush1.bf16.msra.mxu0 %v5265
        %7050 = vmatprep.subr.bf16.mxu0 %v5274
        %7051 = vmatpush1.bf16.msra.mxu0 %v5273
        %7052 = vmatprep.subr.bf16.mxu0 %v5282
        %7053 = vmatpush1.bf16.msra.mxu0 %v5281
        %7054 = vmatprep.subr.bf16.mxu0 %v5290
        %7055 = vmatpush1.bf16.msra.mxu0 %v5289
        %7056 = vmatprep.subr.bf16.mxu0 %v5298
        %7057 = vmatpush1.bf16.msra.mxu0 %v5297
        %7058 = vmatprep.mubr.bf16.mxu0 %v403
        %7059 = vmatmul.mubr.bf16.gmra.mrb[0].mxu0 %v402
        %v7060 = vpop.f32.mrb[0].mxu0
        %v7061 = vadd.f32 %v7020, %v7060
        %v7062 = vpop.f32.mrb[0].mxu0
        %v7063 = vadd.f32 %v7022, %v7062
        %v7064 = vpop.f32.mrb[0].mxu0
        %v7065 = vpop.f32.mrb[0].mxu0
        %7066 = vdwg.mxu0
        %7067 = vmatprep.subr.bf16.mxu0 %v5306
        %7068 = vmatpush1.bf16.msra.mxu0 %v5305
        %7069 = vmatprep.subr.bf16.mxu0 %v5314
        %7070 = vmatpush1.bf16.msra.mxu0 %v5313
        %7071 = vmatprep.subr.bf16.mxu0 %v5322
        %7072 = vmatpush1.bf16.msra.mxu0 %v5321
        %7073 = vmatprep.subr.bf16.mxu0 %v5330
        %7074 = vmatpush1.bf16.msra.mxu0 %v5329
        %7075 = vmatprep.subr.bf16.mxu0 %v5338
        %7076 = vmatpush1.bf16.msra.mxu0 %v5337
        %7077 = vmatprep.subr.bf16.mxu0 %v5346
        %7078 = vmatpush1.bf16.msra.mxu0 %v5345
        %7079 = vmatprep.subr.bf16.mxu0 %v5354
        %7080 = vmatpush1.bf16.msra.mxu0 %v5353
        %7081 = vmatprep.subr.bf16.mxu0 %v5362
        %7082 = vmatpush1.bf16.msra.mxu0 %v5361
        %7083 = vmatprep.subr.bf16.mxu0 %v5370
        %7084 = vmatpush1.bf16.msra.mxu0 %v5369
        %7085 = vmatprep.subr.bf16.mxu0 %v5378
        %7086 = vmatpush1.bf16.msra.mxu0 %v5377
        %7087 = vmatprep.subr.bf16.mxu0 %v5386
        %7088 = vmatpush1.bf16.msra.mxu0 %v5385
        %7089 = vmatprep.subr.bf16.mxu0 %v5394
        %7090 = vmatpush1.bf16.msra.mxu0 %v5393
        %7091 = vmatprep.subr.bf16.mxu0 %v5402
        %7092 = vmatpush1.bf16.msra.mxu0 %v5401
        %7093 = vmatprep.subr.bf16.mxu0 0
        %7094 = vmatpush1.bf16.msra.mxu0 0
        %7095 = vmatprep.subr.bf16.mxu0 0
        %7096 = vmatpush1.bf16.msra.mxu0 0
        %7097 = vmatprep.subr.bf16.mxu0 0
        %7098 = vmatpush1.bf16.msra.mxu0 0
        %7099 = vmatprep.mubr.bf16.mxu0 %v6450
        %7100 = vmatmul.mubr.bf16.gmra.mrb[0].mxu0 %v404
        %v7101 = vpop.f32.mrb[0].mxu0
        %v7102 = vadd.f32 %v7061, %v7101
        %v7103 = vpop.f32.mrb[0].mxu0
        %v7104 = vadd.f32 %v7063, %v7103
        %v7105 = vpop.f32.mrb[0].mxu0
        %v7106 = vpop.f32.mrb[0].mxu0
        %7107 = vdwg.mxu0
        %7108 = vmatprep.subr.bf16.mxu0 %v4412
        %7109 = vmatpush1.bf16.msra.mxu0 %v4411
        %7110 = vmatprep.subr.bf16.mxu0 %v4420
        %7111 = vmatpush1.bf16.msra.mxu0 %v4419
        %7112 = vmatprep.subr.bf16.mxu0 %v4428
        %7113 = vmatpush1.bf16.msra.mxu0 %v4427
        %7114 = vmatprep.subr.bf16.mxu0 %v4436
        %7115 = vmatpush1.bf16.msra.mxu0 %v4435
        %7116 = vmatprep.subr.bf16.mxu0 %v4444
        %7117 = vmatpush1.bf16.msra.mxu0 %v4443
        %7118 = vmatprep.subr.bf16.mxu0 %v4452
        %7119 = vmatpush1.bf16.msra.mxu0 %v4451
        %7120 = vmatprep.subr.bf16.mxu0 %v4460
        %7121 = vmatpush1.bf16.msra.mxu0 %v4459
        %7122 = vmatprep.subr.bf16.mxu0 %v4468
        %7123 = vmatpush1.bf16.msra.mxu0 %v4467
        %7124 = vmatprep.subr.bf16.mxu0 %v4476
        %7125 = vmatpush1.bf16.msra.mxu0 %v4475
        %7126 = vmatprep.subr.bf16.mxu0 %v4484
        %7127 = vmatpush1.bf16.msra.mxu0 %v4483
        %7128 = vmatprep.subr.bf16.mxu0 %v4492
        %7129 = vmatpush1.bf16.msra.mxu0 %v4491
        %7130 = vmatprep.subr.bf16.mxu0 %v4500
        %7131 = vmatpush1.bf16.msra.mxu0 %v4499
        %7132 = vmatprep.subr.bf16.mxu0 %v4508
        %7133 = vmatpush1.bf16.msra.mxu0 %v4507
        %7134 = vmatprep.subr.bf16.mxu0 %v4516
        %7135 = vmatpush1.bf16.msra.mxu0 %v4515
        %7136 = vmatprep.subr.bf16.mxu0 %v4524
        %7137 = vmatpush1.bf16.msra.mxu0 %v4523
        %7138 = vmatprep.subr.bf16.mxu0 %v4532
        %7139 = vmatpush1.bf16.msra.mxu0 %v4531
        %7140 = vmatprep.mubr.bf16.mxu0 %v391
        %7141 = vmatmul.mubr.bf16.gmra.mrb[0].mxu0 %v390
        %v7142 = vpop.f32.mrb[0].mxu0
        %v7143 = vadd.f32 %v6427, %v7142
        %v7144 = vpop.f32.mrb[0].mxu0
        %v7145 = vadd.f32 %v6431, %v7144
        %v7146 = vpop.f32.mrb[0].mxu0
        %v7147 = vpop.f32.mrb[0].mxu0
        %7148 = vdwg.mxu0
        %7149 = vmatprep.subr.bf16.mxu0 %v4540
        %7150 = vmatpush1.bf16.msra.mxu0 %v4539
        %7151 = vmatprep.subr.bf16.mxu0 %v4548
        %7152 = vmatpush1.bf16.msra.mxu0 %v4547
        %7153 = vmatprep.subr.bf16.mxu0 %v4556
        %7154 = vmatpush1.bf16.msra.mxu0 %v4555
        %7155 = vmatprep.subr.bf16.mxu0 %v4564
        %7156 = vmatpush1.bf16.msra.mxu0 %v4563
        %7157 = vmatprep.subr.bf16.mxu0 %v4572
        %7158 = vmatpush1.bf16.msra.mxu0 %v4571
        %7159 = vmatprep.subr.bf16.mxu0 %v4580
        %7160 = vmatpush1.bf16.msra.mxu0 %v4579
        %7161 = vmatprep.subr.bf16.mxu0 %v4588
        %7162 = vmatpush1.bf16.msra.mxu0 %v4587
        %7163 = vmatprep.subr.bf16.mxu0 %v4596
        %7164 = vmatpush1.bf16.msra.mxu0 %v4595
        %7165 = vmatprep.subr.bf16.mxu0 %v4604
        %7166 = vmatpush1.bf16.msra.mxu0 %v4603
        %7167 = vmatprep.subr.bf16.mxu0 %v4612
        %7168 = vmatpush1.bf16.msra.mxu0 %v4611
        %7169 = vmatprep.subr.bf16.mxu0 %v4620
        %7170 = vmatpush1.bf16.msra.mxu0 %v4619
        %7171 = vmatprep.subr.bf16.mxu0 %v4628
        %7172 = vmatpush1.bf16.msra.mxu0 %v4627
        %7173 = vmatprep.subr.bf16.mxu0 %v4636
        %7174 = vmatpush1.bf16.msra.mxu0 %v4635
        %7175 = vmatprep.subr.bf16.mxu0 %v4644
        %7176 = vmatpush1.bf16.msra.mxu0 %v4643
        %7177 = vmatprep.subr.bf16.mxu0 %v4652
        %7178 = vmatpush1.bf16.msra.mxu0 %v4651
        %7179 = vmatprep.subr.bf16.mxu0 %v4660
        %7180 = vmatpush1.bf16.msra.mxu0 %v4659
        %7181 = vmatprep.mubr.bf16.mxu0 %v393
        %7182 = vmatmul.mubr.bf16.gmra.mrb[0].mxu0 %v392
        %v7183 = vpop.f32.mrb[0].mxu0
        %v7184 = vadd.f32 %v7143, %v7183
        %v7185 = vpop.f32.mrb[0].mxu0
        %v7186 = vadd.f32 %v7145, %v7185
        %v7187 = vpop.f32.mrb[0].mxu0
        %v7188 = vpop.f32.mrb[0].mxu0
        %7189 = vdwg.mxu0
        %7190 = vmatprep.subr.bf16.mxu0 %v4668
        %7191 = vmatpush1.bf16.msra.mxu0 %v4667
        %7192 = vmatprep.subr.bf16.mxu0 %v4676
        %7193 = vmatpush1.bf16.msra.mxu0 %v4675
        %7194 = vmatprep.subr.bf16.mxu0 %v4684
        %7195 = vmatpush1.bf16.msra.mxu0 %v4683
        %7196 = vmatprep.subr.bf16.mxu0 %v4692
        %7197 = vmatpush1.bf16.msra.mxu0 %v4691
        %7198 = vmatprep.subr.bf16.mxu0 %v4700
        %7199 = vmatpush1.bf16.msra.mxu0 %v4699
        %7200 = vmatprep.subr.bf16.mxu0 %v4708
        %7201 = vmatpush1.bf16.msra.mxu0 %v4707
        %7202 = vmatprep.subr.bf16.mxu0 %v4716
        %7203 = vmatpush1.bf16.msra.mxu0 %v4715
        %7204 = vmatprep.subr.bf16.mxu0 %v4724
        %7205 = vmatpush1.bf16.msra.mxu0 %v4723
        %7206 = vmatprep.subr.bf16.mxu0 %v4732
        %7207 = vmatpush1.bf16.msra.mxu0 %v4731
        %7208 = vmatprep.subr.bf16.mxu0 %v4740
        %7209 = vmatpush1.bf16.msra.mxu0 %v4739
        %7210 = vmatprep.subr.bf16.mxu0 %v4748
        %7211 = vmatpush1.bf16.msra.mxu0 %v4747
        %7212 = vmatprep.subr.bf16.mxu0 %v4756
        %7213 = vmatpush1.bf16.msra.mxu0 %v4755
        %7214 = vmatprep.subr.bf16.mxu0 %v4764
        %7215 = vmatpush1.bf16.msra.mxu0 %v4763
        %7216 = vmatprep.subr.bf16.mxu0 %v4772
        %7217 = vmatpush1.bf16.msra.mxu0 %v4771
        %7218 = vmatprep.subr.bf16.mxu0 %v4780
        %7219 = vmatpush1.bf16.msra.mxu0 %v4779
        %7220 = vmatprep.subr.bf16.mxu0 %v4788
        %7221 = vmatpush1.bf16.msra.mxu0 %v4787
        %7222 = vmatprep.mubr.bf16.mxu0 %v395
        %7223 = vmatmul.mubr.bf16.gmra.mrb[0].mxu0 %v394
        %v7224 = vpop.f32.mrb[0].mxu0
        %v7225 = vadd.f32 %v7184, %v7224
        %v7226 = vpop.f32.mrb[0].mxu0
        %v7227 = vadd.f32 %v7186, %v7226
        %v7228 = vpop.f32.mrb[0].mxu0
        %v7229 = vpop.f32.mrb[0].mxu0
        %7230 = vdwg.mxu0
        %7231 = vmatprep.subr.bf16.mxu0 %v4796
        %7232 = vmatpush1.bf16.msra.mxu0 %v4795
        %7233 = vmatprep.subr.bf16.mxu0 %v4804
        %7234 = vmatpush1.bf16.msra.mxu0 %v4803
        %7235 = vmatprep.subr.bf16.mxu0 %v4812
        %7236 = vmatpush1.bf16.msra.mxu0 %v4811
        %7237 = vmatprep.subr.bf16.mxu0 %v4820
        %7238 = vmatpush1.bf16.msra.mxu0 %v4819
        %7239 = vmatprep.subr.bf16.mxu0 %v4828
        %7240 = vmatpush1.bf16.msra.mxu0 %v4827
        %7241 = vmatprep.subr.bf16.mxu0 %v4836
        %7242 = vmatpush1.bf16.msra.mxu0 %v4835
        %7243 = vmatprep.subr.bf16.mxu0 %v4844
        %7244 = vmatpush1.bf16.msra.mxu0 %v4843
        %7245 = vmatprep.subr.bf16.mxu0 %v4852
        %7246 = vmatpush1.bf16.msra.mxu0 %v4851
        %7247 = vmatprep.subr.bf16.mxu0 %v4860
        %7248 = vmatpush1.bf16.msra.mxu0 %v4859
        %7249 = vmatprep.subr.bf16.mxu0 %v4868
        %7250 = vmatpush1.bf16.msra.mxu0 %v4867
        %7251 = vmatprep.subr.bf16.mxu0 %v4876
        %7252 = vmatpush1.bf16.msra.mxu0 %v4875
        %7253 = vmatprep.subr.bf16.mxu0 %v4884
        %7254 = vmatpush1.bf16.msra.mxu0 %v4883
        %7255 = vmatprep.subr.bf16.mxu0 %v4892
        %7256 = vmatpush1.bf16.msra.mxu0 %v4891
        %7257 = vmatprep.subr.bf16.mxu0 %v4900
        %7258 = vmatpush1.bf16.msra.mxu0 %v4899
        %7259 = vmatprep.subr.bf16.mxu0 %v4908
        %7260 = vmatpush1.bf16.msra.mxu0 %v4907
        %7261 = vmatprep.subr.bf16.mxu0 %v4916
        %7262 = vmatpush1.bf16.msra.mxu0 %v4915
        %7263 = vmatprep.mubr.bf16.mxu0 %v397
        %7264 = vmatmul.mubr.bf16.gmra.mrb[0].mxu0 %v396
        %v7265 = vpop.f32.mrb[0].mxu0
        %v7266 = vadd.f32 %v7225, %v7265
        %v7267 = vpop.f32.mrb[0].mxu0
        %v7268 = vadd.f32 %v7227, %v7267
        %v7269 = vpop.f32.mrb[0].mxu0
        %v7270 = vpop.f32.mrb[0].mxu0
        %7271 = vdwg.mxu0
        %7272 = vmatprep.subr.bf16.mxu0 %v4924
        %7273 = vmatpush1.bf16.msra.mxu0 %v4923
        %7274 = vmatprep.subr.bf16.mxu0 %v4932
        %7275 = vmatpush1.bf16.msra.mxu0 %v4931
        %7276 = vmatprep.subr.bf16.mxu0 %v4940
        %7277 = vmatpush1.bf16.msra.mxu0 %v4939
        %7278 = vmatprep.subr.bf16.mxu0 %v4948
        %7279 = vmatpush1.bf16.msra.mxu0 %v4947
        %7280 = vmatprep.subr.bf16.mxu0 %v4956
        %7281 = vmatpush1.bf16.msra.mxu0 %v4955
        %7282 = vmatprep.subr.bf16.mxu0 %v4964
        %7283 = vmatpush1.bf16.msra.mxu0 %v4963
        %7284 = vmatprep.subr.bf16.mxu0 %v4972
        %7285 = vmatpush1.bf16.msra.mxu0 %v4971
        %7286 = vmatprep.subr.bf16.mxu0 %v4980
        %7287 = vmatpush1.bf16.msra.mxu0 %v4979
        %7288 = vmatprep.subr.bf16.mxu0 %v4988
        %7289 = vmatpush1.bf16.msra.mxu0 %v4987
        %7290 = vmatprep.subr.bf16.mxu0 %v4996
        %7291 = vmatpush1.bf16.msra.mxu0 %v4995
        %7292 = vmatprep.subr.bf16.mxu0 %v5004
        %7293 = vmatpush1.bf16.msra.mxu0 %v5003
        %7294 = vmatprep.subr.bf16.mxu0 %v5012
        %7295 = vmatpush1.bf16.msra.mxu0 %v5011
        %7296 = vmatprep.subr.bf16.mxu0 %v5020
        %7297 = vmatpush1.bf16.msra.mxu0 %v5019
        %7298 = vmatprep.subr.bf16.mxu0 %v5028
        %7299 = vmatpush1.bf16.msra.mxu0 %v5027
        %7300 = vmatprep.subr.bf16.mxu0 %v5036
        %7301 = vmatpush1.bf16.msra.mxu0 %v5035
        %7302 = vmatprep.subr.bf16.mxu0 %v5044
        %7303 = vmatpush1.bf16.msra.mxu0 %v5043
        %7304 = vmatprep.mubr.bf16.mxu0 %v399
        %7305 = vmatmul.mubr.bf16.gmra.mrb[0].mxu0 %v398
        %v7306 = vpop.f32.mrb[0].mxu0
        %v7307 = vadd.f32 %v7266, %v7306
        %v7308 = vpop.f32.mrb[0].mxu0
        %v7309 = vadd.f32 %v7268, %v7308
        %v7310 = vpop.f32.mrb[0].mxu0
        %v7311 = vpop.f32.mrb[0].mxu0
        %7312 = vdwg.mxu0
        %7313 = vmatprep.subr.bf16.mxu0 %v5052
        %7314 = vmatpush1.bf16.msra.mxu0 %v5051
        %7315 = vmatprep.subr.bf16.mxu0 %v5060
        %7316 = vmatpush1.bf16.msra.mxu0 %v5059
        %7317 = vmatprep.subr.bf16.mxu0 %v5068
        %7318 = vmatpush1.bf16.msra.mxu0 %v5067
        %7319 = vmatprep.subr.bf16.mxu0 %v5076
        %7320 = vmatpush1.bf16.msra.mxu0 %v5075
        %7321 = vmatprep.subr.bf16.mxu0 %v5084
        %7322 = vmatpush1.bf16.msra.mxu0 %v5083
        %7323 = vmatprep.subr.bf16.mxu0 %v5092
        %7324 = vmatpush1.bf16.msra.mxu0 %v5091
        %7325 = vmatprep.subr.bf16.mxu0 %v5100
        %7326 = vmatpush1.bf16.msra.mxu0 %v5099
        %7327 = vmatprep.subr.bf16.mxu0 %v5108
        %7328 = vmatpush1.bf16.msra.mxu0 %v5107
        %7329 = vmatprep.subr.bf16.mxu0 %v5116
        %7330 = vmatpush1.bf16.msra.mxu0 %v5115
        %7331 = vmatprep.subr.bf16.mxu0 %v5124
        %7332 = vmatpush1.bf16.msra.mxu0 %v5123
        %7333 = vmatprep.subr.bf16.mxu0 %v5132
        %7334 = vmatpush1.bf16.msra.mxu0 %v5131
        %7335 = vmatprep.subr.bf16.mxu0 %v5140
        %7336 = vmatpush1.bf16.msra.mxu0 %v5139
        %7337 = vmatprep.subr.bf16.mxu0 %v5148
        %7338 = vmatpush1.bf16.msra.mxu0 %v5147
        %7339 = vmatprep.subr.bf16.mxu0 %v5156
        %7340 = vmatpush1.bf16.msra.mxu0 %v5155
        %7341 = vmatprep.subr.bf16.mxu0 %v5164
        %7342 = vmatpush1.bf16.msra.mxu0 %v5163
        %7343 = vmatprep.subr.bf16.mxu0 %v5172
        %7344 = vmatpush1.bf16.msra.mxu0 %v5171
        %7345 = vmatprep.mubr.bf16.mxu0 %v401
        %7346 = vmatmul.mubr.bf16.gmra.mrb[0].mxu0 %v400
        %v7347 = vpop.f32.mrb[0].mxu0
        %v7348 = vadd.f32 %v7307, %v7347
        %v7349 = vpop.f32.mrb[0].mxu0
        %v7350 = vadd.f32 %v7309, %v7349
        %v7351 = vpop.f32.mrb[0].mxu0
        %v7352 = vpop.f32.mrb[0].mxu0
        %7353 = vdwg.mxu0
        %7354 = vmatprep.subr.bf16.mxu0 %v5180
        %7355 = vmatpush1.bf16.msra.mxu0 %v5179
        %7356 = vmatprep.subr.bf16.mxu0 %v5188
        %7357 = vmatpush1.bf16.msra.mxu0 %v5187
        %7358 = vmatprep.subr.bf16.mxu0 %v5196
        %7359 = vmatpush1.bf16.msra.mxu0 %v5195
        %7360 = vmatprep.subr.bf16.mxu0 %v5204
        %7361 = vmatpush1.bf16.msra.mxu0 %v5203
        %7362 = vmatprep.subr.bf16.mxu0 %v5212
        %7363 = vmatpush1.bf16.msra.mxu0 %v5211
        %7364 = vmatprep.subr.bf16.mxu0 %v5220
        %7365 = vmatpush1.bf16.msra.mxu0 %v5219
        %7366 = vmatprep.subr.bf16.mxu0 %v5228
        %7367 = vmatpush1.bf16.msra.mxu0 %v5227
        %7368 = vmatprep.subr.bf16.mxu0 %v5236
        %7369 = vmatpush1.bf16.msra.mxu0 %v5235
        %7370 = vmatprep.subr.bf16.mxu0 %v5244
        %7371 = vmatpush1.bf16.msra.mxu0 %v5243
        %7372 = vmatprep.subr.bf16.mxu0 %v5252
        %7373 = vmatpush1.bf16.msra.mxu0 %v5251
        %7374 = vmatprep.subr.bf16.mxu0 %v5260
        %7375 = vmatpush1.bf16.msra.mxu0 %v5259
        %7376 = vmatprep.subr.bf16.mxu0 %v5268
        %7377 = vmatpush1.bf16.msra.mxu0 %v5267
        %7378 = vmatprep.subr.bf16.mxu0 %v5276
        %7379 = vmatpush1.bf16.msra.mxu0 %v5275
        %7380 = vmatprep.subr.bf16.mxu0 %v5284
        %7381 = vmatpush1.bf16.msra.mxu0 %v5283
        %7382 = vmatprep.subr.bf16.mxu0 %v5292
        %7383 = vmatpush1.bf16.msra.mxu0 %v5291
        %7384 = vmatprep.subr.bf16.mxu0 %v5300
        %7385 = vmatpush1.bf16.msra.mxu0 %v5299
        %7386 = vmatprep.mubr.bf16.mxu0 %v403
        %7387 = vmatmul.mubr.bf16.gmra.mrb[0].mxu0 %v402
        %v7388 = vpop.f32.mrb[0].mxu0
        %v7389 = vadd.f32 %v7348, %v7388
        %v7390 = vpop.f32.mrb[0].mxu0
        %v7391 = vadd.f32 %v7350, %v7390
        %v7392 = vpop.f32.mrb[0].mxu0
        %v7393 = vpop.f32.mrb[0].mxu0
        %7394 = vdwg.mxu0
        %7395 = vmatprep.subr.bf16.mxu0 %v5308
        %7396 = vmatpush1.bf16.msra.mxu0 %v5307
        %7397 = vmatprep.subr.bf16.mxu0 %v5316
        %7398 = vmatpush1.bf16.msra.mxu0 %v5315
        %7399 = vmatprep.subr.bf16.mxu0 %v5324
        %7400 = vmatpush1.bf16.msra.mxu0 %v5323
        %7401 = vmatprep.subr.bf16.mxu0 %v5332
        %7402 = vmatpush1.bf16.msra.mxu0 %v5331
        %7403 = vmatprep.subr.bf16.mxu0 %v5340
        %7404 = vmatpush1.bf16.msra.mxu0 %v5339
        %7405 = vmatprep.subr.bf16.mxu0 %v5348
        %7406 = vmatpush1.bf16.msra.mxu0 %v5347
        %7407 = vmatprep.subr.bf16.mxu0 %v5356
        %7408 = vmatpush1.bf16.msra.mxu0 %v5355
        %7409 = vmatprep.subr.bf16.mxu0 %v5364
        %7410 = vmatpush1.bf16.msra.mxu0 %v5363
        %7411 = vmatprep.subr.bf16.mxu0 %v5372
        %7412 = vmatpush1.bf16.msra.mxu0 %v5371
        %7413 = vmatprep.subr.bf16.mxu0 %v5380
        %7414 = vmatpush1.bf16.msra.mxu0 %v5379
        %7415 = vmatprep.subr.bf16.mxu0 %v5388
        %7416 = vmatpush1.bf16.msra.mxu0 %v5387
        %7417 = vmatprep.subr.bf16.mxu0 %v5396
        %7418 = vmatpush1.bf16.msra.mxu0 %v5395
        %7419 = vmatprep.subr.bf16.mxu0 %v5404
        %7420 = vmatpush1.bf16.msra.mxu0 %v5403
        %7421 = vmatprep.subr.bf16.mxu0 0
        %7422 = vmatpush1.bf16.msra.mxu0 0
        %7423 = vmatprep.subr.bf16.mxu0 0
        %7424 = vmatpush1.bf16.msra.mxu0 0
        %7425 = vmatprep.subr.bf16.mxu0 0
        %7426 = vmatpush1.bf16.msra.mxu0 0
        %7427 = vmatprep.mubr.bf16.mxu0 %v6450
        %7428 = vmatmul.mubr.bf16.gmra.mrb[0].mxu0 %v404
        %v7429 = vpop.f32.mrb[0].mxu0
        %v7430 = vadd.f32 %v7389, %v7429
        %v7431 = vpop.f32.mrb[0].mxu0
        %v7432 = vadd.f32 %v7391, %v7431
        %v7433 = vpop.f32.mrb[0].mxu0
        %v7434 = vpop.f32.mrb[0].mxu0
        %7435 = vdwg.mxu0
        %7436 = vmatprep.subr.bf16.mxu0 %v4414
        %7437 = vmatpush1.bf16.msra.mxu0 %v4413
        %7438 = vmatprep.subr.bf16.mxu0 %v4422
        %7439 = vmatpush1.bf16.msra.mxu0 %v4421
        %7440 = vmatprep.subr.bf16.mxu0 %v4430
        %7441 = vmatpush1.bf16.msra.mxu0 %v4429
        %7442 = vmatprep.subr.bf16.mxu0 %v4438
        %7443 = vmatpush1.bf16.msra.mxu0 %v4437
        %7444 = vmatprep.subr.bf16.mxu0 %v4446
        %7445 = vmatpush1.bf16.msra.mxu0 %v4445
        %7446 = vmatprep.subr.bf16.mxu0 %v4454
        %7447 = vmatpush1.bf16.msra.mxu0 %v4453
        %7448 = vmatprep.subr.bf16.mxu0 %v4462
        %7449 = vmatpush1.bf16.msra.mxu0 %v4461
        %7450 = vmatprep.subr.bf16.mxu0 %v4470
        %7451 = vmatpush1.bf16.msra.mxu0 %v4469
        %7452 = vmatprep.subr.bf16.mxu0 %v4478
        %7453 = vmatpush1.bf16.msra.mxu0 %v4477
        %7454 = vmatprep.subr.bf16.mxu0 %v4486
        %7455 = vmatpush1.bf16.msra.mxu0 %v4485
        %7456 = vmatprep.subr.bf16.mxu0 %v4494
        %7457 = vmatpush1.bf16.msra.mxu0 %v4493
        %7458 = vmatprep.subr.bf16.mxu0 %v4502
        %7459 = vmatpush1.bf16.msra.mxu0 %v4501
        %7460 = vmatprep.subr.bf16.mxu0 %v4510
        %7461 = vmatpush1.bf16.msra.mxu0 %v4509
        %7462 = vmatprep.subr.bf16.mxu0 %v4518
        %7463 = vmatpush1.bf16.msra.mxu0 %v4517
        %7464 = vmatprep.subr.bf16.mxu0 %v4526
        %7465 = vmatpush1.bf16.msra.mxu0 %v4525
        %7466 = vmatprep.subr.bf16.mxu0 %v4534
        %7467 = vmatpush1.bf16.msra.mxu0 %v4533
        %7468 = vmatprep.mubr.bf16.mxu0 %v391
        %7469 = vmatmul.mubr.bf16.gmra.mrb[0].mxu0 %v390
        %v7470 = vpop.f32.mrb[0].mxu0
        %v7471 = vadd.f32 %v6435, %v7470
        %v7472 = vpop.f32.mrb[0].mxu0
        %v7473 = vadd.f32 %v6439, %v7472
        %v7474 = vpop.f32.mrb[0].mxu0
        %v7475 = vpop.f32.mrb[0].mxu0
        %7476 = vdwg.mxu0
        %7477 = vmatprep.subr.bf16.mxu0 %v4542
        %7478 = vmatpush1.bf16.msra.mxu0 %v4541
        %7479 = vmatprep.subr.bf16.mxu0 %v4550
        %7480 = vmatpush1.bf16.msra.mxu0 %v4549
        %7481 = vmatprep.subr.bf16.mxu0 %v4558
        %7482 = vmatpush1.bf16.msra.mxu0 %v4557
        %7483 = vmatprep.subr.bf16.mxu0 %v4566
        %7484 = vmatpush1.bf16.msra.mxu0 %v4565
        %7485 = vmatprep.subr.bf16.mxu0 %v4574
        %7486 = vmatpush1.bf16.msra.mxu0 %v4573
        %7487 = vmatprep.subr.bf16.mxu0 %v4582
        %7488 = vmatpush1.bf16.msra.mxu0 %v4581
        %7489 = vmatprep.subr.bf16.mxu0 %v4590
        %7490 = vmatpush1.bf16.msra.mxu0 %v4589
        %7491 = vmatprep.subr.bf16.mxu0 %v4598
        %7492 = vmatpush1.bf16.msra.mxu0 %v4597
        %7493 = vmatprep.subr.bf16.mxu0 %v4606
        %7494 = vmatpush1.bf16.msra.mxu0 %v4605
        %7495 = vmatprep.subr.bf16.mxu0 %v4614
        %7496 = vmatpush1.bf16.msra.mxu0 %v4613
        %7497 = vmatprep.subr.bf16.mxu0 %v4622
        %7498 = vmatpush1.bf16.msra.mxu0 %v4621
        %7499 = vmatprep.subr.bf16.mxu0 %v4630
        %7500 = vmatpush1.bf16.msra.mxu0 %v4629
        %7501 = vmatprep.subr.bf16.mxu0 %v4638
        %7502 = vmatpush1.bf16.msra.mxu0 %v4637
        %7503 = vmatprep.subr.bf16.mxu0 %v4646
        %7504 = vmatpush1.bf16.msra.mxu0 %v4645
        %7505 = vmatprep.subr.bf16.mxu0 %v4654
        %7506 = vmatpush1.bf16.msra.mxu0 %v4653
        %7507 = vmatprep.subr.bf16.mxu0 %v4662
        %7508 = vmatpush1.bf16.msra.mxu0 %v4661
        %7509 = vmatprep.mubr.bf16.mxu0 %v393
        %7510 = vmatmul.mubr.bf16.gmra.mrb[0].mxu0 %v392
        %v7511 = vpop.f32.mrb[0].mxu0
        %v7512 = vadd.f32 %v7471, %v7511
        %v7513 = vpop.f32.mrb[0].mxu0
        %v7514 = vadd.f32 %v7473, %v7513
        %v7515 = vpop.f32.mrb[0].mxu0
        %v7516 = vpop.f32.mrb[0].mxu0
        %7517 = vdwg.mxu0
        %7518 = vmatprep.subr.bf16.mxu0 %v4670
        %7519 = vmatpush1.bf16.msra.mxu0 %v4669
        %7520 = vmatprep.subr.bf16.mxu0 %v4678
        %7521 = vmatpush1.bf16.msra.mxu0 %v4677
        %7522 = vmatprep.subr.bf16.mxu0 %v4686
        %7523 = vmatpush1.bf16.msra.mxu0 %v4685
        %7524 = vmatprep.subr.bf16.mxu0 %v4694
        %7525 = vmatpush1.bf16.msra.mxu0 %v4693
        %7526 = vmatprep.subr.bf16.mxu0 %v4702
        %7527 = vmatpush1.bf16.msra.mxu0 %v4701
        %7528 = vmatprep.subr.bf16.mxu0 %v4710
        %7529 = vmatpush1.bf16.msra.mxu0 %v4709
        %7530 = vmatprep.subr.bf16.mxu0 %v4718
        %7531 = vmatpush1.bf16.msra.mxu0 %v4717
        %7532 = vmatprep.subr.bf16.mxu0 %v4726
        %7533 = vmatpush1.bf16.msra.mxu0 %v4725
        %7534 = vmatprep.subr.bf16.mxu0 %v4734
        %7535 = vmatpush1.bf16.msra.mxu0 %v4733
        %7536 = vmatprep.subr.bf16.mxu0 %v4742
        %7537 = vmatpush1.bf16.msra.mxu0 %v4741
        %7538 = vmatprep.subr.bf16.mxu0 %v4750
        %7539 = vmatpush1.bf16.msra.mxu0 %v4749
        %7540 = vmatprep.subr.bf16.mxu0 %v4758
        %7541 = vmatpush1.bf16.msra.mxu0 %v4757
        %7542 = vmatprep.subr.bf16.mxu0 %v4766
        %7543 = vmatpush1.bf16.msra.mxu0 %v4765
        %7544 = vmatprep.subr.bf16.mxu0 %v4774
        %7545 = vmatpush1.bf16.msra.mxu0 %v4773
        %7546 = vmatprep.subr.bf16.mxu0 %v4782
        %7547 = vmatpush1.bf16.msra.mxu0 %v4781
        %7548 = vmatprep.subr.bf16.mxu0 %v4790
        %7549 = vmatpush1.bf16.msra.mxu0 %v4789
        %7550 = vmatprep.mubr.bf16.mxu0 %v395
        %7551 = vmatmul.mubr.bf16.gmra.mrb[0].mxu0 %v394
        %v7552 = vpop.f32.mrb[0].mxu0
        %v7553 = vadd.f32 %v7512, %v7552
        %v7554 = vpop.f32.mrb[0].mxu0
        %v7555 = vadd.f32 %v7514, %v7554
        %v7556 = vpop.f32.mrb[0].mxu0
        %v7557 = vpop.f32.mrb[0].mxu0
        %7558 = vdwg.mxu0
        %7559 = vmatprep.subr.bf16.mxu0 %v4798
        %7560 = vmatpush1.bf16.msra.mxu0 %v4797
        %7561 = vmatprep.subr.bf16.mxu0 %v4806
        %7562 = vmatpush1.bf16.msra.mxu0 %v4805
        %7563 = vmatprep.subr.bf16.mxu0 %v4814
        %7564 = vmatpush1.bf16.msra.mxu0 %v4813
        %7565 = vmatprep.subr.bf16.mxu0 %v4822
        %7566 = vmatpush1.bf16.msra.mxu0 %v4821
        %7567 = vmatprep.subr.bf16.mxu0 %v4830
        %7568 = vmatpush1.bf16.msra.mxu0 %v4829
        %7569 = vmatprep.subr.bf16.mxu0 %v4838
        %7570 = vmatpush1.bf16.msra.mxu0 %v4837
        %7571 = vmatprep.subr.bf16.mxu0 %v4846
        %7572 = vmatpush1.bf16.msra.mxu0 %v4845
        %7573 = vmatprep.subr.bf16.mxu0 %v4854
        %7574 = vmatpush1.bf16.msra.mxu0 %v4853
        %7575 = vmatprep.subr.bf16.mxu0 %v4862
        %7576 = vmatpush1.bf16.msra.mxu0 %v4861
        %7577 = vmatprep.subr.bf16.mxu0 %v4870
        %7578 = vmatpush1.bf16.msra.mxu0 %v4869
        %7579 = vmatprep.subr.bf16.mxu0 %v4878
        %7580 = vmatpush1.bf16.msra.mxu0 %v4877
        %7581 = vmatprep.subr.bf16.mxu0 %v4886
        %7582 = vmatpush1.bf16.msra.mxu0 %v4885
        %7583 = vmatprep.subr.bf16.mxu0 %v4894
        %7584 = vmatpush1.bf16.msra.mxu0 %v4893
        %7585 = vmatprep.subr.bf16.mxu0 %v4902
        %7586 = vmatpush1.bf16.msra.mxu0 %v4901
        %7587 = vmatprep.subr.bf16.mxu0 %v4910
        %7588 = vmatpush1.bf16.msra.mxu0 %v4909
        %7589 = vmatprep.subr.bf16.mxu0 %v4918
        %7590 = vmatpush1.bf16.msra.mxu0 %v4917
        %7591 = vmatprep.mubr.bf16.mxu0 %v397
        %7592 = vmatmul.mubr.bf16.gmra.mrb[0].mxu0 %v396
        %v7593 = vpop.f32.mrb[0].mxu0
        %v7594 = vadd.f32 %v7553, %v7593
        %v7595 = vpop.f32.mrb[0].mxu0
        %v7596 = vadd.f32 %v7555, %v7595
        %v7597 = vpop.f32.mrb[0].mxu0
        %v7598 = vpop.f32.mrb[0].mxu0
        %7599 = vdwg.mxu0
        %7600 = vmatprep.subr.bf16.mxu0 %v4926
        %7601 = vmatpush1.bf16.msra.mxu0 %v4925
        %7602 = vmatprep.subr.bf16.mxu0 %v4934
        %7603 = vmatpush1.bf16.msra.mxu0 %v4933
        %7604 = vmatprep.subr.bf16.mxu0 %v4942
        %7605 = vmatpush1.bf16.msra.mxu0 %v4941
        %7606 = vmatprep.subr.bf16.mxu0 %v4950
        %7607 = vmatpush1.bf16.msra.mxu0 %v4949
        %7608 = vmatprep.subr.bf16.mxu0 %v4958
        %7609 = vmatpush1.bf16.msra.mxu0 %v4957
        %7610 = vmatprep.subr.bf16.mxu0 %v4966
        %7611 = vmatpush1.bf16.msra.mxu0 %v4965
        %7612 = vmatprep.subr.bf16.mxu0 %v4974
        %7613 = vmatpush1.bf16.msra.mxu0 %v4973
        %7614 = vmatprep.subr.bf16.mxu0 %v4982
        %7615 = vmatpush1.bf16.msra.mxu0 %v4981
        %7616 = vmatprep.subr.bf16.mxu0 %v4990
        %7617 = vmatpush1.bf16.msra.mxu0 %v4989
        %7618 = vmatprep.subr.bf16.mxu0 %v4998
        %7619 = vmatpush1.bf16.msra.mxu0 %v4997
        %7620 = vmatprep.subr.bf16.mxu0 %v5006
        %7621 = vmatpush1.bf16.msra.mxu0 %v5005
        %7622 = vmatprep.subr.bf16.mxu0 %v5014
        %7623 = vmatpush1.bf16.msra.mxu0 %v5013
        %7624 = vmatprep.subr.bf16.mxu0 %v5022
        %7625 = vmatpush1.bf16.msra.mxu0 %v5021
        %7626 = vmatprep.subr.bf16.mxu0 %v5030
        %7627 = vmatpush1.bf16.msra.mxu0 %v5029
        %7628 = vmatprep.subr.bf16.mxu0 %v5038
        %7629 = vmatpush1.bf16.msra.mxu0 %v5037
        %7630 = vmatprep.subr.bf16.mxu0 %v5046
        %7631 = vmatpush1.bf16.msra.mxu0 %v5045
        %7632 = vmatprep.mubr.bf16.mxu0 %v399
        %7633 = vmatmul.mubr.bf16.gmra.mrb[0].mxu0 %v398
        %v7634 = vpop.f32.mrb[0].mxu0
        %v7635 = vadd.f32 %v7594, %v7634
        %v7636 = vpop.f32.mrb[0].mxu0
        %v7637 = vadd.f32 %v7596, %v7636
        %v7638 = vpop.f32.mrb[0].mxu0
        %v7639 = vpop.f32.mrb[0].mxu0
        %7640 = vdwg.mxu0
        %7641 = vmatprep.subr.bf16.mxu0 %v5054
        %7642 = vmatpush1.bf16.msra.mxu0 %v5053
        %7643 = vmatprep.subr.bf16.mxu0 %v5062
        %7644 = vmatpush1.bf16.msra.mxu0 %v5061
        %7645 = vmatprep.subr.bf16.mxu0 %v5070
        %7646 = vmatpush1.bf16.msra.mxu0 %v5069
        %7647 = vmatprep.subr.bf16.mxu0 %v5078
        %7648 = vmatpush1.bf16.msra.mxu0 %v5077
        %7649 = vmatprep.subr.bf16.mxu0 %v5086
        %7650 = vmatpush1.bf16.msra.mxu0 %v5085
        %7651 = vmatprep.subr.bf16.mxu0 %v5094
        %7652 = vmatpush1.bf16.msra.mxu0 %v5093
        %7653 = vmatprep.subr.bf16.mxu0 %v5102
        %7654 = vmatpush1.bf16.msra.mxu0 %v5101
        %7655 = vmatprep.subr.bf16.mxu0 %v5110
        %7656 = vmatpush1.bf16.msra.mxu0 %v5109
        %7657 = vmatprep.subr.bf16.mxu0 %v5118
        %7658 = vmatpush1.bf16.msra.mxu0 %v5117
        %7659 = vmatprep.subr.bf16.mxu0 %v5126
        %7660 = vmatpush1.bf16.msra.mxu0 %v5125
        %7661 = vmatprep.subr.bf16.mxu0 %v5134
        %7662 = vmatpush1.bf16.msra.mxu0 %v5133
        %7663 = vmatprep.subr.bf16.mxu0 %v5142
        %7664 = vmatpush1.bf16.msra.mxu0 %v5141
        %7665 = vmatprep.subr.bf16.mxu0 %v5150
        %7666 = vmatpush1.bf16.msra.mxu0 %v5149
        %7667 = vmatprep.subr.bf16.mxu0 %v5158
        %7668 = vmatpush1.bf16.msra.mxu0 %v5157
        %7669 = vmatprep.subr.bf16.mxu0 %v5166
        %7670 = vmatpush1.bf16.msra.mxu0 %v5165
        %7671 = vmatprep.subr.bf16.mxu0 %v5174
        %7672 = vmatpush1.bf16.msra.mxu0 %v5173
        %7673 = vmatprep.mubr.bf16.mxu0 %v401
        %7674 = vmatmul.mubr.bf16.gmra.mrb[0].mxu0 %v400
        %v7675 = vpop.f32.mrb[0].mxu0
        %v7676 = vadd.f32 %v7635, %v7675
        %v7677 = vpop.f32.mrb[0].mxu0
        %v7678 = vadd.f32 %v7637, %v7677
        %v7679 = vpop.f32.mrb[0].mxu0
        %v7680 = vpop.f32.mrb[0].mxu0
        %7681 = vdwg.mxu0
        %7682 = vmatprep.subr.bf16.mxu0 %v5182
        %7683 = vmatpush1.bf16.msra.mxu0 %v5181
        %7684 = vmatprep.subr.bf16.mxu0 %v5190
        %7685 = vmatpush1.bf16.msra.mxu0 %v5189
        %7686 = vmatprep.subr.bf16.mxu0 %v5198
        %7687 = vmatpush1.bf16.msra.mxu0 %v5197
        %7688 = vmatprep.subr.bf16.mxu0 %v5206
        %7689 = vmatpush1.bf16.msra.mxu0 %v5205
        %7690 = vmatprep.subr.bf16.mxu0 %v5214
        %7691 = vmatpush1.bf16.msra.mxu0 %v5213
        %7692 = vmatprep.subr.bf16.mxu0 %v5222
        %7693 = vmatpush1.bf16.msra.mxu0 %v5221
        %7694 = vmatprep.subr.bf16.mxu0 %v5230
        %7695 = vmatpush1.bf16.msra.mxu0 %v5229
        %7696 = vmatprep.subr.bf16.mxu0 %v5238
        %7697 = vmatpush1.bf16.msra.mxu0 %v5237
        %7698 = vmatprep.subr.bf16.mxu0 %v5246
        %7699 = vmatpush1.bf16.msra.mxu0 %v5245
        %7700 = vmatprep.subr.bf16.mxu0 %v5254
        %7701 = vmatpush1.bf16.msra.mxu0 %v5253
        %7702 = vmatprep.subr.bf16.mxu0 %v5262
        %7703 = vmatpush1.bf16.msra.mxu0 %v5261
        %7704 = vmatprep.subr.bf16.mxu0 %v5270
        %7705 = vmatpush1.bf16.msra.mxu0 %v5269
        %7706 = vmatprep.subr.bf16.mxu0 %v5278
        %7707 = vmatpush1.bf16.msra.mxu0 %v5277
        %7708 = vmatprep.subr.bf16.mxu0 %v5286
        %7709 = vmatpush1.bf16.msra.mxu0 %v5285
        %7710 = vmatprep.subr.bf16.mxu0 %v5294
        %7711 = vmatpush1.bf16.msra.mxu0 %v5293
        %7712 = vmatprep.subr.bf16.mxu0 %v5302
        %7713 = vmatpush1.bf16.msra.mxu0 %v5301
        %7714 = vmatprep.mubr.bf16.mxu0 %v403
        %7715 = vmatmul.mubr.bf16.gmra.mrb[0].mxu0 %v402
        %v7716 = vpop.f32.mrb[0].mxu0
        %v7717 = vadd.f32 %v7676, %v7716
        %v7718 = vpop.f32.mrb[0].mxu0
        %v7719 = vadd.f32 %v7678, %v7718
        %v7720 = vpop.f32.mrb[0].mxu0
        %v7721 = vpop.f32.mrb[0].mxu0
        %7722 = vdwg.mxu0
        %7723 = vmatprep.subr.bf16.mxu0 %v5310
        %7724 = vmatpush1.bf16.msra.mxu0 %v5309
        %7725 = vmatprep.subr.bf16.mxu0 %v5318
        %7726 = vmatpush1.bf16.msra.mxu0 %v5317
        %7727 = vmatprep.subr.bf16.mxu0 %v5326
        %7728 = vmatpush1.bf16.msra.mxu0 %v5325
        %7729 = vmatprep.subr.bf16.mxu0 %v5334
        %7730 = vmatpush1.bf16.msra.mxu0 %v5333
        %7731 = vmatprep.subr.bf16.mxu0 %v5342
        %7732 = vmatpush1.bf16.msra.mxu0 %v5341
        %7733 = vmatprep.subr.bf16.mxu0 %v5350
        %7734 = vmatpush1.bf16.msra.mxu0 %v5349
        %7735 = vmatprep.subr.bf16.mxu0 %v5358
        %7736 = vmatpush1.bf16.msra.mxu0 %v5357
        %7737 = vmatprep.subr.bf16.mxu0 %v5366
        %7738 = vmatpush1.bf16.msra.mxu0 %v5365
        %7739 = vmatprep.subr.bf16.mxu0 %v5374
        %7740 = vmatpush1.bf16.msra.mxu0 %v5373
        %7741 = vmatprep.subr.bf16.mxu0 %v5382
        %7742 = vmatpush1.bf16.msra.mxu0 %v5381
        %7743 = vmatprep.subr.bf16.mxu0 %v5390
        %7744 = vmatpush1.bf16.msra.mxu0 %v5389
        %7745 = vmatprep.subr.bf16.mxu0 %v5398
        %7746 = vmatpush1.bf16.msra.mxu0 %v5397
        %7747 = vmatprep.subr.bf16.mxu0 %v5406
        %7748 = vmatpush1.bf16.msra.mxu0 %v5405
        %7749 = vmatprep.subr.bf16.mxu0 0
        %7750 = vmatpush1.bf16.msra.mxu0 0
        %7751 = vmatprep.subr.bf16.mxu0 0
        %7752 = vmatpush1.bf16.msra.mxu0 0
        %7753 = vmatprep.subr.bf16.mxu0 0
        %7754 = vmatpush1.bf16.msra.mxu0 0
        %7755 = vmatprep.mubr.bf16.mxu0 %v6450
        %7756 = vmatmul.mubr.bf16.gmra.mrb[0].mxu0 %v404
        %v7757 = vpop.f32.mrb[0].mxu0
        %v7758 = vadd.f32 %v7717, %v7757
        %v7759 = vpop.f32.mrb[0].mxu0
        %v7760 = vadd.f32 %v7719, %v7759
        %v7761 = vpop.f32.mrb[0].mxu0
        %v7762 = vpop.f32.mrb[0].mxu0
        %7763 = vdwg.mxu0
        %v7764 = vld [vmem:[%s267] sm:$0xff]
        %v7766 = vlaneseq
        %v7767 = vshrl.u32 %v7766, 7
        %v7768 = vsub.s32 0, %v7767
        %v7769 = vrot.slane %v7764, %v7768
        %v7770 = vlaneseq
        %v7771 = vshrl.u32 %v7770, 7
        %v7772 = vsub.s32 1, %v7771
        %v7773 = vrot.slane %v7764, %v7772
        %v7774 = vlaneseq
        %v7775 = vshrl.u32 %v7774, 7
        %v7776 = vsub.s32 2, %v7775
        %v7777 = vrot.slane %v7764, %v7776
        %v7778 = vlaneseq
        %v7779 = vshrl.u32 %v7778, 7
        %v7780 = vsub.s32 3, %v7779
        %v7781 = vrot.slane %v7764, %v7780
        %v7782 = vlaneseq
        %v7783 = vshrl.u32 %v7782, 7
        %v7784 = vsub.s32 4, %v7783
        %v7785 = vrot.slane %v7764, %v7784
        %v7786 = vlaneseq
        %v7787 = vshrl.u32 %v7786, 7
        %v7788 = vsub.s32 5, %v7787
        %v7789 = vrot.slane %v7764, %v7788
        %v7790 = vlaneseq
        %v7791 = vshrl.u32 %v7790, 7
        %v7792 = vsub.s32 6, %v7791
        %v7793 = vrot.slane %v7764, %v7792
        %v7794 = vlaneseq
        %v7795 = vshrl.u32 %v7794, 7
        %v7796 = vsub.s32 7, %v7795
        %v7797 = vrot.slane %v7764, %v7796
        %v7806 = vadd.f32 %v6774, %v7769
        %v7807 = vadd.f32 %v6776, %v7773
        %v7808 = vadd.f32 %v7102, %v7777
        %v7809 = vadd.f32 %v7104, %v7781
        %v7810 = vadd.f32 %v7430, %v7785
        %v7811 = vadd.f32 %v7432, %v7789
        %v7812 = vadd.f32 %v7758, %v7793
        %v7813 = vadd.f32 %v7760, %v7797
        %v7814 = vmax.f32 %v7806, 0.0
        %v7815 = vmax.f32 %v7807, 0.0
        %v7816 = vmax.f32 %v7808, 0.0
        %v7817 = vmax.f32 %v7809, 0.0
        %v7818 = vmax.f32 %v7810, 0.0
        %v7819 = vmax.f32 %v7811, 0.0
        %v7820 = vmax.f32 %v7812, 0.0
        %v7821 = vmax.f32 %v7813, 0.0
        %v7830 = vcombine.low %v7814, %v7815
        %v7831 = vcombine.low %v7816, %v7817
        %v7832 = vcombine.low %v7818, %v7819
        %v7833 = vcombine.low %v7820, %v7821
        %v7835 = vunpack.c.l.s4 1966171168
        %v7836 = vunpack.c.0.s8 %v7835
        %v7837 = vlaneseq
        %v7838 = vshrl.u32 %v7837, 7
        %v7839 = vsub.s32 %v7836, %v7838
        %v7840 = vrot.slane %v7830, %v7839
        %v7842 = vunpack.c.l.s4 1966171168
        %v7843 = vunpack.c.0.s8 %v7842
        %v7844 = vlaneseq
        %v7845 = vshrl.u32 %v7844, 7
        %v7846 = vsub.s32 %v7843, %v7845
        %v7847 = vrot.slane %v7831, %v7846
        %v7849 = vunpack.c.l.s4 1966171168
        %v7850 = vunpack.c.0.s8 %v7849
        %v7851 = vlaneseq
        %v7852 = vshrl.u32 %v7851, 7
        %v7853 = vsub.s32 %v7850, %v7852
        %v7854 = vrot.slane %v7832, %v7853
        %v7856 = vunpack.c.l.s4 1966171168
        %v7857 = vunpack.c.0.s8 %v7856
        %v7858 = vlaneseq
        %v7859 = vshrl.u32 %v7858, 7
        %v7860 = vsub.s32 %v7857, %v7859
        %v7861 = vrot.slane %v7833, %v7860
        %v7862 = vcombine.low %v7840, %v7847
        %v7863 = vcombine.low %v7854, %v7861
        %v7865 = vunpack.c.l.s4 1966171168
        %v7866 = vunpack.c.0.s8 %v7865
        %v7867 = vlaneseq
        %v7868 = vshrl.u32 %v7867, 7
        %v7869 = vsub.s32 %v7866, %v7868
        %v7870 = vrot.slane %v7862, %v7869
        %v7872 = vunpack.c.l.s4 1966171168
        %v7873 = vunpack.c.0.s8 %v7872
        %v7874 = vlaneseq
        %v7875 = vshrl.u32 %v7874, 7
        %v7876 = vsub.s32 %v7873, %v7875
        %v7877 = vrot.slane %v7863, %v7876
        %v7878 = vcombine.low %v7870, %v7877
        %7880 = vst [vmem:[%s301] sm:$0xff] %v7878
        %s7881 = sand.u32 %s132, 1
        %s7882 = scalar_lea.sflag [#allocation4], %s7881
        %s7883 = sand.u32 %s132, 1
        %s7884 = smul.addr %s7883, 8
        %s7885 = scalar_lea.vmem [#allocation10], %s7884
        // Predicated region
        $region53: #{linear_add_relu.1} parent=35 // pred_check
          %p7886 = pneg %p142
        $region54: #{linear_add_relu.1} parent=35 // pred_check_branch
          %7888 = sbr.rel (%p7886) target = $region56
        $region55: #{linear_add_relu.1} parent=35 // pred_region
          %s7889 = smul.u32 8, %s25
          %s7891 = ssub.s32 128, 128
          %7892 = vsyncadd %s7882, %s7891
          %s7893 = smul.addr %s7889, 16
          %s7894 = scalar_lea.hbm %s4, %s7893
          %s7896 = sshll.u32 %s7885, 4
          %s7897 = int_to_ptr.vmem [resolvable:$true] %s7896
          %7899 = dma.vmem_to_hbm [thread:$0]  %s7897, 128, %s7894, %s7882
        $region56: #{linear_add_relu.1} parent=35 // pred_fallthru
          _
      $region36: #{linear_add_relu.1} parent=5 // pred_fallthru
        _
      %p7900 = scmp.le.s32.totalorder 2, %s20
      // Predicated region
      $region57: #{linear_add_relu.1} parent=5 // pred_check
        %p7901 = pneg %p7900
      $region58: #{linear_add_relu.1} parent=5 // pred_check_branch
        %7903 = sbr.rel (%p7901) target = $region60
      $region59: #{linear_add_relu.1} parent=5 // pred_region
        %s7904 = ssub.s32 %s20, 2
        // Predicated region
        $region61: #{linear_add_relu.1} parent=59 // pred_check
          %p7905 = pneg %p148
        $region62: #{linear_add_relu.1} parent=59 // pred_check_branch
          %7907 = sbr.rel (%p7905) target = $region64
        $region63: #{linear_add_relu.1} parent=59 // pred_region
          %s7908 = sand.u32 %s133, 1
          %s7909 = scalar_lea.sflag [#allocation4], %s7908
          %s7910 = sand.u32 %s133, 1
          %s7911 = smul.addr %s7910, 8
          %s7912 = scalar_lea.vmem [#allocation10], %s7911
          %7913 = dma.done %s7909, 128
        $region64: #{linear_add_relu.1} parent=59 // pred_fallthru
          _
      $region60: #{linear_add_relu.1} parent=5 // pred_fallthru
        _
    $region6: #{linear_add_relu.1} parent=1 // loop_footer
      %s24 = sadd.s32 1, %s20
    $region7: #{linear_add_relu.1} parent=1 // loop_footer_branch
      %19 = sbr.rel target = $region3
    $region8: #{linear_add_relu.1} parent=1 // loop_exit
      _
    %7914 = vsyncpa [#allocation3], 1
    %s7915 = scalar_lea.sflag [#allocation3], 1
    %7916 = vsyncpa %s7915, 1
    %7917 = vsyncpa [#allocation6], 1
    %s7918 = scalar_lea.sflag [#allocation6], 1
    %7919 = vsyncpa %s7918, 1
    %7920 = vsyncpa [#allocation9], 1
    %s7921 = scalar_lea.sflag [#allocation9], 1
    %7922 = vsyncpa %s7921, 1
    %7923 = vsyncpa [#allocation4], 1
    %s7924 = scalar_lea.sflag [#allocation4], 1
    %7925 = vsyncpa %s7924, 1

</llo_original>
